<compile_context>
chip_gen: v5e
topology: v5e:2x2
jax: 0.10.0
libtpu: 0.0.40
codegen_flags: <defaults>
</compile_context>

<pallas_src>
import jax
import jax.numpy as jnp
from jax import lax
from jax.experimental import pallas as pl
from jax.experimental.pallas import tpu as pltpu


# ----------------------------------------------------------------------------
# Fused whole-network kernel (single invocation, whole batch resident in VMEM)
# ----------------------------------------------------------------------------
def _audio_cnn_kernel(x_ref, w1_ref, b1_ref, w2_ref, b2_ref,
                      pmat_ref, cmask_ref, bsel_ref, fcw_ref, fcb_ref, o_ref):
    B, Hp, Wp, Cin = x_ref.shape
    H, W = Hp - 2, Wp - 2
    M = B * H * W
    C1 = w1_ref.shape[1]
    C2 = w2_ref.shape[1]
    n_cells = cmask_ref.shape[1] // C2          # pool_h * pool_w (e.g. 16)

    def im2col(src, cin):
        # src: (B, H+2, W+2, cin) value (spatially zero-padded).
        # 9 shifted taps concatenated along K -> (B*H*W, 9*cin): one matmul per conv.
        cols = [src[:, dh:dh + H, dw:dw + W, :].reshape(M, cin)
                for dh in range(3) for dw in range(3)]
        return jnp.concatenate(cols, axis=-1)

    # ---- conv1 + folded bn1 + relu (single matmul) --------------------------
    a1 = im2col(x_ref[...], Cin)                                    # (M, 9*Cin)
    y1 = jnp.maximum(
        jnp.dot(a1, w1_ref[...], preferred_element_type=jnp.float32) + b1_ref[...],
        0.0)                                                        # (M, C1)

    # ---- zero-pad y1 spatially, entirely in VMEM -----------------------------
    y1s = y1.reshape(B, H, W, C1)
    zrow = jnp.zeros((B, 1, W, C1), jnp.float32)
    zcol = jnp.zeros((B, H + 2, 1, C1), jnp.float32)
    y1p = jnp.concatenate(
        [zcol, jnp.concatenate([zrow, y1s, zrow], axis=1), zcol], axis=2)

    # ---- conv2 + folded bn2 + relu (single matmul) ---------------------------
    a2 = im2col(y1p, C1)                                            # (M, 9*C1)
    y2 = jnp.maximum(
        jnp.dot(a2, w2_ref[...], preferred_element_type=jnp.float32) + b2_ref[...],
        0.0)                                                        # (M, C2)

    # ---- adaptive avg-pool over batch*spatial: block-diagonal pooling matmul -
    pooled = jnp.dot(pmat_ref[...], y2, preferred_element_type=jnp.float32)  # (B*16, C2)

    # ---- flatten (cell, channel) per batch element without a lane-changing
    #      reshape: replicate along lanes, mask the proper cell block, then sum
    #      each element's 16 rows with a tiny selector matmul.
    expand = jnp.concatenate([pooled] * n_cells, axis=1) * cmask_ref[...]     # (B*16, 16*C2)
    feats = jnp.dot(bsel_ref[...], expand, preferred_element_type=jnp.float32)  # (B, 16*C2)

    # ---- fc: one matmul, lane-dense (128-wide padded) output -----------------
    o_ref[...] = (jnp.dot(feats, fcw_ref[...], preferred_element_type=jnp.float32)
                  + fcb_ref[...]).astype(o_ref.dtype)


# ----------------------------------------------------------------------------
# Wrapper: parameter folding + single pallas_call
# ----------------------------------------------------------------------------
def audio_cnn_forward(x_nchw, p, pool_size=(4, 4)):
    B, Cin, H, W = x_nchw.shape
    PH, PW = pool_size
    NCELL = PH * PW
    C1 = p["conv1_w"].shape[0]
    C2 = p["conv2_w"].shape[0]
    NUM = p["fc_w"].shape[0]
    OUT_PAD = -(-NUM // 128) * 128              # lane-dense output width (>=128)

    # Tiny XLA-side preprocessing of the input / weights only; all activations
    # stay inside the single Pallas kernel.
    x = jnp.transpose(x_nchw, (0, 2, 3, 1)).astype(jnp.float32)     # NCHW -> NHWC
    x_pad = jnp.pad(x, ((0, 0), (1, 1), (1, 1), (0, 0)))

    def fold_conv_bn(w, b, g, beta, m, v, eps=1e-5):
        # Eval-mode BN folded into the conv weight + a per-channel bias.
        # TODO(synk): PyTorch training-mode BN (batch stats + running-stat update) not reproduced.
        scale = g / jnp.sqrt(v + eps)
        w_f = w * scale[:, None, None, None]                        # (Cout,Cin,3,3)
        # -> (kh, kw, Cin, Cout) -> (9*Cin, Cout); K order matches in-kernel im2col.
        w_t = jnp.transpose(w_f, (2, 3, 1, 0)).reshape(9 * w.shape[1], w.shape[0])
        bias = (beta + (b - m) * scale)[None, :]
        return w_t.astype(jnp.float32), bias.astype(jnp.float32)

    w1, b1 = fold_conv_bn(p["conv1_w"], p["conv1_b"],
                          p["bn1_g"], p["bn1_b"], p["bn1_m"], p["bn1_v"])
    w2, b2 = fold_conv_bn(p["conv2_w"], p["conv2_b"],
                          p["bn2_g"], p["bn2_b"], p["bn2_m"], p["bn2_v"])

    # Block-diagonal pooling matrix: pooled[(b,cell), c] = mean over cell of y2.
    kh_p, kw_p = H // PH, W // PW
    cell_of = (jnp.arange(H)[:, None] // kh_p) * PW + (jnp.arange(W)[None, :] // kw_p)
    cell_flat = cell_of.reshape(-1)                                 # (H*W,)
    row_b = jnp.arange(B * NCELL) // NCELL
    row_cell = jnp.arange(B * NCELL) % NCELL
    col_b = jnp.arange(B * H * W) // (H * W)
    col_cell = jnp.tile(cell_flat, (B,))
    pmat = ((row_b[:, None] == col_b[None, :]) &
            (row_cell[:, None] == col_cell[None, :])).astype(jnp.float32) / float(kh_p * kw_p)

    # Cell mask (B*16, 16*C2): selects the cell-block of columns for each pooled row.
    colj_cell = jnp.arange(NCELL * C2) // C2
    cmask = (row_cell[:, None] == colj_cell[None, :]).astype(jnp.float32)
    # Batch selector (B, B*16): sums each element's 16 pooled rows into one feature row.
    bsel = (jnp.arange(B)[:, None] == row_b[None, :]).astype(jnp.float32)

    # fc weight permuted to the kernel's (cell, channel) flatten order and
    # zero-padded to a lane-dense 128-wide output.
    fc_wr = jnp.transpose(p["fc_w"].reshape(NUM, C2, NCELL), (2, 1, 0)).reshape(NCELL * C2, NUM)
    fc_wr = jnp.pad(fc_wr, ((0, 0), (0, OUT_PAD - NUM))).astype(jnp.float32)
    fc_b = jnp.pad(p["fc_b"], (0, OUT_PAD - NUM))[None, :].astype(jnp.float32)

    vmem_spec = pl.BlockSpec(memory_space=pltpu.MemorySpace.VMEM)
    out = pl.pallas_call(
        _audio_cnn_kernel,
        out_shape=jax.ShapeDtypeStruct((B, OUT_PAD), jnp.float32),
        in_specs=[vmem_spec] * 10,
        out_specs=vmem_spec,
    )(x_pad, w1, b1, w2, b2, pmat, cmask, bsel, fc_wr, fc_b)

    return out[:, :NUM]


# ----------------------------------------------------------------------------
# Pure-JAX reference (for verification)
# ----------------------------------------------------------------------------
def reference_forward(x, p, eps=1e-5):
    def conv_bn_relu(x, w, b, g, beta, m, v):
        y = lax.conv_general_dilated(
            x, w, (1, 1), ((1, 1), (1, 1)),
            dimension_numbers=("NCHW", "OIHW", "NCHW"))
        y = y + b[None, :, None, None]
        y = g[None, :, None, None] * (y - m[None, :, None, None]) / \
            jnp.sqrt(v[None, :, None, None] + eps) + beta[None, :, None, None]
        return jnp.maximum(y, 0.0)

    y = conv_bn_relu(x, p["conv1_w"], p["conv1_b"], p["bn1_g"], p["bn1_b"], p["bn1_m"], p["bn1_v"])
    y = conv_bn_relu(y, p["conv2_w"], p["conv2_b"], p["bn2_g"], p["bn2_b"], p["bn2_m"], p["bn2_v"])
    B, C, H, W = y.shape
    y = y.reshape(B, C, 4, H // 4, 4, W // 4).mean(axis=(3, 5))     # AdaptiveAvgPool2d((4,4))
    y = y.reshape(B, -1)
    return y @ p["fc_w"].T + p["fc_b"]


# ----------------------------------------------------------------------------
# Deterministic parameter init (synthetic; shapes from the module's __init__)
# ----------------------------------------------------------------------------
def make_params(key, c1_in=4, c1_out=8, c2_out=16, num_classes=10, pool=4):
    ks = jax.random.split(key, 8)
    lin_in = c2_out * pool * pool
    return {
        "conv1_w": 0.1 * jax.random.normal(ks[0], (c1_out, c1_in, 3, 3), jnp.float32),
        "conv1_b": 0.05 * jax.random.normal(ks[1], (c1_out,), jnp.float32),
        "bn1_g": 1.0 + 0.1 * jax.random.normal(ks[2], (c1_out,), jnp.float32),
        "bn1_b": 0.05 * jax.random.normal(ks[3], (c1_out,), jnp.float32),
        "bn1_m": 0.02 * jax.random.normal(ks[2], (c1_out,), jnp.float32),
        "bn1_v": 1.0 + 0.1 * jnp.abs(jax.random.normal(ks[3], (c1_out,), jnp.float32)),
        "conv2_w": 0.1 * jax.random.normal(ks[4], (c2_out, c1_out, 3, 3), jnp.float32),
        "conv2_b": 0.05 * jax.random.normal(ks[5], (c2_out,), jnp.float32),
        "bn2_g": 1.0 + 0.1 * jax.random.normal(ks[6], (c2_out,), jnp.float32),
        "bn2_b": 0.05 * jax.random.normal(ks[7], (c2_out,), jnp.float32),
        "bn2_m": 0.02 * jax.random.normal(ks[6], (c2_out,), jnp.float32),
        "bn2_v": 1.0 + 0.1 * jnp.abs(jax.random.normal(ks[7], (c2_out,), jnp.float32)),
        "fc_w": 0.05 * jax.random.normal(ks[0], (num_classes, lin_in), jnp.float32),
        "fc_b": 0.05 * jax.random.normal(ks[1], (num_classes,), jnp.float32),
    }


if __name__ == "__main__":
    key = jax.random.PRNGKey(0)
    k_x, k_p = jax.random.split(key)
    x = jax.random.normal(k_x, (2, 4, 16, 16), jnp.float32)   # NCHW, like PyTorch
    params = make_params(k_p)

    fwd = jax.jit(audio_cnn_forward)
    out = jax.block_until_ready(fwd(x, params))
    ref = jax.block_until_ready(reference_forward(x, params))

    assert out.shape == (2, 10), out.shape
    assert jnp.allclose(out, ref, rtol=1e-2, atol=1e-2), (
        "mismatch vs reference", float(jnp.max(jnp.abs(out - ref))))
    print("KERNEL_OK")
</pallas_src>

<mosaic_0001>
module attributes {stable_mosaic.version = 11 : i64} {
  func.func @_audio_cnn_kernel(%arg0: memref<2x18x18x4xf32, #tpu.memory_space<vmem>>, %arg1: memref<36x8xf32, #tpu.memory_space<vmem>>, %arg2: memref<1x8xf32, #tpu.memory_space<vmem>>, %arg3: memref<72x16xf32, #tpu.memory_space<vmem>>, %arg4: memref<1x16xf32, #tpu.memory_space<vmem>>, %arg5: memref<32x512xf32, #tpu.memory_space<vmem>>, %arg6: memref<32x256xf32, #tpu.memory_space<vmem>>, %arg7: memref<2x32xf32, #tpu.memory_space<vmem>>, %arg8: memref<256x128xf32, #tpu.memory_space<vmem>>, %arg9: memref<1x128xf32, #tpu.memory_space<vmem>>, %arg10: memref<2x128xf32, #tpu.memory_space<vmem>>) attributes {dimension_semantics = [], scalar_prefetch = 0 : i64, scratch_operands = 0 : i64, tpu.core_type = #tpu.core_type<tc>} {
    %c0 = arith.constant 0 : index
    %c0_0 = arith.constant 0 : index
    %c0_1 = arith.constant 0 : index
    %c0_2 = arith.constant 0 : index
    %0 = vector.load %arg0[%c0, %c0_0, %c0_1, %c0_2] : memref<2x18x18x4xf32, #tpu.memory_space<vmem>>, vector<2x18x18x4xf32>
    %1 = vector.extract_strided_slice %0 {offsets = [0, 0, 0, 0], sizes = [2, 16, 16, 4], strides = [1, 1, 1, 1]} : vector<2x18x18x4xf32> to vector<2x16x16x4xf32>
    %2 = vector.shape_cast %1 : vector<2x16x16x4xf32> to vector<512x4xf32>
    %3 = vector.extract_strided_slice %0 {offsets = [0, 0, 1, 0], sizes = [2, 16, 16, 4], strides = [1, 1, 1, 1]} : vector<2x18x18x4xf32> to vector<2x16x16x4xf32>
    %4 = vector.shape_cast %3 : vector<2x16x16x4xf32> to vector<512x4xf32>
    %5 = vector.extract_strided_slice %0 {offsets = [0, 0, 2, 0], sizes = [2, 16, 16, 4], strides = [1, 1, 1, 1]} : vector<2x18x18x4xf32> to vector<2x16x16x4xf32>
    %6 = vector.shape_cast %5 : vector<2x16x16x4xf32> to vector<512x4xf32>
    %7 = vector.extract_strided_slice %0 {offsets = [0, 1, 0, 0], sizes = [2, 16, 16, 4], strides = [1, 1, 1, 1]} : vector<2x18x18x4xf32> to vector<2x16x16x4xf32>
    %8 = vector.shape_cast %7 : vector<2x16x16x4xf32> to vector<512x4xf32>
    %9 = vector.extract_strided_slice %0 {offsets = [0, 1, 1, 0], sizes = [2, 16, 16, 4], strides = [1, 1, 1, 1]} : vector<2x18x18x4xf32> to vector<2x16x16x4xf32>
    %10 = vector.shape_cast %9 : vector<2x16x16x4xf32> to vector<512x4xf32>
    %11 = vector.extract_strided_slice %0 {offsets = [0, 1, 2, 0], sizes = [2, 16, 16, 4], strides = [1, 1, 1, 1]} : vector<2x18x18x4xf32> to vector<2x16x16x4xf32>
    %12 = vector.shape_cast %11 : vector<2x16x16x4xf32> to vector<512x4xf32>
    %13 = vector.extract_strided_slice %0 {offsets = [0, 2, 0, 0], sizes = [2, 16, 16, 4], strides = [1, 1, 1, 1]} : vector<2x18x18x4xf32> to vector<2x16x16x4xf32>
    %14 = vector.shape_cast %13 : vector<2x16x16x4xf32> to vector<512x4xf32>
    %15 = vector.extract_strided_slice %0 {offsets = [0, 2, 1, 0], sizes = [2, 16, 16, 4], strides = [1, 1, 1, 1]} : vector<2x18x18x4xf32> to vector<2x16x16x4xf32>
    %16 = vector.shape_cast %15 : vector<2x16x16x4xf32> to vector<512x4xf32>
    %17 = vector.extract_strided_slice %0 {offsets = [0, 2, 2, 0], sizes = [2, 16, 16, 4], strides = [1, 1, 1, 1]} : vector<2x18x18x4xf32> to vector<2x16x16x4xf32>
    %18 = vector.shape_cast %17 : vector<2x16x16x4xf32> to vector<512x4xf32>
    %19 = tpu.concatenate %2, %4, %6, %8, %10, %12, %14, %16, %18 in 1 : vector<512x4xf32>, vector<512x4xf32>, vector<512x4xf32>, vector<512x4xf32>, vector<512x4xf32>, vector<512x4xf32>, vector<512x4xf32>, vector<512x4xf32>, vector<512x4xf32> -> vector<512x36xf32>
    %c0_3 = arith.constant 0 : index
    %c0_4 = arith.constant 0 : index
    %20 = vector.load %arg1[%c0_3, %c0_4] : memref<36x8xf32, #tpu.memory_space<vmem>>, vector<36x8xf32>
    %cst = arith.constant dense<0.000000e+00> : vector<512x8xf32>
    %21 = tpu.matmul %19, %20, %cst {dimension_numbers = #tpu.dot_dimension_numbers<[1], [0], [0], [1], [0, 0, 1, 1], [], []>} : vector<512x36xf32>, vector<36x8xf32>, vector<512x8xf32> -> vector<512x8xf32>
    %c0_5 = arith.constant 0 : index
    %c0_6 = arith.constant 0 : index
    %22 = vector.load %arg2[%c0_5, %c0_6] : memref<1x8xf32, #tpu.memory_space<vmem>>, vector<1x8xf32>
    %23 = vector.broadcast %22 : vector<1x8xf32> to vector<512x8xf32>
    %24 = arith.addf %21, %23 : vector<512x8xf32>
    %cst_7 = arith.constant 0.000000e+00 : f32
    %25 = vector.broadcast %cst_7 : f32 to vector<512x8xf32>
    %26 = arith.maximumf %24, %25 : vector<512x8xf32>
    %27 = vector.shape_cast %26 : vector<512x8xf32> to vector<2x16x16x8xf32>
    %cst_8 = arith.constant 0.000000e+00 : f32
    %28 = vector.broadcast %cst_8 : f32 to vector<2x1x16x8xf32>
    %cst_9 = arith.constant 0.000000e+00 : f32
    %29 = vector.broadcast %cst_9 : f32 to vector<2x18x1x8xf32>
    %30 = tpu.concatenate %28, %27, %28 in 1 : vector<2x1x16x8xf32>, vector<2x16x16x8xf32>, vector<2x1x16x8xf32> -> vector<2x18x16x8xf32>
    %31 = tpu.concatenate %29, %30, %29 in 2 : vector<2x18x1x8xf32>, vector<2x18x16x8xf32>, vector<2x18x1x8xf32> -> vector<2x18x18x8xf32>
    %32 = vector.extract_strided_slice %31 {offsets = [0, 0, 0, 0], sizes = [2, 16, 16, 8], strides = [1, 1, 1, 1]} : vector<2x18x18x8xf32> to vector<2x16x16x8xf32>
    %33 = vector.shape_cast %32 : vector<2x16x16x8xf32> to vector<512x8xf32>
    %34 = vector.extract_strided_slice %31 {offsets = [0, 0, 1, 0], sizes = [2, 16, 16, 8], strides = [1, 1, 1, 1]} : vector<2x18x18x8xf32> to vector<2x16x16x8xf32>
    %35 = vector.shape_cast %34 : vector<2x16x16x8xf32> to vector<512x8xf32>
    %36 = vector.extract_strided_slice %31 {offsets = [0, 0, 2, 0], sizes = [2, 16, 16, 8], strides = [1, 1, 1, 1]} : vector<2x18x18x8xf32> to vector<2x16x16x8xf32>
    %37 = vector.shape_cast %36 : vector<2x16x16x8xf32> to vector<512x8xf32>
    %38 = vector.extract_strided_slice %31 {offsets = [0, 1, 0, 0], sizes = [2, 16, 16, 8], strides = [1, 1, 1, 1]} : vector<2x18x18x8xf32> to vector<2x16x16x8xf32>
    %39 = vector.shape_cast %38 : vector<2x16x16x8xf32> to vector<512x8xf32>
    %40 = vector.extract_strided_slice %31 {offsets = [0, 1, 1, 0], sizes = [2, 16, 16, 8], strides = [1, 1, 1, 1]} : vector<2x18x18x8xf32> to vector<2x16x16x8xf32>
    %41 = vector.shape_cast %40 : vector<2x16x16x8xf32> to vector<512x8xf32>
    %42 = vector.extract_strided_slice %31 {offsets = [0, 1, 2, 0], sizes = [2, 16, 16, 8], strides = [1, 1, 1, 1]} : vector<2x18x18x8xf32> to vector<2x16x16x8xf32>
    %43 = vector.shape_cast %42 : vector<2x16x16x8xf32> to vector<512x8xf32>
    %44 = vector.extract_strided_slice %31 {offsets = [0, 2, 0, 0], sizes = [2, 16, 16, 8], strides = [1, 1, 1, 1]} : vector<2x18x18x8xf32> to vector<2x16x16x8xf32>
    %45 = vector.shape_cast %44 : vector<2x16x16x8xf32> to vector<512x8xf32>
    %46 = vector.extract_strided_slice %31 {offsets = [0, 2, 1, 0], sizes = [2, 16, 16, 8], strides = [1, 1, 1, 1]} : vector<2x18x18x8xf32> to vector<2x16x16x8xf32>
    %47 = vector.shape_cast %46 : vector<2x16x16x8xf32> to vector<512x8xf32>
    %48 = vector.extract_strided_slice %31 {offsets = [0, 2, 2, 0], sizes = [2, 16, 16, 8], strides = [1, 1, 1, 1]} : vector<2x18x18x8xf32> to vector<2x16x16x8xf32>
    %49 = vector.shape_cast %48 : vector<2x16x16x8xf32> to vector<512x8xf32>
    %50 = tpu.concatenate %33, %35, %37, %39, %41, %43, %45, %47, %49 in 1 : vector<512x8xf32>, vector<512x8xf32>, vector<512x8xf32>, vector<512x8xf32>, vector<512x8xf32>, vector<512x8xf32>, vector<512x8xf32>, vector<512x8xf32>, vector<512x8xf32> -> vector<512x72xf32>
    %c0_10 = arith.constant 0 : index
    %c0_11 = arith.constant 0 : index
    %51 = vector.load %arg3[%c0_10, %c0_11] : memref<72x16xf32, #tpu.memory_space<vmem>>, vector<72x16xf32>
    %cst_12 = arith.constant dense<0.000000e+00> : vector<512x16xf32>
    %52 = tpu.matmul %50, %51, %cst_12 {dimension_numbers = #tpu.dot_dimension_numbers<[1], [0], [0], [1], [0, 0, 1, 1], [], []>} : vector<512x72xf32>, vector<72x16xf32>, vector<512x16xf32> -> vector<512x16xf32>
    %c0_13 = arith.constant 0 : index
    %c0_14 = arith.constant 0 : index
    %53 = vector.load %arg4[%c0_13, %c0_14] : memref<1x16xf32, #tpu.memory_space<vmem>>, vector<1x16xf32>
    %54 = vector.broadcast %53 : vector<1x16xf32> to vector<512x16xf32>
    %55 = arith.addf %52, %54 : vector<512x16xf32>
    %cst_15 = arith.constant 0.000000e+00 : f32
    %56 = vector.broadcast %cst_15 : f32 to vector<512x16xf32>
    %57 = arith.maximumf %55, %56 : vector<512x16xf32>
    %c0_16 = arith.constant 0 : index
    %c0_17 = arith.constant 0 : index
    %58 = vector.load %arg5[%c0_16, %c0_17] : memref<32x512xf32, #tpu.memory_space<vmem>>, vector<32x512xf32>
    %cst_18 = arith.constant dense<0.000000e+00> : vector<32x16xf32>
    %59 = tpu.matmul %58, %57, %cst_18 {dimension_numbers = #tpu.dot_dimension_numbers<[1], [0], [0], [1], [0, 0, 1, 1], [], []>} : vector<32x512xf32>, vector<512x16xf32>, vector<32x16xf32> -> vector<32x16xf32>
    %60 = tpu.concatenate %59, %59, %59, %59, %59, %59, %59, %59, %59, %59, %59, %59, %59, %59, %59, %59 in 1 : vector<32x16xf32>, vector<32x16xf32>, vector<32x16xf32>, vector<32x16xf32>, vector<32x16xf32>, vector<32x16xf32>, vector<32x16xf32>, vector<32x16xf32>, vector<32x16xf32>, vector<32x16xf32>, vector<32x16xf32>, vector<32x16xf32>, vector<32x16xf32>, vector<32x16xf32>, vector<32x16xf32>, vector<32x16xf32> -> vector<32x256xf32>
    %c0_19 = arith.constant 0 : index
    %c0_20 = arith.constant 0 : index
    %61 = vector.load %arg6[%c0_19, %c0_20] : memref<32x256xf32, #tpu.memory_space<vmem>>, vector<32x256xf32>
    %62 = arith.mulf %60, %61 : vector<32x256xf32>
    %c0_21 = arith.constant 0 : index
    %c0_22 = arith.constant 0 : index
    %63 = vector.load %arg7[%c0_21, %c0_22] : memref<2x32xf32, #tpu.memory_space<vmem>>, vector<2x32xf32>
    %cst_23 = arith.constant dense<0.000000e+00> : vector<2x256xf32>
    %64 = tpu.matmul %63, %62, %cst_23 {dimension_numbers = #tpu.dot_dimension_numbers<[1], [0], [0], [1], [0, 0, 1, 1], [], []>} : vector<2x32xf32>, vector<32x256xf32>, vector<2x256xf32> -> vector<2x256xf32>
    %c0_24 = arith.constant 0 : index
    %c0_25 = arith.constant 0 : index
    %65 = vector.load %arg8[%c0_24, %c0_25] : memref<256x128xf32, #tpu.memory_space<vmem>>, vector<256x128xf32>
    %cst_26 = arith.constant dense<0.000000e+00> : vector<2x128xf32>
    %66 = tpu.matmul %64, %65, %cst_26 {dimension_numbers = #tpu.dot_dimension_numbers<[1], [0], [0], [1], [0, 0, 1, 1], [], []>} : vector<2x256xf32>, vector<256x128xf32>, vector<2x128xf32> -> vector<2x128xf32>
    %c0_27 = arith.constant 0 : index
    %c0_28 = arith.constant 0 : index
    %67 = vector.load %arg9[%c0_27, %c0_28] : memref<1x128xf32, #tpu.memory_space<vmem>>, vector<1x128xf32>
    %68 = vector.broadcast %67 : vector<1x128xf32> to vector<2x128xf32>
    %69 = arith.addf %66, %68 : vector<2x128xf32>
    %c0_29 = arith.constant 0 : index
    %c0_30 = arith.constant 0 : index
    %70 = vector.load %arg10[%c0_29, %c0_30] : memref<2x128xf32, #tpu.memory_space<vmem>>, vector<2x128xf32>
    tpu.vector_store %arg10[%c0_29, %c0_30], %69 {strides = array<i32>} : memref<2x128xf32, #tpu.memory_space<vmem>>, vector<2x128xf32>,
    return
  }
}

</mosaic_0001>

<llo_original>
// kernel: audio_cnn_forward.1
$region0: #{audio_cnn_forward.1}
  #allocation0 [shape = 'u32[]', space=smem, size = 0x4, offset = 0x4, fixed_abs, tag = 'smem constant byte address 0x4 - core index']
  #allocation1 [shape = 'u32[72,128]{1,0:T(1,128)}', space=vmem, size = 0x9000, scoped, tag = 'internal scratch']
  %s0 = inlined_call_operand.vmem [shape: f32[2,18,18,4], index: 0, kind: input, shape index: {}]
  %s1 = inlined_call_operand.vmem [shape: f32[36,8], index: 1, kind: input, shape index: {}]
  %s2 = inlined_call_operand.vmem [shape: f32[1,8], index: 2, kind: input, shape index: {}]
  %s3 = inlined_call_operand.vmem [shape: f32[72,16], index: 3, kind: input, shape index: {}]
  %s4 = inlined_call_operand.vmem [shape: f32[1,16], index: 4, kind: input, shape index: {}]
  %s5 = inlined_call_operand.vmem [shape: f32[32,512], index: 5, kind: input, shape index: {}]
  %s6 = inlined_call_operand.vmem [shape: f32[32,256], index: 6, kind: input, shape index: {}]
  %s7 = inlined_call_operand.vmem [shape: f32[2,32], index: 7, kind: input, shape index: {}]
  %s8 = inlined_call_operand.vmem [shape: f32[256,128], index: 8, kind: input, shape index: {}]
  %s9 = inlined_call_operand.vmem [shape: f32[1,128], index: 9, kind: input, shape index: {}]
  %s10 = inlined_call_operand.hbm [shape: f32[2,128], index: 10, kind: output, shape index: {}]
  %s11 = sld [smem:[#allocation0]]
  $region50: #{audio_cnn_forward.1} parent=0
    _
  %s13 = ssub.s32 1, %s11
  %s14 = scalar_select 0, %s13, %s11
  $region1: #{audio_cnn_forward.1} parent=0
    #allocation2 [shape = 'u8[1024]{0}', space=vmem, size = 0x400, scoped, tag = 'output window, operand 0, single buffered']
    #allocation3 [shape = 's32[1]{0}', space=sflag, size = 0x4, scoped, tag = 'scoped memory for audio_cnn_forward.1']
    %15 = vsyncpa [#allocation3], 0
    // Predicated region
    $region2: #{audio_cnn_forward.1} parent=1 // pred_check
      _
    $region3: #{audio_cnn_forward.1} parent=1 // pred_check_branch
      %17 = sbr.rel (0) target = $region5
    $region4: #{audio_cnn_forward.1} parent=1 // pred_region
      _
    $region5: #{audio_cnn_forward.1} parent=1 // pred_fallthru
      _
    // Predicated region
    $region6: #{audio_cnn_forward.1} parent=1 // pred_check
      _
    $region7: #{audio_cnn_forward.1} parent=1 // pred_check_branch
      %19 = sbr.rel (0) target = $region9
    $region8: #{audio_cnn_forward.1} parent=1 // pred_region
      _
    $region9: #{audio_cnn_forward.1} parent=1 // pred_fallthru
      _
    // Predicated region
    $region10: #{audio_cnn_forward.1} parent=1 // pred_check
      _
    $region11: #{audio_cnn_forward.1} parent=1 // pred_check_branch
      %21 = sbr.rel (0) target = $region13
    $region12: #{audio_cnn_forward.1} parent=1 // pred_region
      _
    $region13: #{audio_cnn_forward.1} parent=1 // pred_fallthru
      _
    // Predicated region
    $region14: #{audio_cnn_forward.1} parent=1 // pred_check
      _
    $region15: #{audio_cnn_forward.1} parent=1 // pred_check_branch
      %23 = sbr.rel (0) target = $region17
    $region16: #{audio_cnn_forward.1} parent=1 // pred_region
      _
    $region17: #{audio_cnn_forward.1} parent=1 // pred_fallthru
      _
    // Predicated region
    $region18: #{audio_cnn_forward.1} parent=1 // pred_check
      _
    $region19: #{audio_cnn_forward.1} parent=1 // pred_check_branch
      %25 = sbr.rel (0) target = $region21
    $region20: #{audio_cnn_forward.1} parent=1 // pred_region
      _
    $region21: #{audio_cnn_forward.1} parent=1 // pred_fallthru
      _
    // Predicated region
    $region22: #{audio_cnn_forward.1} parent=1 // pred_check
      _
    $region23: #{audio_cnn_forward.1} parent=1 // pred_check_branch
      %27 = sbr.rel (0) target = $region25
    $region24: #{audio_cnn_forward.1} parent=1 // pred_region
      _
    $region25: #{audio_cnn_forward.1} parent=1 // pred_fallthru
      _
    // Predicated region
    $region26: #{audio_cnn_forward.1} parent=1 // pred_check
      _
    $region27: #{audio_cnn_forward.1} parent=1 // pred_check_branch
      %29 = sbr.rel (0) target = $region29
    $region28: #{audio_cnn_forward.1} parent=1 // pred_region
      _
    $region29: #{audio_cnn_forward.1} parent=1 // pred_fallthru
      _
    // Predicated region
    $region30: #{audio_cnn_forward.1} parent=1 // pred_check
      _
    $region31: #{audio_cnn_forward.1} parent=1 // pred_check_branch
      %31 = sbr.rel (0) target = $region33
    $region32: #{audio_cnn_forward.1} parent=1 // pred_region
      _
    $region33: #{audio_cnn_forward.1} parent=1 // pred_fallthru
      _
    // Predicated region
    $region34: #{audio_cnn_forward.1} parent=1 // pred_check
      _
    $region35: #{audio_cnn_forward.1} parent=1 // pred_check_branch
      %33 = sbr.rel (0) target = $region37
    $region36: #{audio_cnn_forward.1} parent=1 // pred_region
      _
    $region37: #{audio_cnn_forward.1} parent=1 // pred_fallthru
      _
    // Predicated region
    $region38: #{audio_cnn_forward.1} parent=1 // pred_check
      _
    $region39: #{audio_cnn_forward.1} parent=1 // pred_check_branch
      %35 = sbr.rel (0) target = $region41
    $region40: #{audio_cnn_forward.1} parent=1 // pred_region
      _
    $region41: #{audio_cnn_forward.1} parent=1 // pred_fallthru
      _
    %v36 = vld [vmem:[%s0] sm:$0xff]
    %v37 = vld [vmem:[%s0 + $0x8] sm:$0xff]
    %v38 = vld [vmem:[%s0 + $0x10] sm:$0x3]
    %v39 = vld [vmem:[%s0 + $0x18] sm:$0xff]
    %v40 = vld [vmem:[%s0 + $0x20] sm:$0xff]
    %v41 = vld [vmem:[%s0 + $0x28] sm:$0x3]
    %v42 = vld [vmem:[%s0 + $0x30] sm:$0xff]
    %v43 = vld [vmem:[%s0 + $0x38] sm:$0xff]
    %v44 = vld [vmem:[%s0 + $0x40] sm:$0x3]
    %v45 = vld [vmem:[%s0 + $0x48] sm:$0xff]
    %v46 = vld [vmem:[%s0 + $0x50] sm:$0xff]
    %v47 = vld [vmem:[%s0 + $0x58] sm:$0x3]
    %v48 = vld [vmem:[%s0 + $0x60] sm:$0xff]
    %v49 = vld [vmem:[%s0 + $0x68] sm:$0xff]
    %v50 = vld [vmem:[%s0 + $0x70] sm:$0x3]
    %v51 = vld [vmem:[%s0 + $0x78] sm:$0xff]
    %v52 = vld [vmem:[%s0 + $0x80] sm:$0xff]
    %v53 = vld [vmem:[%s0 + $0x88] sm:$0x3]
    %v54 = vld [vmem:[%s0 + $0x90] sm:$0xff]
    %v55 = vld [vmem:[%s0 + $0x98] sm:$0xff]
    %v56 = vld [vmem:[%s0 + $0xa0] sm:$0x3]
    %v57 = vld [vmem:[%s0 + $0xa8] sm:$0xff]
    %v58 = vld [vmem:[%s0 + $0xb0] sm:$0xff]
    %v59 = vld [vmem:[%s0 + $0xb8] sm:$0x3]
    %v60 = vld [vmem:[%s0 + $0xc0] sm:$0xff]
    %v61 = vld [vmem:[%s0 + $0xc8] sm:$0xff]
    %v62 = vld [vmem:[%s0 + $0xd0] sm:$0x3]
    %v63 = vld [vmem:[%s0 + $0xd8] sm:$0xff]
    %v64 = vld [vmem:[%s0 + $0xe0] sm:$0xff]
    %v65 = vld [vmem:[%s0 + $0xe8] sm:$0x3]
    %v66 = vld [vmem:[%s0 + $0xf0] sm:$0xff]
    %v67 = vld [vmem:[%s0 + $0xf8] sm:$0xff]
    %v68 = vld [vmem:[%s0 + $0x100] sm:$0x3]
    %v69 = vld [vmem:[%s0 + $0x108] sm:$0xff]
    %v70 = vld [vmem:[%s0 + $0x110] sm:$0xff]
    %v71 = vld [vmem:[%s0 + $0x118] sm:$0x3]
    %v72 = vld [vmem:[%s0 + $0x120] sm:$0xff]
    %v73 = vld [vmem:[%s0 + $0x128] sm:$0xff]
    %v74 = vld [vmem:[%s0 + $0x130] sm:$0x3]
    %v75 = vld [vmem:[%s0 + $0x138] sm:$0xff]
    %v76 = vld [vmem:[%s0 + $0x140] sm:$0xff]
    %v77 = vld [vmem:[%s0 + $0x148] sm:$0x3]
    %v78 = vld [vmem:[%s0 + $0x150] sm:$0xff]
    %v79 = vld [vmem:[%s0 + $0x158] sm:$0xff]
    %v80 = vld [vmem:[%s0 + $0x160] sm:$0x3]
    %v81 = vld [vmem:[%s0 + $0x168] sm:$0xff]
    %v82 = vld [vmem:[%s0 + $0x170] sm:$0xff]
    %v83 = vld [vmem:[%s0 + $0x178] sm:$0x3]
    %v84 = vld [vmem:[%s0 + $0x180] sm:$0xff]
    %v85 = vld [vmem:[%s0 + $0x188] sm:$0xff]
    %v86 = vld [vmem:[%s0 + $0x190] sm:$0x3]
    %v87 = vld [vmem:[%s0 + $0x198] sm:$0xff]
    %v88 = vld [vmem:[%s0 + $0x1a0] sm:$0xff]
    %v89 = vld [vmem:[%s0 + $0x1a8] sm:$0x3]
    %v90 = vld [vmem:[%s0 + $0x1b0] sm:$0xff]
    %v91 = vld [vmem:[%s0 + $0x1b8] sm:$0xff]
    %v92 = vld [vmem:[%s0 + $0x1c0] sm:$0x3]
    %v93 = vld [vmem:[%s0 + $0x1c8] sm:$0xff]
    %v94 = vld [vmem:[%s0 + $0x1d0] sm:$0xff]
    %v95 = vld [vmem:[%s0 + $0x1d8] sm:$0x3]
    %v96 = vld [vmem:[%s0 + $0x1e0] sm:$0xff]
    %v97 = vld [vmem:[%s0 + $0x1e8] sm:$0xff]
    %v98 = vld [vmem:[%s0 + $0x1f0] sm:$0x3]
    %v99 = vld [vmem:[%s0 + $0x1f8] sm:$0xff]
    %v100 = vld [vmem:[%s0 + $0x200] sm:$0xff]
    %v101 = vld [vmem:[%s0 + $0x208] sm:$0x3]
    %v102 = vld [vmem:[%s0 + $0x210] sm:$0xff]
    %v103 = vld [vmem:[%s0 + $0x218] sm:$0xff]
    %v104 = vld [vmem:[%s0 + $0x220] sm:$0x3]
    %v105 = vld [vmem:[%s0 + $0x228] sm:$0xff]
    %v106 = vld [vmem:[%s0 + $0x230] sm:$0xff]
    %v107 = vld [vmem:[%s0 + $0x238] sm:$0x3]
    %v108 = vld [vmem:[%s0 + $0x240] sm:$0xff]
    %v109 = vld [vmem:[%s0 + $0x248] sm:$0xff]
    %v110 = vld [vmem:[%s0 + $0x250] sm:$0x3]
    %v111 = vld [vmem:[%s0 + $0x258] sm:$0xff]
    %v112 = vld [vmem:[%s0 + $0x260] sm:$0xff]
    %v113 = vld [vmem:[%s0 + $0x268] sm:$0x3]
    %v114 = vld [vmem:[%s0 + $0x270] sm:$0xff]
    %v115 = vld [vmem:[%s0 + $0x278] sm:$0xff]
    %v116 = vld [vmem:[%s0 + $0x280] sm:$0x3]
    %v117 = vld [vmem:[%s0 + $0x288] sm:$0xff]
    %v118 = vld [vmem:[%s0 + $0x290] sm:$0xff]
    %v119 = vld [vmem:[%s0 + $0x298] sm:$0x3]
    %v120 = vld [vmem:[%s0 + $0x2a0] sm:$0xff]
    %v121 = vld [vmem:[%s0 + $0x2a8] sm:$0xff]
    %v122 = vld [vmem:[%s0 + $0x2b0] sm:$0x3]
    %v123 = vld [vmem:[%s0 + $0x2b8] sm:$0xff]
    %v124 = vld [vmem:[%s0 + $0x2c0] sm:$0xff]
    %v125 = vld [vmem:[%s0 + $0x2c8] sm:$0x3]
    %v126 = vld [vmem:[%s0 + $0x2d0] sm:$0xff]
    %v127 = vld [vmem:[%s0 + $0x2d8] sm:$0xff]
    %v128 = vld [vmem:[%s0 + $0x2e0] sm:$0x3]
    %v129 = vld [vmem:[%s0 + $0x2e8] sm:$0xff]
    %v130 = vld [vmem:[%s0 + $0x2f0] sm:$0xff]
    %v131 = vld [vmem:[%s0 + $0x2f8] sm:$0x3]
    %v132 = vld [vmem:[%s0 + $0x300] sm:$0xff]
    %v133 = vld [vmem:[%s0 + $0x308] sm:$0xff]
    %v134 = vld [vmem:[%s0 + $0x310] sm:$0x3]
    %v135 = vld [vmem:[%s0 + $0x318] sm:$0xff]
    %v136 = vld [vmem:[%s0 + $0x320] sm:$0xff]
    %v137 = vld [vmem:[%s0 + $0x328] sm:$0x3]
    %v138 = vld [vmem:[%s0 + $0x330] sm:$0xff]
    %v139 = vld [vmem:[%s0 + $0x338] sm:$0xff]
    %v140 = vld [vmem:[%s0 + $0x340] sm:$0x3]
    %v141 = vld [vmem:[%s0 + $0x348] sm:$0xff]
    %v142 = vld [vmem:[%s0 + $0x350] sm:$0xff]
    %v143 = vld [vmem:[%s0 + $0x358] sm:$0x3]
    %vm240 = vcmask 1046528
    %v241 = vrot.slane %v36, 1
    %v242 = vrot.slane %v37, 1
    %v243 = vsel %vm240, %v241, %v242
    %v244 = vrot.slane %v38, 1
    %v245 = vsel %vm240, %v242, %v244
    %v246 = vrot.slane %v39, 1
    %v247 = vrot.slane %v40, 1
    %v248 = vsel %vm240, %v246, %v247
    %v249 = vrot.slane %v41, 1
    %v250 = vsel %vm240, %v247, %v249
    %v251 = vrot.slane %v42, 1
    %v252 = vrot.slane %v43, 1
    %v253 = vsel %vm240, %v251, %v252
    %v254 = vrot.slane %v44, 1
    %v255 = vsel %vm240, %v252, %v254
    %v256 = vrot.slane %v45, 1
    %v257 = vrot.slane %v46, 1
    %v258 = vsel %vm240, %v256, %v257
    %v259 = vrot.slane %v47, 1
    %v260 = vsel %vm240, %v257, %v259
    %v261 = vrot.slane %v48, 1
    %v262 = vrot.slane %v49, 1
    %v263 = vsel %vm240, %v261, %v262
    %v264 = vrot.slane %v50, 1
    %v265 = vsel %vm240, %v262, %v264
    %v266 = vrot.slane %v51, 1
    %v267 = vrot.slane %v52, 1
    %v268 = vsel %vm240, %v266, %v267
    %v269 = vrot.slane %v53, 1
    %v270 = vsel %vm240, %v267, %v269
    %v271 = vrot.slane %v54, 1
    %v272 = vrot.slane %v55, 1
    %v273 = vsel %vm240, %v271, %v272
    %v274 = vrot.slane %v56, 1
    %v275 = vsel %vm240, %v272, %v274
    %v276 = vrot.slane %v57, 1
    %v277 = vrot.slane %v58, 1
    %v278 = vsel %vm240, %v276, %v277
    %v279 = vrot.slane %v59, 1
    %v280 = vsel %vm240, %v277, %v279
    %v281 = vrot.slane %v60, 1
    %v282 = vrot.slane %v61, 1
    %v283 = vsel %vm240, %v281, %v282
    %v284 = vrot.slane %v62, 1
    %v285 = vsel %vm240, %v282, %v284
    %v286 = vrot.slane %v63, 1
    %v287 = vrot.slane %v64, 1
    %v288 = vsel %vm240, %v286, %v287
    %v289 = vrot.slane %v65, 1
    %v290 = vsel %vm240, %v287, %v289
    %v291 = vrot.slane %v66, 1
    %v292 = vrot.slane %v67, 1
    %v293 = vsel %vm240, %v291, %v292
    %v294 = vrot.slane %v68, 1
    %v295 = vsel %vm240, %v292, %v294
    %v296 = vrot.slane %v69, 1
    %v297 = vrot.slane %v70, 1
    %v298 = vsel %vm240, %v296, %v297
    %v299 = vrot.slane %v71, 1
    %v300 = vsel %vm240, %v297, %v299
    %v301 = vrot.slane %v72, 1
    %v302 = vrot.slane %v73, 1
    %v303 = vsel %vm240, %v301, %v302
    %v304 = vrot.slane %v74, 1
    %v305 = vsel %vm240, %v302, %v304
    %v306 = vrot.slane %v75, 1
    %v307 = vrot.slane %v76, 1
    %v308 = vsel %vm240, %v306, %v307
    %v309 = vrot.slane %v77, 1
    %v310 = vsel %vm240, %v307, %v309
    %v311 = vrot.slane %v78, 1
    %v312 = vrot.slane %v79, 1
    %v313 = vsel %vm240, %v311, %v312
    %v314 = vrot.slane %v80, 1
    %v315 = vsel %vm240, %v312, %v314
    %v316 = vrot.slane %v81, 1
    %v317 = vrot.slane %v82, 1
    %v318 = vsel %vm240, %v316, %v317
    %v319 = vrot.slane %v83, 1
    %v320 = vsel %vm240, %v317, %v319
    %v321 = vrot.slane %v90, 1
    %v322 = vrot.slane %v91, 1
    %v323 = vsel %vm240, %v321, %v322
    %v324 = vrot.slane %v92, 1
    %v325 = vsel %vm240, %v322, %v324
    %v326 = vrot.slane %v93, 1
    %v327 = vrot.slane %v94, 1
    %v328 = vsel %vm240, %v326, %v327
    %v329 = vrot.slane %v95, 1
    %v330 = vsel %vm240, %v327, %v329
    %v331 = vrot.slane %v96, 1
    %v332 = vrot.slane %v97, 1
    %v333 = vsel %vm240, %v331, %v332
    %v334 = vrot.slane %v98, 1
    %v335 = vsel %vm240, %v332, %v334
    %v336 = vrot.slane %v99, 1
    %v337 = vrot.slane %v100, 1
    %v338 = vsel %vm240, %v336, %v337
    %v339 = vrot.slane %v101, 1
    %v340 = vsel %vm240, %v337, %v339
    %v341 = vrot.slane %v102, 1
    %v342 = vrot.slane %v103, 1
    %v343 = vsel %vm240, %v341, %v342
    %v344 = vrot.slane %v104, 1
    %v345 = vsel %vm240, %v342, %v344
    %v346 = vrot.slane %v105, 1
    %v347 = vrot.slane %v106, 1
    %v348 = vsel %vm240, %v346, %v347
    %v349 = vrot.slane %v107, 1
    %v350 = vsel %vm240, %v347, %v349
    %v351 = vrot.slane %v108, 1
    %v352 = vrot.slane %v109, 1
    %v353 = vsel %vm240, %v351, %v352
    %v354 = vrot.slane %v110, 1
    %v355 = vsel %vm240, %v352, %v354
    %v356 = vrot.slane %v111, 1
    %v357 = vrot.slane %v112, 1
    %v358 = vsel %vm240, %v356, %v357
    %v359 = vrot.slane %v113, 1
    %v360 = vsel %vm240, %v357, %v359
    %v361 = vrot.slane %v114, 1
    %v362 = vrot.slane %v115, 1
    %v363 = vsel %vm240, %v361, %v362
    %v364 = vrot.slane %v116, 1
    %v365 = vsel %vm240, %v362, %v364
    %v366 = vrot.slane %v117, 1
    %v367 = vrot.slane %v118, 1
    %v368 = vsel %vm240, %v366, %v367
    %v369 = vrot.slane %v119, 1
    %v370 = vsel %vm240, %v367, %v369
    %v371 = vrot.slane %v120, 1
    %v372 = vrot.slane %v121, 1
    %v373 = vsel %vm240, %v371, %v372
    %v374 = vrot.slane %v122, 1
    %v375 = vsel %vm240, %v372, %v374
    %v376 = vrot.slane %v123, 1
    %v377 = vrot.slane %v124, 1
    %v378 = vsel %vm240, %v376, %v377
    %v379 = vrot.slane %v125, 1
    %v380 = vsel %vm240, %v377, %v379
    %v381 = vrot.slane %v126, 1
    %v382 = vrot.slane %v127, 1
    %v383 = vsel %vm240, %v381, %v382
    %v384 = vrot.slane %v128, 1
    %v385 = vsel %vm240, %v382, %v384
    %v386 = vrot.slane %v129, 1
    %v387 = vrot.slane %v130, 1
    %v388 = vsel %vm240, %v386, %v387
    %v389 = vrot.slane %v131, 1
    %v390 = vsel %vm240, %v387, %v389
    %v391 = vrot.slane %v132, 1
    %v392 = vrot.slane %v133, 1
    %v393 = vsel %vm240, %v391, %v392
    %v394 = vrot.slane %v134, 1
    %v395 = vsel %vm240, %v392, %v394
    %v396 = vrot.slane %v135, 1
    %v397 = vrot.slane %v136, 1
    %v398 = vsel %vm240, %v396, %v397
    %v399 = vrot.slane %v137, 1
    %v400 = vsel %vm240, %v397, %v399
    %vm401 = vcmask 1045504
    %v402 = vrot.slane %v36, 2
    %v403 = vrot.slane %v37, 2
    %v404 = vsel %vm401, %v402, %v403
    %v405 = vrot.slane %v38, 2
    %v406 = vsel %vm401, %v403, %v405
    %v407 = vrot.slane %v39, 2
    %v408 = vrot.slane %v40, 2
    %v409 = vsel %vm401, %v407, %v408
    %v410 = vrot.slane %v41, 2
    %v411 = vsel %vm401, %v408, %v410
    %v412 = vrot.slane %v42, 2
    %v413 = vrot.slane %v43, 2
    %v414 = vsel %vm401, %v412, %v413
    %v415 = vrot.slane %v44, 2
    %v416 = vsel %vm401, %v413, %v415
    %v417 = vrot.slane %v45, 2
    %v418 = vrot.slane %v46, 2
    %v419 = vsel %vm401, %v417, %v418
    %v420 = vrot.slane %v47, 2
    %v421 = vsel %vm401, %v418, %v420
    %v422 = vrot.slane %v48, 2
    %v423 = vrot.slane %v49, 2
    %v424 = vsel %vm401, %v422, %v423
    %v425 = vrot.slane %v50, 2
    %v426 = vsel %vm401, %v423, %v425
    %v427 = vrot.slane %v51, 2
    %v428 = vrot.slane %v52, 2
    %v429 = vsel %vm401, %v427, %v428
    %v430 = vrot.slane %v53, 2
    %v431 = vsel %vm401, %v428, %v430
    %v432 = vrot.slane %v54, 2
    %v433 = vrot.slane %v55, 2
    %v434 = vsel %vm401, %v432, %v433
    %v435 = vrot.slane %v56, 2
    %v436 = vsel %vm401, %v433, %v435
    %v437 = vrot.slane %v57, 2
    %v438 = vrot.slane %v58, 2
    %v439 = vsel %vm401, %v437, %v438
    %v440 = vrot.slane %v59, 2
    %v441 = vsel %vm401, %v438, %v440
    %v442 = vrot.slane %v60, 2
    %v443 = vrot.slane %v61, 2
    %v444 = vsel %vm401, %v442, %v443
    %v445 = vrot.slane %v62, 2
    %v446 = vsel %vm401, %v443, %v445
    %v447 = vrot.slane %v63, 2
    %v448 = vrot.slane %v64, 2
    %v449 = vsel %vm401, %v447, %v448
    %v450 = vrot.slane %v65, 2
    %v451 = vsel %vm401, %v448, %v450
    %v452 = vrot.slane %v66, 2
    %v453 = vrot.slane %v67, 2
    %v454 = vsel %vm401, %v452, %v453
    %v455 = vrot.slane %v68, 2
    %v456 = vsel %vm401, %v453, %v455
    %v457 = vrot.slane %v69, 2
    %v458 = vrot.slane %v70, 2
    %v459 = vsel %vm401, %v457, %v458
    %v460 = vrot.slane %v71, 2
    %v461 = vsel %vm401, %v458, %v460
    %v462 = vrot.slane %v72, 2
    %v463 = vrot.slane %v73, 2
    %v464 = vsel %vm401, %v462, %v463
    %v465 = vrot.slane %v74, 2
    %v466 = vsel %vm401, %v463, %v465
    %v467 = vrot.slane %v75, 2
    %v468 = vrot.slane %v76, 2
    %v469 = vsel %vm401, %v467, %v468
    %v470 = vrot.slane %v77, 2
    %v471 = vsel %vm401, %v468, %v470
    %v472 = vrot.slane %v78, 2
    %v473 = vrot.slane %v79, 2
    %v474 = vsel %vm401, %v472, %v473
    %v475 = vrot.slane %v80, 2
    %v476 = vsel %vm401, %v473, %v475
    %v477 = vrot.slane %v81, 2
    %v478 = vrot.slane %v82, 2
    %v479 = vsel %vm401, %v477, %v478
    %v480 = vrot.slane %v83, 2
    %v481 = vsel %vm401, %v478, %v480
    %v482 = vrot.slane %v90, 2
    %v483 = vrot.slane %v91, 2
    %v484 = vsel %vm401, %v482, %v483
    %v485 = vrot.slane %v92, 2
    %v486 = vsel %vm401, %v483, %v485
    %v487 = vrot.slane %v93, 2
    %v488 = vrot.slane %v94, 2
    %v489 = vsel %vm401, %v487, %v488
    %v490 = vrot.slane %v95, 2
    %v491 = vsel %vm401, %v488, %v490
    %v492 = vrot.slane %v96, 2
    %v493 = vrot.slane %v97, 2
    %v494 = vsel %vm401, %v492, %v493
    %v495 = vrot.slane %v98, 2
    %v496 = vsel %vm401, %v493, %v495
    %v497 = vrot.slane %v99, 2
    %v498 = vrot.slane %v100, 2
    %v499 = vsel %vm401, %v497, %v498
    %v500 = vrot.slane %v101, 2
    %v501 = vsel %vm401, %v498, %v500
    %v502 = vrot.slane %v102, 2
    %v503 = vrot.slane %v103, 2
    %v504 = vsel %vm401, %v502, %v503
    %v505 = vrot.slane %v104, 2
    %v506 = vsel %vm401, %v503, %v505
    %v507 = vrot.slane %v105, 2
    %v508 = vrot.slane %v106, 2
    %v509 = vsel %vm401, %v507, %v508
    %v510 = vrot.slane %v107, 2
    %v511 = vsel %vm401, %v508, %v510
    %v512 = vrot.slane %v108, 2
    %v513 = vrot.slane %v109, 2
    %v514 = vsel %vm401, %v512, %v513
    %v515 = vrot.slane %v110, 2
    %v516 = vsel %vm401, %v513, %v515
    %v517 = vrot.slane %v111, 2
    %v518 = vrot.slane %v112, 2
    %v519 = vsel %vm401, %v517, %v518
    %v520 = vrot.slane %v113, 2
    %v521 = vsel %vm401, %v518, %v520
    %v522 = vrot.slane %v114, 2
    %v523 = vrot.slane %v115, 2
    %v524 = vsel %vm401, %v522, %v523
    %v525 = vrot.slane %v116, 2
    %v526 = vsel %vm401, %v523, %v525
    %v527 = vrot.slane %v117, 2
    %v528 = vrot.slane %v118, 2
    %v529 = vsel %vm401, %v527, %v528
    %v530 = vrot.slane %v119, 2
    %v531 = vsel %vm401, %v528, %v530
    %v532 = vrot.slane %v120, 2
    %v533 = vrot.slane %v121, 2
    %v534 = vsel %vm401, %v532, %v533
    %v535 = vrot.slane %v122, 2
    %v536 = vsel %vm401, %v533, %v535
    %v537 = vrot.slane %v123, 2
    %v538 = vrot.slane %v124, 2
    %v539 = vsel %vm401, %v537, %v538
    %v540 = vrot.slane %v125, 2
    %v541 = vsel %vm401, %v538, %v540
    %v542 = vrot.slane %v126, 2
    %v543 = vrot.slane %v127, 2
    %v544 = vsel %vm401, %v542, %v543
    %v545 = vrot.slane %v128, 2
    %v546 = vsel %vm401, %v543, %v545
    %v547 = vrot.slane %v129, 2
    %v548 = vrot.slane %v130, 2
    %v549 = vsel %vm401, %v547, %v548
    %v550 = vrot.slane %v131, 2
    %v551 = vsel %vm401, %v548, %v550
    %v552 = vrot.slane %v132, 2
    %v553 = vrot.slane %v133, 2
    %v554 = vsel %vm401, %v552, %v553
    %v555 = vrot.slane %v134, 2
    %v556 = vsel %vm401, %v553, %v555
    %v557 = vrot.slane %v135, 2
    %v558 = vrot.slane %v136, 2
    %v559 = vsel %vm401, %v557, %v558
    %v560 = vrot.slane %v137, 2
    %v561 = vsel %vm401, %v558, %v560
    %v568 = vrot.slane %v84, 1
    %v569 = vrot.slane %v85, 1
    %v570 = vsel %vm240, %v568, %v569
    %v571 = vrot.slane %v86, 1
    %v572 = vsel %vm240, %v569, %v571
    %v573 = vrot.slane %v138, 1
    %v574 = vrot.slane %v139, 1
    %v575 = vsel %vm240, %v573, %v574
    %v576 = vrot.slane %v140, 1
    %v577 = vsel %vm240, %v574, %v576
    %v578 = vrot.slane %v84, 2
    %v579 = vrot.slane %v85, 2
    %v580 = vsel %vm401, %v578, %v579
    %v581 = vrot.slane %v86, 2
    %v582 = vsel %vm401, %v579, %v581
    %v583 = vrot.slane %v138, 2
    %v584 = vrot.slane %v139, 2
    %v585 = vsel %vm401, %v583, %v584
    %v586 = vrot.slane %v140, 2
    %v587 = vsel %vm401, %v584, %v586
    %v594 = vrot.slane %v87, 1
    %v595 = vrot.slane %v88, 1
    %v596 = vsel %vm240, %v594, %v595
    %v597 = vrot.slane %v89, 1
    %v598 = vsel %vm240, %v595, %v597
    %v599 = vrot.slane %v141, 1
    %v600 = vrot.slane %v142, 1
    %v601 = vsel %vm240, %v599, %v600
    %v602 = vrot.slane %v143, 1
    %v603 = vsel %vm240, %v600, %v602
    %v604 = vrot.slane %v87, 2
    %v605 = vrot.slane %v88, 2
    %v606 = vsel %vm401, %v604, %v605
    %v607 = vrot.slane %v89, 2
    %v608 = vsel %vm401, %v605, %v607
    %v609 = vrot.slane %v141, 2
    %v610 = vrot.slane %v142, 2
    %v611 = vsel %vm401, %v609, %v610
    %v612 = vrot.slane %v143, 2
    %v613 = vsel %vm401, %v610, %v612
    %614 = vrot.lane.b32.xlu0 %v243, 4
    %v615 = vpop.permute.xlu0 %614
    %616 = vrot.lane.b32.xlu0 %v245, 4
    %v617 = vpop.permute.xlu0 %616
    %618 = vrot.lane.b32.xlu0 %v248, 4
    %v619 = vpop.permute.xlu0 %618
    %620 = vrot.lane.b32.xlu0 %v250, 4
    %v621 = vpop.permute.xlu0 %620
    %622 = vrot.lane.b32.xlu0 %v253, 4
    %v623 = vpop.permute.xlu0 %622
    %624 = vrot.lane.b32.xlu0 %v255, 4
    %v625 = vpop.permute.xlu0 %624
    %626 = vrot.lane.b32.xlu0 %v258, 4
    %v627 = vpop.permute.xlu0 %626
    %628 = vrot.lane.b32.xlu0 %v260, 4
    %v629 = vpop.permute.xlu0 %628
    %630 = vrot.lane.b32.xlu0 %v263, 4
    %v631 = vpop.permute.xlu0 %630
    %632 = vrot.lane.b32.xlu0 %v265, 4
    %v633 = vpop.permute.xlu0 %632
    %634 = vrot.lane.b32.xlu0 %v268, 4
    %v635 = vpop.permute.xlu0 %634
    %636 = vrot.lane.b32.xlu0 %v270, 4
    %v637 = vpop.permute.xlu0 %636
    %638 = vrot.lane.b32.xlu0 %v273, 4
    %v639 = vpop.permute.xlu0 %638
    %640 = vrot.lane.b32.xlu0 %v275, 4
    %v641 = vpop.permute.xlu0 %640
    %642 = vrot.lane.b32.xlu0 %v278, 4
    %v643 = vpop.permute.xlu0 %642
    %644 = vrot.lane.b32.xlu0 %v280, 4
    %v645 = vpop.permute.xlu0 %644
    %646 = vrot.lane.b32.xlu0 %v283, 4
    %v647 = vpop.permute.xlu0 %646
    %648 = vrot.lane.b32.xlu0 %v285, 4
    %v649 = vpop.permute.xlu0 %648
    %650 = vrot.lane.b32.xlu0 %v288, 4
    %v651 = vpop.permute.xlu0 %650
    %652 = vrot.lane.b32.xlu0 %v290, 4
    %v653 = vpop.permute.xlu0 %652
    %654 = vrot.lane.b32.xlu0 %v293, 4
    %v655 = vpop.permute.xlu0 %654
    %656 = vrot.lane.b32.xlu0 %v295, 4
    %v657 = vpop.permute.xlu0 %656
    %658 = vrot.lane.b32.xlu0 %v298, 4
    %v659 = vpop.permute.xlu0 %658
    %660 = vrot.lane.b32.xlu0 %v300, 4
    %v661 = vpop.permute.xlu0 %660
    %662 = vrot.lane.b32.xlu0 %v303, 4
    %v663 = vpop.permute.xlu0 %662
    %664 = vrot.lane.b32.xlu0 %v305, 4
    %v665 = vpop.permute.xlu0 %664
    %666 = vrot.lane.b32.xlu0 %v308, 4
    %v667 = vpop.permute.xlu0 %666
    %668 = vrot.lane.b32.xlu0 %v310, 4
    %v669 = vpop.permute.xlu0 %668
    %670 = vrot.lane.b32.xlu0 %v313, 4
    %v671 = vpop.permute.xlu0 %670
    %672 = vrot.lane.b32.xlu0 %v315, 4
    %v673 = vpop.permute.xlu0 %672
    %674 = vrot.lane.b32.xlu0 %v318, 4
    %v675 = vpop.permute.xlu0 %674
    %676 = vrot.lane.b32.xlu0 %v320, 4
    %v677 = vpop.permute.xlu0 %676
    %678 = vrot.lane.b32.xlu0 %v323, 4
    %v679 = vpop.permute.xlu0 %678
    %680 = vrot.lane.b32.xlu0 %v325, 4
    %v681 = vpop.permute.xlu0 %680
    %682 = vrot.lane.b32.xlu0 %v328, 4
    %v683 = vpop.permute.xlu0 %682
    %684 = vrot.lane.b32.xlu0 %v330, 4
    %v685 = vpop.permute.xlu0 %684
    %686 = vrot.lane.b32.xlu0 %v333, 4
    %v687 = vpop.permute.xlu0 %686
    %688 = vrot.lane.b32.xlu0 %v335, 4
    %v689 = vpop.permute.xlu0 %688
    %690 = vrot.lane.b32.xlu0 %v338, 4
    %v691 = vpop.permute.xlu0 %690
    %692 = vrot.lane.b32.xlu0 %v340, 4
    %v693 = vpop.permute.xlu0 %692
    %694 = vrot.lane.b32.xlu0 %v343, 4
    %v695 = vpop.permute.xlu0 %694
    %696 = vrot.lane.b32.xlu0 %v345, 4
    %v697 = vpop.permute.xlu0 %696
    %698 = vrot.lane.b32.xlu0 %v348, 4
    %v699 = vpop.permute.xlu0 %698
    %700 = vrot.lane.b32.xlu0 %v350, 4
    %v701 = vpop.permute.xlu0 %700
    %702 = vrot.lane.b32.xlu0 %v353, 4
    %v703 = vpop.permute.xlu0 %702
    %704 = vrot.lane.b32.xlu0 %v355, 4
    %v705 = vpop.permute.xlu0 %704
    %706 = vrot.lane.b32.xlu0 %v358, 4
    %v707 = vpop.permute.xlu0 %706
    %708 = vrot.lane.b32.xlu0 %v360, 4
    %v709 = vpop.permute.xlu0 %708
    %710 = vrot.lane.b32.xlu0 %v363, 4
    %v711 = vpop.permute.xlu0 %710
    %712 = vrot.lane.b32.xlu0 %v365, 4
    %v713 = vpop.permute.xlu0 %712
    %714 = vrot.lane.b32.xlu0 %v368, 4
    %v715 = vpop.permute.xlu0 %714
    %716 = vrot.lane.b32.xlu0 %v370, 4
    %v717 = vpop.permute.xlu0 %716
    %718 = vrot.lane.b32.xlu0 %v373, 4
    %v719 = vpop.permute.xlu0 %718
    %720 = vrot.lane.b32.xlu0 %v375, 4
    %v721 = vpop.permute.xlu0 %720
    %722 = vrot.lane.b32.xlu0 %v378, 4
    %v723 = vpop.permute.xlu0 %722
    %724 = vrot.lane.b32.xlu0 %v380, 4
    %v725 = vpop.permute.xlu0 %724
    %726 = vrot.lane.b32.xlu0 %v383, 4
    %v727 = vpop.permute.xlu0 %726
    %728 = vrot.lane.b32.xlu0 %v385, 4
    %v729 = vpop.permute.xlu0 %728
    %730 = vrot.lane.b32.xlu0 %v388, 4
    %v731 = vpop.permute.xlu0 %730
    %732 = vrot.lane.b32.xlu0 %v390, 4
    %v733 = vpop.permute.xlu0 %732
    %734 = vrot.lane.b32.xlu0 %v393, 4
    %v735 = vpop.permute.xlu0 %734
    %736 = vrot.lane.b32.xlu0 %v395, 4
    %v737 = vpop.permute.xlu0 %736
    %738 = vrot.lane.b32.xlu0 %v398, 4
    %v739 = vpop.permute.xlu0 %738
    %740 = vrot.lane.b32.xlu0 %v400, 4
    %v741 = vpop.permute.xlu0 %740
    %806 = vrot.lane.b32.xlu0 %v404, 8
    %v807 = vpop.permute.xlu0 %806
    %808 = vrot.lane.b32.xlu0 %v406, 8
    %v809 = vpop.permute.xlu0 %808
    %810 = vrot.lane.b32.xlu0 %v409, 8
    %v811 = vpop.permute.xlu0 %810
    %812 = vrot.lane.b32.xlu0 %v411, 8
    %v813 = vpop.permute.xlu0 %812
    %814 = vrot.lane.b32.xlu0 %v414, 8
    %v815 = vpop.permute.xlu0 %814
    %816 = vrot.lane.b32.xlu0 %v416, 8
    %v817 = vpop.permute.xlu0 %816
    %818 = vrot.lane.b32.xlu0 %v419, 8
    %v819 = vpop.permute.xlu0 %818
    %820 = vrot.lane.b32.xlu0 %v421, 8
    %v821 = vpop.permute.xlu0 %820
    %822 = vrot.lane.b32.xlu0 %v424, 8
    %v823 = vpop.permute.xlu0 %822
    %824 = vrot.lane.b32.xlu0 %v426, 8
    %v825 = vpop.permute.xlu0 %824
    %826 = vrot.lane.b32.xlu0 %v429, 8
    %v827 = vpop.permute.xlu0 %826
    %828 = vrot.lane.b32.xlu0 %v431, 8
    %v829 = vpop.permute.xlu0 %828
    %830 = vrot.lane.b32.xlu0 %v434, 8
    %v831 = vpop.permute.xlu0 %830
    %832 = vrot.lane.b32.xlu0 %v436, 8
    %v833 = vpop.permute.xlu0 %832
    %834 = vrot.lane.b32.xlu0 %v439, 8
    %v835 = vpop.permute.xlu0 %834
    %836 = vrot.lane.b32.xlu0 %v441, 8
    %v837 = vpop.permute.xlu0 %836
    %838 = vrot.lane.b32.xlu0 %v444, 8
    %v839 = vpop.permute.xlu0 %838
    %840 = vrot.lane.b32.xlu0 %v446, 8
    %v841 = vpop.permute.xlu0 %840
    %842 = vrot.lane.b32.xlu0 %v449, 8
    %v843 = vpop.permute.xlu0 %842
    %844 = vrot.lane.b32.xlu0 %v451, 8
    %v845 = vpop.permute.xlu0 %844
    %846 = vrot.lane.b32.xlu0 %v454, 8
    %v847 = vpop.permute.xlu0 %846
    %848 = vrot.lane.b32.xlu0 %v456, 8
    %v849 = vpop.permute.xlu0 %848
    %850 = vrot.lane.b32.xlu0 %v459, 8
    %v851 = vpop.permute.xlu0 %850
    %852 = vrot.lane.b32.xlu0 %v461, 8
    %v853 = vpop.permute.xlu0 %852
    %854 = vrot.lane.b32.xlu0 %v464, 8
    %v855 = vpop.permute.xlu0 %854
    %856 = vrot.lane.b32.xlu0 %v466, 8
    %v857 = vpop.permute.xlu0 %856
    %858 = vrot.lane.b32.xlu0 %v469, 8
    %v859 = vpop.permute.xlu0 %858
    %860 = vrot.lane.b32.xlu0 %v471, 8
    %v861 = vpop.permute.xlu0 %860
    %862 = vrot.lane.b32.xlu0 %v474, 8
    %v863 = vpop.permute.xlu0 %862
    %864 = vrot.lane.b32.xlu0 %v476, 8
    %v865 = vpop.permute.xlu0 %864
    %866 = vrot.lane.b32.xlu0 %v479, 8
    %v867 = vpop.permute.xlu0 %866
    %868 = vrot.lane.b32.xlu0 %v481, 8
    %v869 = vpop.permute.xlu0 %868
    %870 = vrot.lane.b32.xlu0 %v484, 8
    %v871 = vpop.permute.xlu0 %870
    %872 = vrot.lane.b32.xlu0 %v486, 8
    %v873 = vpop.permute.xlu0 %872
    %874 = vrot.lane.b32.xlu0 %v489, 8
    %v875 = vpop.permute.xlu0 %874
    %876 = vrot.lane.b32.xlu0 %v491, 8
    %v877 = vpop.permute.xlu0 %876
    %878 = vrot.lane.b32.xlu0 %v494, 8
    %v879 = vpop.permute.xlu0 %878
    %880 = vrot.lane.b32.xlu0 %v496, 8
    %v881 = vpop.permute.xlu0 %880
    %882 = vrot.lane.b32.xlu0 %v499, 8
    %v883 = vpop.permute.xlu0 %882
    %884 = vrot.lane.b32.xlu0 %v501, 8
    %v885 = vpop.permute.xlu0 %884
    %886 = vrot.lane.b32.xlu0 %v504, 8
    %v887 = vpop.permute.xlu0 %886
    %888 = vrot.lane.b32.xlu0 %v506, 8
    %v889 = vpop.permute.xlu0 %888
    %890 = vrot.lane.b32.xlu0 %v509, 8
    %v891 = vpop.permute.xlu0 %890
    %892 = vrot.lane.b32.xlu0 %v511, 8
    %v893 = vpop.permute.xlu0 %892
    %894 = vrot.lane.b32.xlu0 %v514, 8
    %v895 = vpop.permute.xlu0 %894
    %896 = vrot.lane.b32.xlu0 %v516, 8
    %v897 = vpop.permute.xlu0 %896
    %898 = vrot.lane.b32.xlu0 %v519, 8
    %v899 = vpop.permute.xlu0 %898
    %900 = vrot.lane.b32.xlu0 %v521, 8
    %v901 = vpop.permute.xlu0 %900
    %902 = vrot.lane.b32.xlu0 %v524, 8
    %v903 = vpop.permute.xlu0 %902
    %904 = vrot.lane.b32.xlu0 %v526, 8
    %v905 = vpop.permute.xlu0 %904
    %906 = vrot.lane.b32.xlu0 %v529, 8
    %v907 = vpop.permute.xlu0 %906
    %908 = vrot.lane.b32.xlu0 %v531, 8
    %v909 = vpop.permute.xlu0 %908
    %910 = vrot.lane.b32.xlu0 %v534, 8
    %v911 = vpop.permute.xlu0 %910
    %912 = vrot.lane.b32.xlu0 %v536, 8
    %v913 = vpop.permute.xlu0 %912
    %914 = vrot.lane.b32.xlu0 %v539, 8
    %v915 = vpop.permute.xlu0 %914
    %916 = vrot.lane.b32.xlu0 %v541, 8
    %v917 = vpop.permute.xlu0 %916
    %918 = vrot.lane.b32.xlu0 %v544, 8
    %v919 = vpop.permute.xlu0 %918
    %920 = vrot.lane.b32.xlu0 %v546, 8
    %v921 = vpop.permute.xlu0 %920
    %922 = vrot.lane.b32.xlu0 %v549, 8
    %v923 = vpop.permute.xlu0 %922
    %924 = vrot.lane.b32.xlu0 %v551, 8
    %v925 = vpop.permute.xlu0 %924
    %926 = vrot.lane.b32.xlu0 %v554, 8
    %v927 = vpop.permute.xlu0 %926
    %928 = vrot.lane.b32.xlu0 %v556, 8
    %v929 = vpop.permute.xlu0 %928
    %930 = vrot.lane.b32.xlu0 %v559, 8
    %v931 = vpop.permute.xlu0 %930
    %932 = vrot.lane.b32.xlu0 %v561, 8
    %v933 = vpop.permute.xlu0 %932
    %998 = vrot.lane.b32.xlu0 %v39, 12
    %v999 = vpop.permute.xlu0 %998
    %1000 = vrot.lane.b32.xlu0 %v40, 12
    %v1001 = vpop.permute.xlu0 %1000
    %1002 = vrot.lane.b32.xlu0 %v42, 12
    %v1003 = vpop.permute.xlu0 %1002
    %1004 = vrot.lane.b32.xlu0 %v43, 12
    %v1005 = vpop.permute.xlu0 %1004
    %1006 = vrot.lane.b32.xlu0 %v45, 12
    %v1007 = vpop.permute.xlu0 %1006
    %1008 = vrot.lane.b32.xlu0 %v46, 12
    %v1009 = vpop.permute.xlu0 %1008
    %1010 = vrot.lane.b32.xlu0 %v48, 12
    %v1011 = vpop.permute.xlu0 %1010
    %1012 = vrot.lane.b32.xlu0 %v49, 12
    %v1013 = vpop.permute.xlu0 %1012
    %1014 = vrot.lane.b32.xlu0 %v51, 12
    %v1015 = vpop.permute.xlu0 %1014
    %1016 = vrot.lane.b32.xlu0 %v52, 12
    %v1017 = vpop.permute.xlu0 %1016
    %1018 = vrot.lane.b32.xlu0 %v54, 12
    %v1019 = vpop.permute.xlu0 %1018
    %1020 = vrot.lane.b32.xlu0 %v55, 12
    %v1021 = vpop.permute.xlu0 %1020
    %1022 = vrot.lane.b32.xlu0 %v57, 12
    %v1023 = vpop.permute.xlu0 %1022
    %1024 = vrot.lane.b32.xlu0 %v58, 12
    %v1025 = vpop.permute.xlu0 %1024
    %1026 = vrot.lane.b32.xlu0 %v60, 12
    %v1027 = vpop.permute.xlu0 %1026
    %1028 = vrot.lane.b32.xlu0 %v61, 12
    %v1029 = vpop.permute.xlu0 %1028
    %1030 = vrot.lane.b32.xlu0 %v63, 12
    %v1031 = vpop.permute.xlu0 %1030
    %1032 = vrot.lane.b32.xlu0 %v64, 12
    %v1033 = vpop.permute.xlu0 %1032
    %1034 = vrot.lane.b32.xlu0 %v66, 12
    %v1035 = vpop.permute.xlu0 %1034
    %1036 = vrot.lane.b32.xlu0 %v67, 12
    %v1037 = vpop.permute.xlu0 %1036
    %1038 = vrot.lane.b32.xlu0 %v69, 12
    %v1039 = vpop.permute.xlu0 %1038
    %1040 = vrot.lane.b32.xlu0 %v70, 12
    %v1041 = vpop.permute.xlu0 %1040
    %1042 = vrot.lane.b32.xlu0 %v72, 12
    %v1043 = vpop.permute.xlu0 %1042
    %1044 = vrot.lane.b32.xlu0 %v73, 12
    %v1045 = vpop.permute.xlu0 %1044
    %1046 = vrot.lane.b32.xlu0 %v75, 12
    %v1047 = vpop.permute.xlu0 %1046
    %1048 = vrot.lane.b32.xlu0 %v76, 12
    %v1049 = vpop.permute.xlu0 %1048
    %1050 = vrot.lane.b32.xlu0 %v78, 12
    %v1051 = vpop.permute.xlu0 %1050
    %1052 = vrot.lane.b32.xlu0 %v79, 12
    %v1053 = vpop.permute.xlu0 %1052
    %1054 = vrot.lane.b32.xlu0 %v81, 12
    %v1055 = vpop.permute.xlu0 %1054
    %1056 = vrot.lane.b32.xlu0 %v82, 12
    %v1057 = vpop.permute.xlu0 %1056
    %1058 = vrot.lane.b32.xlu0 %v84, 12
    %v1059 = vpop.permute.xlu0 %1058
    %1060 = vrot.lane.b32.xlu0 %v85, 12
    %v1061 = vpop.permute.xlu0 %1060
    %1062 = vrot.lane.b32.xlu0 %v93, 12
    %v1063 = vpop.permute.xlu0 %1062
    %1064 = vrot.lane.b32.xlu0 %v94, 12
    %v1065 = vpop.permute.xlu0 %1064
    %1066 = vrot.lane.b32.xlu0 %v96, 12
    %v1067 = vpop.permute.xlu0 %1066
    %1068 = vrot.lane.b32.xlu0 %v97, 12
    %v1069 = vpop.permute.xlu0 %1068
    %1070 = vrot.lane.b32.xlu0 %v99, 12
    %v1071 = vpop.permute.xlu0 %1070
    %1072 = vrot.lane.b32.xlu0 %v100, 12
    %v1073 = vpop.permute.xlu0 %1072
    %1074 = vrot.lane.b32.xlu0 %v102, 12
    %v1075 = vpop.permute.xlu0 %1074
    %1076 = vrot.lane.b32.xlu0 %v103, 12
    %v1077 = vpop.permute.xlu0 %1076
    %1078 = vrot.lane.b32.xlu0 %v105, 12
    %v1079 = vpop.permute.xlu0 %1078
    %1080 = vrot.lane.b32.xlu0 %v106, 12
    %v1081 = vpop.permute.xlu0 %1080
    %1082 = vrot.lane.b32.xlu0 %v108, 12
    %v1083 = vpop.permute.xlu0 %1082
    %1084 = vrot.lane.b32.xlu0 %v109, 12
    %v1085 = vpop.permute.xlu0 %1084
    %1086 = vrot.lane.b32.xlu0 %v111, 12
    %v1087 = vpop.permute.xlu0 %1086
    %1088 = vrot.lane.b32.xlu0 %v112, 12
    %v1089 = vpop.permute.xlu0 %1088
    %1090 = vrot.lane.b32.xlu0 %v114, 12
    %v1091 = vpop.permute.xlu0 %1090
    %1092 = vrot.lane.b32.xlu0 %v115, 12
    %v1093 = vpop.permute.xlu0 %1092
    %1094 = vrot.lane.b32.xlu0 %v117, 12
    %v1095 = vpop.permute.xlu0 %1094
    %1096 = vrot.lane.b32.xlu0 %v118, 12
    %v1097 = vpop.permute.xlu0 %1096
    %1098 = vrot.lane.b32.xlu0 %v120, 12
    %v1099 = vpop.permute.xlu0 %1098
    %1100 = vrot.lane.b32.xlu0 %v121, 12
    %v1101 = vpop.permute.xlu0 %1100
    %1102 = vrot.lane.b32.xlu0 %v123, 12
    %v1103 = vpop.permute.xlu0 %1102
    %1104 = vrot.lane.b32.xlu0 %v124, 12
    %v1105 = vpop.permute.xlu0 %1104
    %1106 = vrot.lane.b32.xlu0 %v126, 12
    %v1107 = vpop.permute.xlu0 %1106
    %1108 = vrot.lane.b32.xlu0 %v127, 12
    %v1109 = vpop.permute.xlu0 %1108
    %1110 = vrot.lane.b32.xlu0 %v129, 12
    %v1111 = vpop.permute.xlu0 %1110
    %1112 = vrot.lane.b32.xlu0 %v130, 12
    %v1113 = vpop.permute.xlu0 %1112
    %1114 = vrot.lane.b32.xlu0 %v132, 12
    %v1115 = vpop.permute.xlu0 %1114
    %1116 = vrot.lane.b32.xlu0 %v133, 12
    %v1117 = vpop.permute.xlu0 %1116
    %1118 = vrot.lane.b32.xlu0 %v135, 12
    %v1119 = vpop.permute.xlu0 %1118
    %1120 = vrot.lane.b32.xlu0 %v136, 12
    %v1121 = vpop.permute.xlu0 %1120
    %1122 = vrot.lane.b32.xlu0 %v138, 12
    %v1123 = vpop.permute.xlu0 %1122
    %1124 = vrot.lane.b32.xlu0 %v139, 12
    %v1125 = vpop.permute.xlu0 %1124
    %1190 = vrot.lane.b32.xlu0 %v248, 16
    %v1191 = vpop.permute.xlu0 %1190
    %1192 = vrot.lane.b32.xlu0 %v250, 16
    %v1193 = vpop.permute.xlu0 %1192
    %1194 = vrot.lane.b32.xlu0 %v253, 16
    %v1195 = vpop.permute.xlu0 %1194
    %1196 = vrot.lane.b32.xlu0 %v255, 16
    %v1197 = vpop.permute.xlu0 %1196
    %1198 = vrot.lane.b32.xlu0 %v258, 16
    %v1199 = vpop.permute.xlu0 %1198
    %1200 = vrot.lane.b32.xlu0 %v260, 16
    %v1201 = vpop.permute.xlu0 %1200
    %1202 = vrot.lane.b32.xlu0 %v263, 16
    %v1203 = vpop.permute.xlu0 %1202
    %1204 = vrot.lane.b32.xlu0 %v265, 16
    %v1205 = vpop.permute.xlu0 %1204
    %1206 = vrot.lane.b32.xlu0 %v268, 16
    %v1207 = vpop.permute.xlu0 %1206
    %1208 = vrot.lane.b32.xlu0 %v270, 16
    %v1209 = vpop.permute.xlu0 %1208
    %1210 = vrot.lane.b32.xlu0 %v273, 16
    %v1211 = vpop.permute.xlu0 %1210
    %1212 = vrot.lane.b32.xlu0 %v275, 16
    %v1213 = vpop.permute.xlu0 %1212
    %1214 = vrot.lane.b32.xlu0 %v278, 16
    %v1215 = vpop.permute.xlu0 %1214
    %1216 = vrot.lane.b32.xlu0 %v280, 16
    %v1217 = vpop.permute.xlu0 %1216
    %1218 = vrot.lane.b32.xlu0 %v283, 16
    %v1219 = vpop.permute.xlu0 %1218
    %1220 = vrot.lane.b32.xlu0 %v285, 16
    %v1221 = vpop.permute.xlu0 %1220
    %1222 = vrot.lane.b32.xlu0 %v288, 16
    %v1223 = vpop.permute.xlu0 %1222
    %1224 = vrot.lane.b32.xlu0 %v290, 16
    %v1225 = vpop.permute.xlu0 %1224
    %1226 = vrot.lane.b32.xlu0 %v293, 16
    %v1227 = vpop.permute.xlu0 %1226
    %1228 = vrot.lane.b32.xlu0 %v295, 16
    %v1229 = vpop.permute.xlu0 %1228
    %1230 = vrot.lane.b32.xlu0 %v298, 16
    %v1231 = vpop.permute.xlu0 %1230
    %1232 = vrot.lane.b32.xlu0 %v300, 16
    %v1233 = vpop.permute.xlu0 %1232
    %1234 = vrot.lane.b32.xlu0 %v303, 16
    %v1235 = vpop.permute.xlu0 %1234
    %1236 = vrot.lane.b32.xlu0 %v305, 16
    %v1237 = vpop.permute.xlu0 %1236
    %1238 = vrot.lane.b32.xlu0 %v308, 16
    %v1239 = vpop.permute.xlu0 %1238
    %1240 = vrot.lane.b32.xlu0 %v310, 16
    %v1241 = vpop.permute.xlu0 %1240
    %1242 = vrot.lane.b32.xlu0 %v313, 16
    %v1243 = vpop.permute.xlu0 %1242
    %1244 = vrot.lane.b32.xlu0 %v315, 16
    %v1245 = vpop.permute.xlu0 %1244
    %1246 = vrot.lane.b32.xlu0 %v318, 16
    %v1247 = vpop.permute.xlu0 %1246
    %1248 = vrot.lane.b32.xlu0 %v320, 16
    %v1249 = vpop.permute.xlu0 %1248
    %1250 = vrot.lane.b32.xlu0 %v570, 16
    %v1251 = vpop.permute.xlu0 %1250
    %1252 = vrot.lane.b32.xlu0 %v572, 16
    %v1253 = vpop.permute.xlu0 %1252
    %1254 = vrot.lane.b32.xlu0 %v328, 16
    %v1255 = vpop.permute.xlu0 %1254
    %1256 = vrot.lane.b32.xlu0 %v330, 16
    %v1257 = vpop.permute.xlu0 %1256
    %1258 = vrot.lane.b32.xlu0 %v333, 16
    %v1259 = vpop.permute.xlu0 %1258
    %1260 = vrot.lane.b32.xlu0 %v335, 16
    %v1261 = vpop.permute.xlu0 %1260
    %1262 = vrot.lane.b32.xlu0 %v338, 16
    %v1263 = vpop.permute.xlu0 %1262
    %1264 = vrot.lane.b32.xlu0 %v340, 16
    %v1265 = vpop.permute.xlu0 %1264
    %1266 = vrot.lane.b32.xlu0 %v343, 16
    %v1267 = vpop.permute.xlu0 %1266
    %1268 = vrot.lane.b32.xlu0 %v345, 16
    %v1269 = vpop.permute.xlu0 %1268
    %1270 = vrot.lane.b32.xlu0 %v348, 16
    %v1271 = vpop.permute.xlu0 %1270
    %1272 = vrot.lane.b32.xlu0 %v350, 16
    %v1273 = vpop.permute.xlu0 %1272
    %1274 = vrot.lane.b32.xlu0 %v353, 16
    %v1275 = vpop.permute.xlu0 %1274
    %1276 = vrot.lane.b32.xlu0 %v355, 16
    %v1277 = vpop.permute.xlu0 %1276
    %1278 = vrot.lane.b32.xlu0 %v358, 16
    %v1279 = vpop.permute.xlu0 %1278
    %1280 = vrot.lane.b32.xlu0 %v360, 16
    %v1281 = vpop.permute.xlu0 %1280
    %1282 = vrot.lane.b32.xlu0 %v363, 16
    %v1283 = vpop.permute.xlu0 %1282
    %1284 = vrot.lane.b32.xlu0 %v365, 16
    %v1285 = vpop.permute.xlu0 %1284
    %1286 = vrot.lane.b32.xlu0 %v368, 16
    %v1287 = vpop.permute.xlu0 %1286
    %1288 = vrot.lane.b32.xlu0 %v370, 16
    %v1289 = vpop.permute.xlu0 %1288
    %1290 = vrot.lane.b32.xlu0 %v373, 16
    %v1291 = vpop.permute.xlu0 %1290
    %1292 = vrot.lane.b32.xlu0 %v375, 16
    %v1293 = vpop.permute.xlu0 %1292
    %1294 = vrot.lane.b32.xlu0 %v378, 16
    %v1295 = vpop.permute.xlu0 %1294
    %1296 = vrot.lane.b32.xlu0 %v380, 16
    %v1297 = vpop.permute.xlu0 %1296
    %1298 = vrot.lane.b32.xlu0 %v383, 16
    %v1299 = vpop.permute.xlu0 %1298
    %1300 = vrot.lane.b32.xlu0 %v385, 16
    %v1301 = vpop.permute.xlu0 %1300
    %1302 = vrot.lane.b32.xlu0 %v388, 16
    %v1303 = vpop.permute.xlu0 %1302
    %1304 = vrot.lane.b32.xlu0 %v390, 16
    %v1305 = vpop.permute.xlu0 %1304
    %1306 = vrot.lane.b32.xlu0 %v393, 16
    %v1307 = vpop.permute.xlu0 %1306
    %1308 = vrot.lane.b32.xlu0 %v395, 16
    %v1309 = vpop.permute.xlu0 %1308
    %1310 = vrot.lane.b32.xlu0 %v398, 16
    %v1311 = vpop.permute.xlu0 %1310
    %1312 = vrot.lane.b32.xlu0 %v400, 16
    %v1313 = vpop.permute.xlu0 %1312
    %1314 = vrot.lane.b32.xlu0 %v575, 16
    %v1315 = vpop.permute.xlu0 %1314
    %1316 = vrot.lane.b32.xlu0 %v577, 16
    %v1317 = vpop.permute.xlu0 %1316
    %1382 = vrot.lane.b32.xlu0 %v409, 20
    %v1383 = vpop.permute.xlu0 %1382
    %1384 = vrot.lane.b32.xlu0 %v411, 20
    %v1385 = vpop.permute.xlu0 %1384
    %1386 = vrot.lane.b32.xlu0 %v414, 20
    %v1387 = vpop.permute.xlu0 %1386
    %1388 = vrot.lane.b32.xlu0 %v416, 20
    %v1389 = vpop.permute.xlu0 %1388
    %1390 = vrot.lane.b32.xlu0 %v419, 20
    %v1391 = vpop.permute.xlu0 %1390
    %1392 = vrot.lane.b32.xlu0 %v421, 20
    %v1393 = vpop.permute.xlu0 %1392
    %1394 = vrot.lane.b32.xlu0 %v424, 20
    %v1395 = vpop.permute.xlu0 %1394
    %1396 = vrot.lane.b32.xlu0 %v426, 20
    %v1397 = vpop.permute.xlu0 %1396
    %1398 = vrot.lane.b32.xlu0 %v429, 20
    %v1399 = vpop.permute.xlu0 %1398
    %1400 = vrot.lane.b32.xlu0 %v431, 20
    %v1401 = vpop.permute.xlu0 %1400
    %1402 = vrot.lane.b32.xlu0 %v434, 20
    %v1403 = vpop.permute.xlu0 %1402
    %1404 = vrot.lane.b32.xlu0 %v436, 20
    %v1405 = vpop.permute.xlu0 %1404
    %1406 = vrot.lane.b32.xlu0 %v439, 20
    %v1407 = vpop.permute.xlu0 %1406
    %1408 = vrot.lane.b32.xlu0 %v441, 20
    %v1409 = vpop.permute.xlu0 %1408
    %1410 = vrot.lane.b32.xlu0 %v444, 20
    %v1411 = vpop.permute.xlu0 %1410
    %1412 = vrot.lane.b32.xlu0 %v446, 20
    %v1413 = vpop.permute.xlu0 %1412
    %1414 = vrot.lane.b32.xlu0 %v449, 20
    %v1415 = vpop.permute.xlu0 %1414
    %1416 = vrot.lane.b32.xlu0 %v451, 20
    %v1417 = vpop.permute.xlu0 %1416
    %1418 = vrot.lane.b32.xlu0 %v454, 20
    %v1419 = vpop.permute.xlu0 %1418
    %1420 = vrot.lane.b32.xlu0 %v456, 20
    %v1421 = vpop.permute.xlu0 %1420
    %1422 = vrot.lane.b32.xlu0 %v459, 20
    %v1423 = vpop.permute.xlu0 %1422
    %1424 = vrot.lane.b32.xlu0 %v461, 20
    %v1425 = vpop.permute.xlu0 %1424
    %1426 = vrot.lane.b32.xlu0 %v464, 20
    %v1427 = vpop.permute.xlu0 %1426
    %1428 = vrot.lane.b32.xlu0 %v466, 20
    %v1429 = vpop.permute.xlu0 %1428
    %1430 = vrot.lane.b32.xlu0 %v469, 20
    %v1431 = vpop.permute.xlu0 %1430
    %1432 = vrot.lane.b32.xlu0 %v471, 20
    %v1433 = vpop.permute.xlu0 %1432
    %1434 = vrot.lane.b32.xlu0 %v474, 20
    %v1435 = vpop.permute.xlu0 %1434
    %1436 = vrot.lane.b32.xlu0 %v476, 20
    %v1437 = vpop.permute.xlu0 %1436
    %1438 = vrot.lane.b32.xlu0 %v479, 20
    %v1439 = vpop.permute.xlu0 %1438
    %1440 = vrot.lane.b32.xlu0 %v481, 20
    %v1441 = vpop.permute.xlu0 %1440
    %1442 = vrot.lane.b32.xlu0 %v580, 20
    %v1443 = vpop.permute.xlu0 %1442
    %1444 = vrot.lane.b32.xlu0 %v582, 20
    %v1445 = vpop.permute.xlu0 %1444
    %1446 = vrot.lane.b32.xlu0 %v489, 20
    %v1447 = vpop.permute.xlu0 %1446
    %1448 = vrot.lane.b32.xlu0 %v491, 20
    %v1449 = vpop.permute.xlu0 %1448
    %1450 = vrot.lane.b32.xlu0 %v494, 20
    %v1451 = vpop.permute.xlu0 %1450
    %1452 = vrot.lane.b32.xlu0 %v496, 20
    %v1453 = vpop.permute.xlu0 %1452
    %1454 = vrot.lane.b32.xlu0 %v499, 20
    %v1455 = vpop.permute.xlu0 %1454
    %1456 = vrot.lane.b32.xlu0 %v501, 20
    %v1457 = vpop.permute.xlu0 %1456
    %1458 = vrot.lane.b32.xlu0 %v504, 20
    %v1459 = vpop.permute.xlu0 %1458
    %1460 = vrot.lane.b32.xlu0 %v506, 20
    %v1461 = vpop.permute.xlu0 %1460
    %1462 = vrot.lane.b32.xlu0 %v509, 20
    %v1463 = vpop.permute.xlu0 %1462
    %1464 = vrot.lane.b32.xlu0 %v511, 20
    %v1465 = vpop.permute.xlu0 %1464
    %1466 = vrot.lane.b32.xlu0 %v514, 20
    %v1467 = vpop.permute.xlu0 %1466
    %1468 = vrot.lane.b32.xlu0 %v516, 20
    %v1469 = vpop.permute.xlu0 %1468
    %1470 = vrot.lane.b32.xlu0 %v519, 20
    %v1471 = vpop.permute.xlu0 %1470
    %1472 = vrot.lane.b32.xlu0 %v521, 20
    %v1473 = vpop.permute.xlu0 %1472
    %1474 = vrot.lane.b32.xlu0 %v524, 20
    %v1475 = vpop.permute.xlu0 %1474
    %1476 = vrot.lane.b32.xlu0 %v526, 20
    %v1477 = vpop.permute.xlu0 %1476
    %1478 = vrot.lane.b32.xlu0 %v529, 20
    %v1479 = vpop.permute.xlu0 %1478
    %1480 = vrot.lane.b32.xlu0 %v531, 20
    %v1481 = vpop.permute.xlu0 %1480
    %1482 = vrot.lane.b32.xlu0 %v534, 20
    %v1483 = vpop.permute.xlu0 %1482
    %1484 = vrot.lane.b32.xlu0 %v536, 20
    %v1485 = vpop.permute.xlu0 %1484
    %1486 = vrot.lane.b32.xlu0 %v539, 20
    %v1487 = vpop.permute.xlu0 %1486
    %1488 = vrot.lane.b32.xlu0 %v541, 20
    %v1489 = vpop.permute.xlu0 %1488
    %1490 = vrot.lane.b32.xlu0 %v544, 20
    %v1491 = vpop.permute.xlu0 %1490
    %1492 = vrot.lane.b32.xlu0 %v546, 20
    %v1493 = vpop.permute.xlu0 %1492
    %1494 = vrot.lane.b32.xlu0 %v549, 20
    %v1495 = vpop.permute.xlu0 %1494
    %1496 = vrot.lane.b32.xlu0 %v551, 20
    %v1497 = vpop.permute.xlu0 %1496
    %1498 = vrot.lane.b32.xlu0 %v554, 20
    %v1499 = vpop.permute.xlu0 %1498
    %1500 = vrot.lane.b32.xlu0 %v556, 20
    %v1501 = vpop.permute.xlu0 %1500
    %1502 = vrot.lane.b32.xlu0 %v559, 20
    %v1503 = vpop.permute.xlu0 %1502
    %1504 = vrot.lane.b32.xlu0 %v561, 20
    %v1505 = vpop.permute.xlu0 %1504
    %1506 = vrot.lane.b32.xlu0 %v585, 20
    %v1507 = vpop.permute.xlu0 %1506
    %1508 = vrot.lane.b32.xlu0 %v587, 20
    %v1509 = vpop.permute.xlu0 %1508
    %1574 = vrot.lane.b32.xlu0 %v42, 24
    %v1575 = vpop.permute.xlu0 %1574
    %1576 = vrot.lane.b32.xlu0 %v43, 24
    %v1577 = vpop.permute.xlu0 %1576
    %1578 = vrot.lane.b32.xlu0 %v45, 24
    %v1579 = vpop.permute.xlu0 %1578
    %1580 = vrot.lane.b32.xlu0 %v46, 24
    %v1581 = vpop.permute.xlu0 %1580
    %1582 = vrot.lane.b32.xlu0 %v48, 24
    %v1583 = vpop.permute.xlu0 %1582
    %1584 = vrot.lane.b32.xlu0 %v49, 24
    %v1585 = vpop.permute.xlu0 %1584
    %1586 = vrot.lane.b32.xlu0 %v51, 24
    %v1587 = vpop.permute.xlu0 %1586
    %1588 = vrot.lane.b32.xlu0 %v52, 24
    %v1589 = vpop.permute.xlu0 %1588
    %1590 = vrot.lane.b32.xlu0 %v54, 24
    %v1591 = vpop.permute.xlu0 %1590
    %1592 = vrot.lane.b32.xlu0 %v55, 24
    %v1593 = vpop.permute.xlu0 %1592
    %1594 = vrot.lane.b32.xlu0 %v57, 24
    %v1595 = vpop.permute.xlu0 %1594
    %1596 = vrot.lane.b32.xlu0 %v58, 24
    %v1597 = vpop.permute.xlu0 %1596
    %1598 = vrot.lane.b32.xlu0 %v60, 24
    %v1599 = vpop.permute.xlu0 %1598
    %1600 = vrot.lane.b32.xlu0 %v61, 24
    %v1601 = vpop.permute.xlu0 %1600
    %1602 = vrot.lane.b32.xlu0 %v63, 24
    %v1603 = vpop.permute.xlu0 %1602
    %1604 = vrot.lane.b32.xlu0 %v64, 24
    %v1605 = vpop.permute.xlu0 %1604
    %1606 = vrot.lane.b32.xlu0 %v66, 24
    %v1607 = vpop.permute.xlu0 %1606
    %1608 = vrot.lane.b32.xlu0 %v67, 24
    %v1609 = vpop.permute.xlu0 %1608
    %1610 = vrot.lane.b32.xlu0 %v69, 24
    %v1611 = vpop.permute.xlu0 %1610
    %1612 = vrot.lane.b32.xlu0 %v70, 24
    %v1613 = vpop.permute.xlu0 %1612
    %1614 = vrot.lane.b32.xlu0 %v72, 24
    %v1615 = vpop.permute.xlu0 %1614
    %1616 = vrot.lane.b32.xlu0 %v73, 24
    %v1617 = vpop.permute.xlu0 %1616
    %1618 = vrot.lane.b32.xlu0 %v75, 24
    %v1619 = vpop.permute.xlu0 %1618
    %1620 = vrot.lane.b32.xlu0 %v76, 24
    %v1621 = vpop.permute.xlu0 %1620
    %1622 = vrot.lane.b32.xlu0 %v78, 24
    %v1623 = vpop.permute.xlu0 %1622
    %1624 = vrot.lane.b32.xlu0 %v79, 24
    %v1625 = vpop.permute.xlu0 %1624
    %1626 = vrot.lane.b32.xlu0 %v81, 24
    %v1627 = vpop.permute.xlu0 %1626
    %1628 = vrot.lane.b32.xlu0 %v82, 24
    %v1629 = vpop.permute.xlu0 %1628
    %1630 = vrot.lane.b32.xlu0 %v84, 24
    %v1631 = vpop.permute.xlu0 %1630
    %1632 = vrot.lane.b32.xlu0 %v85, 24
    %v1633 = vpop.permute.xlu0 %1632
    %1634 = vrot.lane.b32.xlu0 %v87, 24
    %v1635 = vpop.permute.xlu0 %1634
    %1636 = vrot.lane.b32.xlu0 %v88, 24
    %v1637 = vpop.permute.xlu0 %1636
    %1638 = vrot.lane.b32.xlu0 %v96, 24
    %v1639 = vpop.permute.xlu0 %1638
    %1640 = vrot.lane.b32.xlu0 %v97, 24
    %v1641 = vpop.permute.xlu0 %1640
    %1642 = vrot.lane.b32.xlu0 %v99, 24
    %v1643 = vpop.permute.xlu0 %1642
    %1644 = vrot.lane.b32.xlu0 %v100, 24
    %v1645 = vpop.permute.xlu0 %1644
    %1646 = vrot.lane.b32.xlu0 %v102, 24
    %v1647 = vpop.permute.xlu0 %1646
    %1648 = vrot.lane.b32.xlu0 %v103, 24
    %v1649 = vpop.permute.xlu0 %1648
    %1650 = vrot.lane.b32.xlu0 %v105, 24
    %v1651 = vpop.permute.xlu0 %1650
    %1652 = vrot.lane.b32.xlu0 %v106, 24
    %v1653 = vpop.permute.xlu0 %1652
    %1654 = vrot.lane.b32.xlu0 %v108, 24
    %v1655 = vpop.permute.xlu0 %1654
    %1656 = vrot.lane.b32.xlu0 %v109, 24
    %v1657 = vpop.permute.xlu0 %1656
    %1658 = vrot.lane.b32.xlu0 %v111, 24
    %v1659 = vpop.permute.xlu0 %1658
    %1660 = vrot.lane.b32.xlu0 %v112, 24
    %v1661 = vpop.permute.xlu0 %1660
    %1662 = vrot.lane.b32.xlu0 %v114, 24
    %v1663 = vpop.permute.xlu0 %1662
    %1664 = vrot.lane.b32.xlu0 %v115, 24
    %v1665 = vpop.permute.xlu0 %1664
    %1666 = vrot.lane.b32.xlu0 %v117, 24
    %v1667 = vpop.permute.xlu0 %1666
    %1668 = vrot.lane.b32.xlu0 %v118, 24
    %v1669 = vpop.permute.xlu0 %1668
    %1670 = vrot.lane.b32.xlu0 %v120, 24
    %v1671 = vpop.permute.xlu0 %1670
    %1672 = vrot.lane.b32.xlu0 %v121, 24
    %v1673 = vpop.permute.xlu0 %1672
    %1674 = vrot.lane.b32.xlu0 %v123, 24
    %v1675 = vpop.permute.xlu0 %1674
    %1676 = vrot.lane.b32.xlu0 %v124, 24
    %v1677 = vpop.permute.xlu0 %1676
    %1678 = vrot.lane.b32.xlu0 %v126, 24
    %v1679 = vpop.permute.xlu0 %1678
    %1680 = vrot.lane.b32.xlu0 %v127, 24
    %v1681 = vpop.permute.xlu0 %1680
    %1682 = vrot.lane.b32.xlu0 %v129, 24
    %v1683 = vpop.permute.xlu0 %1682
    %1684 = vrot.lane.b32.xlu0 %v130, 24
    %v1685 = vpop.permute.xlu0 %1684
    %1686 = vrot.lane.b32.xlu0 %v132, 24
    %v1687 = vpop.permute.xlu0 %1686
    %1688 = vrot.lane.b32.xlu0 %v133, 24
    %v1689 = vpop.permute.xlu0 %1688
    %1690 = vrot.lane.b32.xlu0 %v135, 24
    %v1691 = vpop.permute.xlu0 %1690
    %1692 = vrot.lane.b32.xlu0 %v136, 24
    %v1693 = vpop.permute.xlu0 %1692
    %1694 = vrot.lane.b32.xlu0 %v138, 24
    %v1695 = vpop.permute.xlu0 %1694
    %1696 = vrot.lane.b32.xlu0 %v139, 24
    %v1697 = vpop.permute.xlu0 %1696
    %1698 = vrot.lane.b32.xlu0 %v141, 24
    %v1699 = vpop.permute.xlu0 %1698
    %1700 = vrot.lane.b32.xlu0 %v142, 24
    %v1701 = vpop.permute.xlu0 %1700
    %1766 = vrot.lane.b32.xlu0 %v253, 28
    %v1767 = vpop.permute.xlu0 %1766
    %1768 = vrot.lane.b32.xlu0 %v255, 28
    %v1769 = vpop.permute.xlu0 %1768
    %1770 = vrot.lane.b32.xlu0 %v258, 28
    %v1771 = vpop.permute.xlu0 %1770
    %1772 = vrot.lane.b32.xlu0 %v260, 28
    %v1773 = vpop.permute.xlu0 %1772
    %1774 = vrot.lane.b32.xlu0 %v263, 28
    %v1775 = vpop.permute.xlu0 %1774
    %1776 = vrot.lane.b32.xlu0 %v265, 28
    %v1777 = vpop.permute.xlu0 %1776
    %1778 = vrot.lane.b32.xlu0 %v268, 28
    %v1779 = vpop.permute.xlu0 %1778
    %1780 = vrot.lane.b32.xlu0 %v270, 28
    %v1781 = vpop.permute.xlu0 %1780
    %1782 = vrot.lane.b32.xlu0 %v273, 28
    %v1783 = vpop.permute.xlu0 %1782
    %1784 = vrot.lane.b32.xlu0 %v275, 28
    %v1785 = vpop.permute.xlu0 %1784
    %1786 = vrot.lane.b32.xlu0 %v278, 28
    %v1787 = vpop.permute.xlu0 %1786
    %1788 = vrot.lane.b32.xlu0 %v280, 28
    %v1789 = vpop.permute.xlu0 %1788
    %1790 = vrot.lane.b32.xlu0 %v283, 28
    %v1791 = vpop.permute.xlu0 %1790
    %1792 = vrot.lane.b32.xlu0 %v285, 28
    %v1793 = vpop.permute.xlu0 %1792
    %1794 = vrot.lane.b32.xlu0 %v288, 28
    %v1795 = vpop.permute.xlu0 %1794
    %1796 = vrot.lane.b32.xlu0 %v290, 28
    %v1797 = vpop.permute.xlu0 %1796
    %1798 = vrot.lane.b32.xlu0 %v293, 28
    %v1799 = vpop.permute.xlu0 %1798
    %1800 = vrot.lane.b32.xlu0 %v295, 28
    %v1801 = vpop.permute.xlu0 %1800
    %1802 = vrot.lane.b32.xlu0 %v298, 28
    %v1803 = vpop.permute.xlu0 %1802
    %1804 = vrot.lane.b32.xlu0 %v300, 28
    %v1805 = vpop.permute.xlu0 %1804
    %1806 = vrot.lane.b32.xlu0 %v303, 28
    %v1807 = vpop.permute.xlu0 %1806
    %1808 = vrot.lane.b32.xlu0 %v305, 28
    %v1809 = vpop.permute.xlu0 %1808
    %1810 = vrot.lane.b32.xlu0 %v308, 28
    %v1811 = vpop.permute.xlu0 %1810
    %1812 = vrot.lane.b32.xlu0 %v310, 28
    %v1813 = vpop.permute.xlu0 %1812
    %1814 = vrot.lane.b32.xlu0 %v313, 28
    %v1815 = vpop.permute.xlu0 %1814
    %1816 = vrot.lane.b32.xlu0 %v315, 28
    %v1817 = vpop.permute.xlu0 %1816
    %1818 = vrot.lane.b32.xlu0 %v318, 28
    %v1819 = vpop.permute.xlu0 %1818
    %1820 = vrot.lane.b32.xlu0 %v320, 28
    %v1821 = vpop.permute.xlu0 %1820
    %1822 = vrot.lane.b32.xlu0 %v570, 28
    %v1823 = vpop.permute.xlu0 %1822
    %1824 = vrot.lane.b32.xlu0 %v572, 28
    %v1825 = vpop.permute.xlu0 %1824
    %1826 = vrot.lane.b32.xlu0 %v596, 28
    %v1827 = vpop.permute.xlu0 %1826
    %1828 = vrot.lane.b32.xlu0 %v598, 28
    %v1829 = vpop.permute.xlu0 %1828
    %1830 = vrot.lane.b32.xlu0 %v333, 28
    %v1831 = vpop.permute.xlu0 %1830
    %1832 = vrot.lane.b32.xlu0 %v335, 28
    %v1833 = vpop.permute.xlu0 %1832
    %1834 = vrot.lane.b32.xlu0 %v338, 28
    %v1835 = vpop.permute.xlu0 %1834
    %1836 = vrot.lane.b32.xlu0 %v340, 28
    %v1837 = vpop.permute.xlu0 %1836
    %1838 = vrot.lane.b32.xlu0 %v343, 28
    %v1839 = vpop.permute.xlu0 %1838
    %1840 = vrot.lane.b32.xlu0 %v345, 28
    %v1841 = vpop.permute.xlu0 %1840
    %1842 = vrot.lane.b32.xlu0 %v348, 28
    %v1843 = vpop.permute.xlu0 %1842
    %1844 = vrot.lane.b32.xlu0 %v350, 28
    %v1845 = vpop.permute.xlu0 %1844
    %1846 = vrot.lane.b32.xlu0 %v353, 28
    %v1847 = vpop.permute.xlu0 %1846
    %1848 = vrot.lane.b32.xlu0 %v355, 28
    %v1849 = vpop.permute.xlu0 %1848
    %1850 = vrot.lane.b32.xlu0 %v358, 28
    %v1851 = vpop.permute.xlu0 %1850
    %1852 = vrot.lane.b32.xlu0 %v360, 28
    %v1853 = vpop.permute.xlu0 %1852
    %1854 = vrot.lane.b32.xlu0 %v363, 28
    %v1855 = vpop.permute.xlu0 %1854
    %1856 = vrot.lane.b32.xlu0 %v365, 28
    %v1857 = vpop.permute.xlu0 %1856
    %1858 = vrot.lane.b32.xlu0 %v368, 28
    %v1859 = vpop.permute.xlu0 %1858
    %1860 = vrot.lane.b32.xlu0 %v370, 28
    %v1861 = vpop.permute.xlu0 %1860
    %1862 = vrot.lane.b32.xlu0 %v373, 28
    %v1863 = vpop.permute.xlu0 %1862
    %1864 = vrot.lane.b32.xlu0 %v375, 28
    %v1865 = vpop.permute.xlu0 %1864
    %1866 = vrot.lane.b32.xlu0 %v378, 28
    %v1867 = vpop.permute.xlu0 %1866
    %1868 = vrot.lane.b32.xlu0 %v380, 28
    %v1869 = vpop.permute.xlu0 %1868
    %1870 = vrot.lane.b32.xlu0 %v383, 28
    %v1871 = vpop.permute.xlu0 %1870
    %1872 = vrot.lane.b32.xlu0 %v385, 28
    %v1873 = vpop.permute.xlu0 %1872
    %1874 = vrot.lane.b32.xlu0 %v388, 28
    %v1875 = vpop.permute.xlu0 %1874
    %1876 = vrot.lane.b32.xlu0 %v390, 28
    %v1877 = vpop.permute.xlu0 %1876
    %1878 = vrot.lane.b32.xlu0 %v393, 28
    %v1879 = vpop.permute.xlu0 %1878
    %1880 = vrot.lane.b32.xlu0 %v395, 28
    %v1881 = vpop.permute.xlu0 %1880
    %1882 = vrot.lane.b32.xlu0 %v398, 28
    %v1883 = vpop.permute.xlu0 %1882
    %1884 = vrot.lane.b32.xlu0 %v400, 28
    %v1885 = vpop.permute.xlu0 %1884
    %1886 = vrot.lane.b32.xlu0 %v575, 28
    %v1887 = vpop.permute.xlu0 %1886
    %1888 = vrot.lane.b32.xlu0 %v577, 28
    %v1889 = vpop.permute.xlu0 %1888
    %1890 = vrot.lane.b32.xlu0 %v601, 28
    %v1891 = vpop.permute.xlu0 %1890
    %1892 = vrot.lane.b32.xlu0 %v603, 28
    %v1893 = vpop.permute.xlu0 %1892
    %1958 = vrot.lane.b32.xlu0 %v414, 32
    %v1959 = vpop.permute.xlu0 %1958
    %1960 = vrot.lane.b32.xlu0 %v416, 32
    %v1961 = vpop.permute.xlu0 %1960
    %1962 = vrot.lane.b32.xlu0 %v419, 32
    %v1963 = vpop.permute.xlu0 %1962
    %1964 = vrot.lane.b32.xlu0 %v421, 32
    %v1965 = vpop.permute.xlu0 %1964
    %1966 = vrot.lane.b32.xlu0 %v424, 32
    %v1967 = vpop.permute.xlu0 %1966
    %1968 = vrot.lane.b32.xlu0 %v426, 32
    %v1969 = vpop.permute.xlu0 %1968
    %1970 = vrot.lane.b32.xlu0 %v429, 32
    %v1971 = vpop.permute.xlu0 %1970
    %1972 = vrot.lane.b32.xlu0 %v431, 32
    %v1973 = vpop.permute.xlu0 %1972
    %1974 = vrot.lane.b32.xlu0 %v434, 32
    %v1975 = vpop.permute.xlu0 %1974
    %1976 = vrot.lane.b32.xlu0 %v436, 32
    %v1977 = vpop.permute.xlu0 %1976
    %1978 = vrot.lane.b32.xlu0 %v439, 32
    %v1979 = vpop.permute.xlu0 %1978
    %1980 = vrot.lane.b32.xlu0 %v441, 32
    %v1981 = vpop.permute.xlu0 %1980
    %1982 = vrot.lane.b32.xlu0 %v444, 32
    %v1983 = vpop.permute.xlu0 %1982
    %1984 = vrot.lane.b32.xlu0 %v446, 32
    %v1985 = vpop.permute.xlu0 %1984
    %1986 = vrot.lane.b32.xlu0 %v449, 32
    %v1987 = vpop.permute.xlu0 %1986
    %1988 = vrot.lane.b32.xlu0 %v451, 32
    %v1989 = vpop.permute.xlu0 %1988
    %1990 = vrot.lane.b32.xlu0 %v454, 32
    %v1991 = vpop.permute.xlu0 %1990
    %1992 = vrot.lane.b32.xlu0 %v456, 32
    %v1993 = vpop.permute.xlu0 %1992
    %1994 = vrot.lane.b32.xlu0 %v459, 32
    %v1995 = vpop.permute.xlu0 %1994
    %1996 = vrot.lane.b32.xlu0 %v461, 32
    %v1997 = vpop.permute.xlu0 %1996
    %1998 = vrot.lane.b32.xlu0 %v464, 32
    %v1999 = vpop.permute.xlu0 %1998
    %2000 = vrot.lane.b32.xlu0 %v466, 32
    %v2001 = vpop.permute.xlu0 %2000
    %2002 = vrot.lane.b32.xlu0 %v469, 32
    %v2003 = vpop.permute.xlu0 %2002
    %2004 = vrot.lane.b32.xlu0 %v471, 32
    %v2005 = vpop.permute.xlu0 %2004
    %2006 = vrot.lane.b32.xlu0 %v474, 32
    %v2007 = vpop.permute.xlu0 %2006
    %2008 = vrot.lane.b32.xlu0 %v476, 32
    %v2009 = vpop.permute.xlu0 %2008
    %2010 = vrot.lane.b32.xlu0 %v479, 32
    %v2011 = vpop.permute.xlu0 %2010
    %2012 = vrot.lane.b32.xlu0 %v481, 32
    %v2013 = vpop.permute.xlu0 %2012
    %2014 = vrot.lane.b32.xlu0 %v580, 32
    %v2015 = vpop.permute.xlu0 %2014
    %2016 = vrot.lane.b32.xlu0 %v582, 32
    %v2017 = vpop.permute.xlu0 %2016
    %2018 = vrot.lane.b32.xlu0 %v606, 32
    %v2019 = vpop.permute.xlu0 %2018
    %2020 = vrot.lane.b32.xlu0 %v608, 32
    %v2021 = vpop.permute.xlu0 %2020
    %2022 = vrot.lane.b32.xlu0 %v494, 32
    %v2023 = vpop.permute.xlu0 %2022
    %2024 = vrot.lane.b32.xlu0 %v496, 32
    %v2025 = vpop.permute.xlu0 %2024
    %2026 = vrot.lane.b32.xlu0 %v499, 32
    %v2027 = vpop.permute.xlu0 %2026
    %2028 = vrot.lane.b32.xlu0 %v501, 32
    %v2029 = vpop.permute.xlu0 %2028
    %2030 = vrot.lane.b32.xlu0 %v504, 32
    %v2031 = vpop.permute.xlu0 %2030
    %2032 = vrot.lane.b32.xlu0 %v506, 32
    %v2033 = vpop.permute.xlu0 %2032
    %2034 = vrot.lane.b32.xlu0 %v509, 32
    %v2035 = vpop.permute.xlu0 %2034
    %2036 = vrot.lane.b32.xlu0 %v511, 32
    %v2037 = vpop.permute.xlu0 %2036
    %2038 = vrot.lane.b32.xlu0 %v514, 32
    %v2039 = vpop.permute.xlu0 %2038
    %2040 = vrot.lane.b32.xlu0 %v516, 32
    %v2041 = vpop.permute.xlu0 %2040
    %2042 = vrot.lane.b32.xlu0 %v519, 32
    %v2043 = vpop.permute.xlu0 %2042
    %2044 = vrot.lane.b32.xlu0 %v521, 32
    %v2045 = vpop.permute.xlu0 %2044
    %2046 = vrot.lane.b32.xlu0 %v524, 32
    %v2047 = vpop.permute.xlu0 %2046
    %2048 = vrot.lane.b32.xlu0 %v526, 32
    %v2049 = vpop.permute.xlu0 %2048
    %2050 = vrot.lane.b32.xlu0 %v529, 32
    %v2051 = vpop.permute.xlu0 %2050
    %2052 = vrot.lane.b32.xlu0 %v531, 32
    %v2053 = vpop.permute.xlu0 %2052
    %2054 = vrot.lane.b32.xlu0 %v534, 32
    %v2055 = vpop.permute.xlu0 %2054
    %2056 = vrot.lane.b32.xlu0 %v536, 32
    %v2057 = vpop.permute.xlu0 %2056
    %2058 = vrot.lane.b32.xlu0 %v539, 32
    %v2059 = vpop.permute.xlu0 %2058
    %2060 = vrot.lane.b32.xlu0 %v541, 32
    %v2061 = vpop.permute.xlu0 %2060
    %2062 = vrot.lane.b32.xlu0 %v544, 32
    %v2063 = vpop.permute.xlu0 %2062
    %2064 = vrot.lane.b32.xlu0 %v546, 32
    %v2065 = vpop.permute.xlu0 %2064
    %2066 = vrot.lane.b32.xlu0 %v549, 32
    %v2067 = vpop.permute.xlu0 %2066
    %2068 = vrot.lane.b32.xlu0 %v551, 32
    %v2069 = vpop.permute.xlu0 %2068
    %2070 = vrot.lane.b32.xlu0 %v554, 32
    %v2071 = vpop.permute.xlu0 %2070
    %2072 = vrot.lane.b32.xlu0 %v556, 32
    %v2073 = vpop.permute.xlu0 %2072
    %2074 = vrot.lane.b32.xlu0 %v559, 32
    %v2075 = vpop.permute.xlu0 %2074
    %2076 = vrot.lane.b32.xlu0 %v561, 32
    %v2077 = vpop.permute.xlu0 %2076
    %2078 = vrot.lane.b32.xlu0 %v585, 32
    %v2079 = vpop.permute.xlu0 %2078
    %2080 = vrot.lane.b32.xlu0 %v587, 32
    %v2081 = vpop.permute.xlu0 %2080
    %2082 = vrot.lane.b32.xlu0 %v611, 32
    %v2083 = vpop.permute.xlu0 %2082
    %2084 = vrot.lane.b32.xlu0 %v613, 32
    %v2085 = vpop.permute.xlu0 %2084
    %vm2150 = vcmask 31744
    %v2151 = vsel %vm2150, %v36, %v615
    %v2152 = vsel %vm2150, %v37, %v617
    %v2153 = vsel %vm2150, %v39, %v619
    %v2154 = vsel %vm2150, %v40, %v621
    %v2155 = vsel %vm2150, %v42, %v623
    %v2156 = vsel %vm2150, %v43, %v625
    %v2157 = vsel %vm2150, %v45, %v627
    %v2158 = vsel %vm2150, %v46, %v629
    %v2159 = vsel %vm2150, %v48, %v631
    %v2160 = vsel %vm2150, %v49, %v633
    %v2161 = vsel %vm2150, %v51, %v635
    %v2162 = vsel %vm2150, %v52, %v637
    %v2163 = vsel %vm2150, %v54, %v639
    %v2164 = vsel %vm2150, %v55, %v641
    %v2165 = vsel %vm2150, %v57, %v643
    %v2166 = vsel %vm2150, %v58, %v645
    %v2167 = vsel %vm2150, %v60, %v647
    %v2168 = vsel %vm2150, %v61, %v649
    %v2169 = vsel %vm2150, %v63, %v651
    %v2170 = vsel %vm2150, %v64, %v653
    %v2171 = vsel %vm2150, %v66, %v655
    %v2172 = vsel %vm2150, %v67, %v657
    %v2173 = vsel %vm2150, %v69, %v659
    %v2174 = vsel %vm2150, %v70, %v661
    %v2175 = vsel %vm2150, %v72, %v663
    %v2176 = vsel %vm2150, %v73, %v665
    %v2177 = vsel %vm2150, %v75, %v667
    %v2178 = vsel %vm2150, %v76, %v669
    %v2179 = vsel %vm2150, %v78, %v671
    %v2180 = vsel %vm2150, %v79, %v673
    %v2181 = vsel %vm2150, %v81, %v675
    %v2182 = vsel %vm2150, %v82, %v677
    %v2183 = vsel %vm2150, %v90, %v679
    %v2184 = vsel %vm2150, %v91, %v681
    %v2185 = vsel %vm2150, %v93, %v683
    %v2186 = vsel %vm2150, %v94, %v685
    %v2187 = vsel %vm2150, %v96, %v687
    %v2188 = vsel %vm2150, %v97, %v689
    %v2189 = vsel %vm2150, %v99, %v691
    %v2190 = vsel %vm2150, %v100, %v693
    %v2191 = vsel %vm2150, %v102, %v695
    %v2192 = vsel %vm2150, %v103, %v697
    %v2193 = vsel %vm2150, %v105, %v699
    %v2194 = vsel %vm2150, %v106, %v701
    %v2195 = vsel %vm2150, %v108, %v703
    %v2196 = vsel %vm2150, %v109, %v705
    %v2197 = vsel %vm2150, %v111, %v707
    %v2198 = vsel %vm2150, %v112, %v709
    %v2199 = vsel %vm2150, %v114, %v711
    %v2200 = vsel %vm2150, %v115, %v713
    %v2201 = vsel %vm2150, %v117, %v715
    %v2202 = vsel %vm2150, %v118, %v717
    %v2203 = vsel %vm2150, %v120, %v719
    %v2204 = vsel %vm2150, %v121, %v721
    %v2205 = vsel %vm2150, %v123, %v723
    %v2206 = vsel %vm2150, %v124, %v725
    %v2207 = vsel %vm2150, %v126, %v727
    %v2208 = vsel %vm2150, %v127, %v729
    %v2209 = vsel %vm2150, %v129, %v731
    %v2210 = vsel %vm2150, %v130, %v733
    %v2211 = vsel %vm2150, %v132, %v735
    %v2212 = vsel %vm2150, %v133, %v737
    %v2213 = vsel %vm2150, %v135, %v739
    %v2214 = vsel %vm2150, %v136, %v741
    %vm2215 = vcmask 64512
    %v2216 = vsel %vm2215, %v2151, %v807
    %v2217 = vsel %vm2215, %v2152, %v809
    %v2218 = vsel %vm2215, %v2153, %v811
    %v2219 = vsel %vm2215, %v2154, %v813
    %v2220 = vsel %vm2215, %v2155, %v815
    %v2221 = vsel %vm2215, %v2156, %v817
    %v2222 = vsel %vm2215, %v2157, %v819
    %v2223 = vsel %vm2215, %v2158, %v821
    %v2224 = vsel %vm2215, %v2159, %v823
    %v2225 = vsel %vm2215, %v2160, %v825
    %v2226 = vsel %vm2215, %v2161, %v827
    %v2227 = vsel %vm2215, %v2162, %v829
    %v2228 = vsel %vm2215, %v2163, %v831
    %v2229 = vsel %vm2215, %v2164, %v833
    %v2230 = vsel %vm2215, %v2165, %v835
    %v2231 = vsel %vm2215, %v2166, %v837
    %v2232 = vsel %vm2215, %v2167, %v839
    %v2233 = vsel %vm2215, %v2168, %v841
    %v2234 = vsel %vm2215, %v2169, %v843
    %v2235 = vsel %vm2215, %v2170, %v845
    %v2236 = vsel %vm2215, %v2171, %v847
    %v2237 = vsel %vm2215, %v2172, %v849
    %v2238 = vsel %vm2215, %v2173, %v851
    %v2239 = vsel %vm2215, %v2174, %v853
    %v2240 = vsel %vm2215, %v2175, %v855
    %v2241 = vsel %vm2215, %v2176, %v857
    %v2242 = vsel %vm2215, %v2177, %v859
    %v2243 = vsel %vm2215, %v2178, %v861
    %v2244 = vsel %vm2215, %v2179, %v863
    %v2245 = vsel %vm2215, %v2180, %v865
    %v2246 = vsel %vm2215, %v2181, %v867
    %v2247 = vsel %vm2215, %v2182, %v869
    %v2248 = vsel %vm2215, %v2183, %v871
    %v2249 = vsel %vm2215, %v2184, %v873
    %v2250 = vsel %vm2215, %v2185, %v875
    %v2251 = vsel %vm2215, %v2186, %v877
    %v2252 = vsel %vm2215, %v2187, %v879
    %v2253 = vsel %vm2215, %v2188, %v881
    %v2254 = vsel %vm2215, %v2189, %v883
    %v2255 = vsel %vm2215, %v2190, %v885
    %v2256 = vsel %vm2215, %v2191, %v887
    %v2257 = vsel %vm2215, %v2192, %v889
    %v2258 = vsel %vm2215, %v2193, %v891
    %v2259 = vsel %vm2215, %v2194, %v893
    %v2260 = vsel %vm2215, %v2195, %v895
    %v2261 = vsel %vm2215, %v2196, %v897
    %v2262 = vsel %vm2215, %v2197, %v899
    %v2263 = vsel %vm2215, %v2198, %v901
    %v2264 = vsel %vm2215, %v2199, %v903
    %v2265 = vsel %vm2215, %v2200, %v905
    %v2266 = vsel %vm2215, %v2201, %v907
    %v2267 = vsel %vm2215, %v2202, %v909
    %v2268 = vsel %vm2215, %v2203, %v911
    %v2269 = vsel %vm2215, %v2204, %v913
    %v2270 = vsel %vm2215, %v2205, %v915
    %v2271 = vsel %vm2215, %v2206, %v917
    %v2272 = vsel %vm2215, %v2207, %v919
    %v2273 = vsel %vm2215, %v2208, %v921
    %v2274 = vsel %vm2215, %v2209, %v923
    %v2275 = vsel %vm2215, %v2210, %v925
    %v2276 = vsel %vm2215, %v2211, %v927
    %v2277 = vsel %vm2215, %v2212, %v929
    %v2278 = vsel %vm2215, %v2213, %v931
    %v2279 = vsel %vm2215, %v2214, %v933
    %vm2280 = vcmask 97280
    %v2281 = vsel %vm2280, %v2216, %v999
    %v2282 = vsel %vm2280, %v2217, %v1001
    %v2283 = vsel %vm2280, %v2218, %v1003
    %v2284 = vsel %vm2280, %v2219, %v1005
    %v2285 = vsel %vm2280, %v2220, %v1007
    %v2286 = vsel %vm2280, %v2221, %v1009
    %v2287 = vsel %vm2280, %v2222, %v1011
    %v2288 = vsel %vm2280, %v2223, %v1013
    %v2289 = vsel %vm2280, %v2224, %v1015
    %v2290 = vsel %vm2280, %v2225, %v1017
    %v2291 = vsel %vm2280, %v2226, %v1019
    %v2292 = vsel %vm2280, %v2227, %v1021
    %v2293 = vsel %vm2280, %v2228, %v1023
    %v2294 = vsel %vm2280, %v2229, %v1025
    %v2295 = vsel %vm2280, %v2230, %v1027
    %v2296 = vsel %vm2280, %v2231, %v1029
    %v2297 = vsel %vm2280, %v2232, %v1031
    %v2298 = vsel %vm2280, %v2233, %v1033
    %v2299 = vsel %vm2280, %v2234, %v1035
    %v2300 = vsel %vm2280, %v2235, %v1037
    %v2301 = vsel %vm2280, %v2236, %v1039
    %v2302 = vsel %vm2280, %v2237, %v1041
    %v2303 = vsel %vm2280, %v2238, %v1043
    %v2304 = vsel %vm2280, %v2239, %v1045
    %v2305 = vsel %vm2280, %v2240, %v1047
    %v2306 = vsel %vm2280, %v2241, %v1049
    %v2307 = vsel %vm2280, %v2242, %v1051
    %v2308 = vsel %vm2280, %v2243, %v1053
    %v2309 = vsel %vm2280, %v2244, %v1055
    %v2310 = vsel %vm2280, %v2245, %v1057
    %v2311 = vsel %vm2280, %v2246, %v1059
    %v2312 = vsel %vm2280, %v2247, %v1061
    %v2313 = vsel %vm2280, %v2248, %v1063
    %v2314 = vsel %vm2280, %v2249, %v1065
    %v2315 = vsel %vm2280, %v2250, %v1067
    %v2316 = vsel %vm2280, %v2251, %v1069
    %v2317 = vsel %vm2280, %v2252, %v1071
    %v2318 = vsel %vm2280, %v2253, %v1073
    %v2319 = vsel %vm2280, %v2254, %v1075
    %v2320 = vsel %vm2280, %v2255, %v1077
    %v2321 = vsel %vm2280, %v2256, %v1079
    %v2322 = vsel %vm2280, %v2257, %v1081
    %v2323 = vsel %vm2280, %v2258, %v1083
    %v2324 = vsel %vm2280, %v2259, %v1085
    %v2325 = vsel %vm2280, %v2260, %v1087
    %v2326 = vsel %vm2280, %v2261, %v1089
    %v2327 = vsel %vm2280, %v2262, %v1091
    %v2328 = vsel %vm2280, %v2263, %v1093
    %v2329 = vsel %vm2280, %v2264, %v1095
    %v2330 = vsel %vm2280, %v2265, %v1097
    %v2331 = vsel %vm2280, %v2266, %v1099
    %v2332 = vsel %vm2280, %v2267, %v1101
    %v2333 = vsel %vm2280, %v2268, %v1103
    %v2334 = vsel %vm2280, %v2269, %v1105
    %v2335 = vsel %vm2280, %v2270, %v1107
    %v2336 = vsel %vm2280, %v2271, %v1109
    %v2337 = vsel %vm2280, %v2272, %v1111
    %v2338 = vsel %vm2280, %v2273, %v1113
    %v2339 = vsel %vm2280, %v2274, %v1115
    %v2340 = vsel %vm2280, %v2275, %v1117
    %v2341 = vsel %vm2280, %v2276, %v1119
    %v2342 = vsel %vm2280, %v2277, %v1121
    %v2343 = vsel %vm2280, %v2278, %v1123
    %v2344 = vsel %vm2280, %v2279, %v1125
    %vm2345 = vcmask 130048
    %v2346 = vsel %vm2345, %v2281, %v1191
    %v2347 = vsel %vm2345, %v2282, %v1193
    %v2348 = vsel %vm2345, %v2283, %v1195
    %v2349 = vsel %vm2345, %v2284, %v1197
    %v2350 = vsel %vm2345, %v2285, %v1199
    %v2351 = vsel %vm2345, %v2286, %v1201
    %v2352 = vsel %vm2345, %v2287, %v1203
    %v2353 = vsel %vm2345, %v2288, %v1205
    %v2354 = vsel %vm2345, %v2289, %v1207
    %v2355 = vsel %vm2345, %v2290, %v1209
    %v2356 = vsel %vm2345, %v2291, %v1211
    %v2357 = vsel %vm2345, %v2292, %v1213
    %v2358 = vsel %vm2345, %v2293, %v1215
    %v2359 = vsel %vm2345, %v2294, %v1217
    %v2360 = vsel %vm2345, %v2295, %v1219
    %v2361 = vsel %vm2345, %v2296, %v1221
    %v2362 = vsel %vm2345, %v2297, %v1223
    %v2363 = vsel %vm2345, %v2298, %v1225
    %v2364 = vsel %vm2345, %v2299, %v1227
    %v2365 = vsel %vm2345, %v2300, %v1229
    %v2366 = vsel %vm2345, %v2301, %v1231
    %v2367 = vsel %vm2345, %v2302, %v1233
    %v2368 = vsel %vm2345, %v2303, %v1235
    %v2369 = vsel %vm2345, %v2304, %v1237
    %v2370 = vsel %vm2345, %v2305, %v1239
    %v2371 = vsel %vm2345, %v2306, %v1241
    %v2372 = vsel %vm2345, %v2307, %v1243
    %v2373 = vsel %vm2345, %v2308, %v1245
    %v2374 = vsel %vm2345, %v2309, %v1247
    %v2375 = vsel %vm2345, %v2310, %v1249
    %v2376 = vsel %vm2345, %v2311, %v1251
    %v2377 = vsel %vm2345, %v2312, %v1253
    %v2378 = vsel %vm2345, %v2313, %v1255
    %v2379 = vsel %vm2345, %v2314, %v1257
    %v2380 = vsel %vm2345, %v2315, %v1259
    %v2381 = vsel %vm2345, %v2316, %v1261
    %v2382 = vsel %vm2345, %v2317, %v1263
    %v2383 = vsel %vm2345, %v2318, %v1265
    %v2384 = vsel %vm2345, %v2319, %v1267
    %v2385 = vsel %vm2345, %v2320, %v1269
    %v2386 = vsel %vm2345, %v2321, %v1271
    %v2387 = vsel %vm2345, %v2322, %v1273
    %v2388 = vsel %vm2345, %v2323, %v1275
    %v2389 = vsel %vm2345, %v2324, %v1277
    %v2390 = vsel %vm2345, %v2325, %v1279
    %v2391 = vsel %vm2345, %v2326, %v1281
    %v2392 = vsel %vm2345, %v2327, %v1283
    %v2393 = vsel %vm2345, %v2328, %v1285
    %v2394 = vsel %vm2345, %v2329, %v1287
    %v2395 = vsel %vm2345, %v2330, %v1289
    %v2396 = vsel %vm2345, %v2331, %v1291
    %v2397 = vsel %vm2345, %v2332, %v1293
    %v2398 = vsel %vm2345, %v2333, %v1295
    %v2399 = vsel %vm2345, %v2334, %v1297
    %v2400 = vsel %vm2345, %v2335, %v1299
    %v2401 = vsel %vm2345, %v2336, %v1301
    %v2402 = vsel %vm2345, %v2337, %v1303
    %v2403 = vsel %vm2345, %v2338, %v1305
    %v2404 = vsel %vm2345, %v2339, %v1307
    %v2405 = vsel %vm2345, %v2340, %v1309
    %v2406 = vsel %vm2345, %v2341, %v1311
    %v2407 = vsel %vm2345, %v2342, %v1313
    %v2408 = vsel %vm2345, %v2343, %v1315
    %v2409 = vsel %vm2345, %v2344, %v1317
    %vm2410 = vcmask 162816
    %v2411 = vsel %vm2410, %v2346, %v1383
    %v2412 = vsel %vm2410, %v2347, %v1385
    %v2413 = vsel %vm2410, %v2348, %v1387
    %v2414 = vsel %vm2410, %v2349, %v1389
    %v2415 = vsel %vm2410, %v2350, %v1391
    %v2416 = vsel %vm2410, %v2351, %v1393
    %v2417 = vsel %vm2410, %v2352, %v1395
    %v2418 = vsel %vm2410, %v2353, %v1397
    %v2419 = vsel %vm2410, %v2354, %v1399
    %v2420 = vsel %vm2410, %v2355, %v1401
    %v2421 = vsel %vm2410, %v2356, %v1403
    %v2422 = vsel %vm2410, %v2357, %v1405
    %v2423 = vsel %vm2410, %v2358, %v1407
    %v2424 = vsel %vm2410, %v2359, %v1409
    %v2425 = vsel %vm2410, %v2360, %v1411
    %v2426 = vsel %vm2410, %v2361, %v1413
    %v2427 = vsel %vm2410, %v2362, %v1415
    %v2428 = vsel %vm2410, %v2363, %v1417
    %v2429 = vsel %vm2410, %v2364, %v1419
    %v2430 = vsel %vm2410, %v2365, %v1421
    %v2431 = vsel %vm2410, %v2366, %v1423
    %v2432 = vsel %vm2410, %v2367, %v1425
    %v2433 = vsel %vm2410, %v2368, %v1427
    %v2434 = vsel %vm2410, %v2369, %v1429
    %v2435 = vsel %vm2410, %v2370, %v1431
    %v2436 = vsel %vm2410, %v2371, %v1433
    %v2437 = vsel %vm2410, %v2372, %v1435
    %v2438 = vsel %vm2410, %v2373, %v1437
    %v2439 = vsel %vm2410, %v2374, %v1439
    %v2440 = vsel %vm2410, %v2375, %v1441
    %v2441 = vsel %vm2410, %v2376, %v1443
    %v2442 = vsel %vm2410, %v2377, %v1445
    %v2443 = vsel %vm2410, %v2378, %v1447
    %v2444 = vsel %vm2410, %v2379, %v1449
    %v2445 = vsel %vm2410, %v2380, %v1451
    %v2446 = vsel %vm2410, %v2381, %v1453
    %v2447 = vsel %vm2410, %v2382, %v1455
    %v2448 = vsel %vm2410, %v2383, %v1457
    %v2449 = vsel %vm2410, %v2384, %v1459
    %v2450 = vsel %vm2410, %v2385, %v1461
    %v2451 = vsel %vm2410, %v2386, %v1463
    %v2452 = vsel %vm2410, %v2387, %v1465
    %v2453 = vsel %vm2410, %v2388, %v1467
    %v2454 = vsel %vm2410, %v2389, %v1469
    %v2455 = vsel %vm2410, %v2390, %v1471
    %v2456 = vsel %vm2410, %v2391, %v1473
    %v2457 = vsel %vm2410, %v2392, %v1475
    %v2458 = vsel %vm2410, %v2393, %v1477
    %v2459 = vsel %vm2410, %v2394, %v1479
    %v2460 = vsel %vm2410, %v2395, %v1481
    %v2461 = vsel %vm2410, %v2396, %v1483
    %v2462 = vsel %vm2410, %v2397, %v1485
    %v2463 = vsel %vm2410, %v2398, %v1487
    %v2464 = vsel %vm2410, %v2399, %v1489
    %v2465 = vsel %vm2410, %v2400, %v1491
    %v2466 = vsel %vm2410, %v2401, %v1493
    %v2467 = vsel %vm2410, %v2402, %v1495
    %v2468 = vsel %vm2410, %v2403, %v1497
    %v2469 = vsel %vm2410, %v2404, %v1499
    %v2470 = vsel %vm2410, %v2405, %v1501
    %v2471 = vsel %vm2410, %v2406, %v1503
    %v2472 = vsel %vm2410, %v2407, %v1505
    %v2473 = vsel %vm2410, %v2408, %v1507
    %v2474 = vsel %vm2410, %v2409, %v1509
    %vm2475 = vcmask 195584
    %v2476 = vsel %vm2475, %v2411, %v1575
    %v2477 = vsel %vm2475, %v2412, %v1577
    %v2478 = vsel %vm2475, %v2413, %v1579
    %v2479 = vsel %vm2475, %v2414, %v1581
    %v2480 = vsel %vm2475, %v2415, %v1583
    %v2481 = vsel %vm2475, %v2416, %v1585
    %v2482 = vsel %vm2475, %v2417, %v1587
    %v2483 = vsel %vm2475, %v2418, %v1589
    %v2484 = vsel %vm2475, %v2419, %v1591
    %v2485 = vsel %vm2475, %v2420, %v1593
    %v2486 = vsel %vm2475, %v2421, %v1595
    %v2487 = vsel %vm2475, %v2422, %v1597
    %v2488 = vsel %vm2475, %v2423, %v1599
    %v2489 = vsel %vm2475, %v2424, %v1601
    %v2490 = vsel %vm2475, %v2425, %v1603
    %v2491 = vsel %vm2475, %v2426, %v1605
    %v2492 = vsel %vm2475, %v2427, %v1607
    %v2493 = vsel %vm2475, %v2428, %v1609
    %v2494 = vsel %vm2475, %v2429, %v1611
    %v2495 = vsel %vm2475, %v2430, %v1613
    %v2496 = vsel %vm2475, %v2431, %v1615
    %v2497 = vsel %vm2475, %v2432, %v1617
    %v2498 = vsel %vm2475, %v2433, %v1619
    %v2499 = vsel %vm2475, %v2434, %v1621
    %v2500 = vsel %vm2475, %v2435, %v1623
    %v2501 = vsel %vm2475, %v2436, %v1625
    %v2502 = vsel %vm2475, %v2437, %v1627
    %v2503 = vsel %vm2475, %v2438, %v1629
    %v2504 = vsel %vm2475, %v2439, %v1631
    %v2505 = vsel %vm2475, %v2440, %v1633
    %v2506 = vsel %vm2475, %v2441, %v1635
    %v2507 = vsel %vm2475, %v2442, %v1637
    %v2508 = vsel %vm2475, %v2443, %v1639
    %v2509 = vsel %vm2475, %v2444, %v1641
    %v2510 = vsel %vm2475, %v2445, %v1643
    %v2511 = vsel %vm2475, %v2446, %v1645
    %v2512 = vsel %vm2475, %v2447, %v1647
    %v2513 = vsel %vm2475, %v2448, %v1649
    %v2514 = vsel %vm2475, %v2449, %v1651
    %v2515 = vsel %vm2475, %v2450, %v1653
    %v2516 = vsel %vm2475, %v2451, %v1655
    %v2517 = vsel %vm2475, %v2452, %v1657
    %v2518 = vsel %vm2475, %v2453, %v1659
    %v2519 = vsel %vm2475, %v2454, %v1661
    %v2520 = vsel %vm2475, %v2455, %v1663
    %v2521 = vsel %vm2475, %v2456, %v1665
    %v2522 = vsel %vm2475, %v2457, %v1667
    %v2523 = vsel %vm2475, %v2458, %v1669
    %v2524 = vsel %vm2475, %v2459, %v1671
    %v2525 = vsel %vm2475, %v2460, %v1673
    %v2526 = vsel %vm2475, %v2461, %v1675
    %v2527 = vsel %vm2475, %v2462, %v1677
    %v2528 = vsel %vm2475, %v2463, %v1679
    %v2529 = vsel %vm2475, %v2464, %v1681
    %v2530 = vsel %vm2475, %v2465, %v1683
    %v2531 = vsel %vm2475, %v2466, %v1685
    %v2532 = vsel %vm2475, %v2467, %v1687
    %v2533 = vsel %vm2475, %v2468, %v1689
    %v2534 = vsel %vm2475, %v2469, %v1691
    %v2535 = vsel %vm2475, %v2470, %v1693
    %v2536 = vsel %vm2475, %v2471, %v1695
    %v2537 = vsel %vm2475, %v2472, %v1697
    %v2538 = vsel %vm2475, %v2473, %v1699
    %v2539 = vsel %vm2475, %v2474, %v1701
    %vm2540 = vcmask 228352
    %v2541 = vsel %vm2540, %v2476, %v1767
    %v2542 = vsel %vm2540, %v2477, %v1769
    %v2543 = vsel %vm2540, %v2478, %v1771
    %v2544 = vsel %vm2540, %v2479, %v1773
    %v2545 = vsel %vm2540, %v2480, %v1775
    %v2546 = vsel %vm2540, %v2481, %v1777
    %v2547 = vsel %vm2540, %v2482, %v1779
    %v2548 = vsel %vm2540, %v2483, %v1781
    %v2549 = vsel %vm2540, %v2484, %v1783
    %v2550 = vsel %vm2540, %v2485, %v1785
    %v2551 = vsel %vm2540, %v2486, %v1787
    %v2552 = vsel %vm2540, %v2487, %v1789
    %v2553 = vsel %vm2540, %v2488, %v1791
    %v2554 = vsel %vm2540, %v2489, %v1793
    %v2555 = vsel %vm2540, %v2490, %v1795
    %v2556 = vsel %vm2540, %v2491, %v1797
    %v2557 = vsel %vm2540, %v2492, %v1799
    %v2558 = vsel %vm2540, %v2493, %v1801
    %v2559 = vsel %vm2540, %v2494, %v1803
    %v2560 = vsel %vm2540, %v2495, %v1805
    %v2561 = vsel %vm2540, %v2496, %v1807
    %v2562 = vsel %vm2540, %v2497, %v1809
    %v2563 = vsel %vm2540, %v2498, %v1811
    %v2564 = vsel %vm2540, %v2499, %v1813
    %v2565 = vsel %vm2540, %v2500, %v1815
    %v2566 = vsel %vm2540, %v2501, %v1817
    %v2567 = vsel %vm2540, %v2502, %v1819
    %v2568 = vsel %vm2540, %v2503, %v1821
    %v2569 = vsel %vm2540, %v2504, %v1823
    %v2570 = vsel %vm2540, %v2505, %v1825
    %v2571 = vsel %vm2540, %v2506, %v1827
    %v2572 = vsel %vm2540, %v2507, %v1829
    %v2573 = vsel %vm2540, %v2508, %v1831
    %v2574 = vsel %vm2540, %v2509, %v1833
    %v2575 = vsel %vm2540, %v2510, %v1835
    %v2576 = vsel %vm2540, %v2511, %v1837
    %v2577 = vsel %vm2540, %v2512, %v1839
    %v2578 = vsel %vm2540, %v2513, %v1841
    %v2579 = vsel %vm2540, %v2514, %v1843
    %v2580 = vsel %vm2540, %v2515, %v1845
    %v2581 = vsel %vm2540, %v2516, %v1847
    %v2582 = vsel %vm2540, %v2517, %v1849
    %v2583 = vsel %vm2540, %v2518, %v1851
    %v2584 = vsel %vm2540, %v2519, %v1853
    %v2585 = vsel %vm2540, %v2520, %v1855
    %v2586 = vsel %vm2540, %v2521, %v1857
    %v2587 = vsel %vm2540, %v2522, %v1859
    %v2588 = vsel %vm2540, %v2523, %v1861
    %v2589 = vsel %vm2540, %v2524, %v1863
    %v2590 = vsel %vm2540, %v2525, %v1865
    %v2591 = vsel %vm2540, %v2526, %v1867
    %v2592 = vsel %vm2540, %v2527, %v1869
    %v2593 = vsel %vm2540, %v2528, %v1871
    %v2594 = vsel %vm2540, %v2529, %v1873
    %v2595 = vsel %vm2540, %v2530, %v1875
    %v2596 = vsel %vm2540, %v2531, %v1877
    %v2597 = vsel %vm2540, %v2532, %v1879
    %v2598 = vsel %vm2540, %v2533, %v1881
    %v2599 = vsel %vm2540, %v2534, %v1883
    %v2600 = vsel %vm2540, %v2535, %v1885
    %v2601 = vsel %vm2540, %v2536, %v1887
    %v2602 = vsel %vm2540, %v2537, %v1889
    %v2603 = vsel %vm2540, %v2538, %v1891
    %v2604 = vsel %vm2540, %v2539, %v1893
    %vm2605 = vcmask 261120
    %v2606 = vsel %vm2605, %v2541, %v1959
    %v2607 = vsel %vm2605, %v2542, %v1961
    %v2608 = vsel %vm2605, %v2543, %v1963
    %v2609 = vsel %vm2605, %v2544, %v1965
    %v2610 = vsel %vm2605, %v2545, %v1967
    %v2611 = vsel %vm2605, %v2546, %v1969
    %v2612 = vsel %vm2605, %v2547, %v1971
    %v2613 = vsel %vm2605, %v2548, %v1973
    %v2614 = vsel %vm2605, %v2549, %v1975
    %v2615 = vsel %vm2605, %v2550, %v1977
    %v2616 = vsel %vm2605, %v2551, %v1979
    %v2617 = vsel %vm2605, %v2552, %v1981
    %v2618 = vsel %vm2605, %v2553, %v1983
    %v2619 = vsel %vm2605, %v2554, %v1985
    %v2620 = vsel %vm2605, %v2555, %v1987
    %v2621 = vsel %vm2605, %v2556, %v1989
    %v2622 = vsel %vm2605, %v2557, %v1991
    %v2623 = vsel %vm2605, %v2558, %v1993
    %v2624 = vsel %vm2605, %v2559, %v1995
    %v2625 = vsel %vm2605, %v2560, %v1997
    %v2626 = vsel %vm2605, %v2561, %v1999
    %v2627 = vsel %vm2605, %v2562, %v2001
    %v2628 = vsel %vm2605, %v2563, %v2003
    %v2629 = vsel %vm2605, %v2564, %v2005
    %v2630 = vsel %vm2605, %v2565, %v2007
    %v2631 = vsel %vm2605, %v2566, %v2009
    %v2632 = vsel %vm2605, %v2567, %v2011
    %v2633 = vsel %vm2605, %v2568, %v2013
    %v2634 = vsel %vm2605, %v2569, %v2015
    %v2635 = vsel %vm2605, %v2570, %v2017
    %v2636 = vsel %vm2605, %v2571, %v2019
    %v2637 = vsel %vm2605, %v2572, %v2021
    %v2638 = vsel %vm2605, %v2573, %v2023
    %v2639 = vsel %vm2605, %v2574, %v2025
    %v2640 = vsel %vm2605, %v2575, %v2027
    %v2641 = vsel %vm2605, %v2576, %v2029
    %v2642 = vsel %vm2605, %v2577, %v2031
    %v2643 = vsel %vm2605, %v2578, %v2033
    %v2644 = vsel %vm2605, %v2579, %v2035
    %v2645 = vsel %vm2605, %v2580, %v2037
    %v2646 = vsel %vm2605, %v2581, %v2039
    %v2647 = vsel %vm2605, %v2582, %v2041
    %v2648 = vsel %vm2605, %v2583, %v2043
    %v2649 = vsel %vm2605, %v2584, %v2045
    %v2650 = vsel %vm2605, %v2585, %v2047
    %v2651 = vsel %vm2605, %v2586, %v2049
    %v2652 = vsel %vm2605, %v2587, %v2051
    %v2653 = vsel %vm2605, %v2588, %v2053
    %v2654 = vsel %vm2605, %v2589, %v2055
    %v2655 = vsel %vm2605, %v2590, %v2057
    %v2656 = vsel %vm2605, %v2591, %v2059
    %v2657 = vsel %vm2605, %v2592, %v2061
    %v2658 = vsel %vm2605, %v2593, %v2063
    %v2659 = vsel %vm2605, %v2594, %v2065
    %v2660 = vsel %vm2605, %v2595, %v2067
    %v2661 = vsel %vm2605, %v2596, %v2069
    %v2662 = vsel %vm2605, %v2597, %v2071
    %v2663 = vsel %vm2605, %v2598, %v2073
    %v2664 = vsel %vm2605, %v2599, %v2075
    %v2665 = vsel %vm2605, %v2600, %v2077
    %v2666 = vsel %vm2605, %v2601, %v2079
    %v2667 = vsel %vm2605, %v2602, %v2081
    %v2668 = vsel %vm2605, %v2603, %v2083
    %v2669 = vsel %vm2605, %v2604, %v2085
    %v2670 = vld [vmem:[%s1] sm:$0xff]
    %v2671 = vld [vmem:[%s1 + $0x8] sm:$0xff]
    %v2672 = vld [vmem:[%s1 + $0x10] sm:$0xff]
    %v2673 = vld [vmem:[%s1 + $0x18] sm:$0xff]
    %v2674 = vld [vmem:[%s1 + $0x20] sm:$0xf]
    %v2675 = vld [vmem:[%s2] sm:$0x1]
    %v2677 = vperm.slane %v2675, 0
    %vm2679 = vcmask 293888
    %v2681 = vsel %vm2679, %v2606, 0
    %v2684 = vsel %vm2679, %v2607, 0
    %v2687 = vsel %vm2679, %v2608, 0
    %v2690 = vsel %vm2679, %v2609, 0
    %v2693 = vsel %vm2679, %v2610, 0
    %v2696 = vsel %vm2679, %v2611, 0
    %v2699 = vsel %vm2679, %v2612, 0
    %v2702 = vsel %vm2679, %v2613, 0
    %v2705 = vsel %vm2679, %v2614, 0
    %v2708 = vsel %vm2679, %v2615, 0
    %v2711 = vsel %vm2679, %v2616, 0
    %v2714 = vsel %vm2679, %v2617, 0
    %v2717 = vsel %vm2679, %v2618, 0
    %v2720 = vsel %vm2679, %v2619, 0
    %v2723 = vsel %vm2679, %v2620, 0
    %v2726 = vsel %vm2679, %v2621, 0
    %v2729 = vsel %vm2679, %v2622, 0
    %v2732 = vsel %vm2679, %v2623, 0
    %v2735 = vsel %vm2679, %v2624, 0
    %v2738 = vsel %vm2679, %v2625, 0
    %v2741 = vsel %vm2679, %v2626, 0
    %v2744 = vsel %vm2679, %v2627, 0
    %v2747 = vsel %vm2679, %v2628, 0
    %v2750 = vsel %vm2679, %v2629, 0
    %v2753 = vsel %vm2679, %v2630, 0
    %v2756 = vsel %vm2679, %v2631, 0
    %v2759 = vsel %vm2679, %v2632, 0
    %v2762 = vsel %vm2679, %v2633, 0
    %v2765 = vsel %vm2679, %v2634, 0
    %v2768 = vsel %vm2679, %v2635, 0
    %v2771 = vsel %vm2679, %v2636, 0
    %v2774 = vsel %vm2679, %v2637, 0
    %v2777 = vsel %vm2679, %v2638, 0
    %v2780 = vsel %vm2679, %v2639, 0
    %v2783 = vsel %vm2679, %v2640, 0
    %v2786 = vsel %vm2679, %v2641, 0
    %v2789 = vsel %vm2679, %v2642, 0
    %v2792 = vsel %vm2679, %v2643, 0
    %v2795 = vsel %vm2679, %v2644, 0
    %v2798 = vsel %vm2679, %v2645, 0
    %v2801 = vsel %vm2679, %v2646, 0
    %v2804 = vsel %vm2679, %v2647, 0
    %v2807 = vsel %vm2679, %v2648, 0
    %v2810 = vsel %vm2679, %v2649, 0
    %v2813 = vsel %vm2679, %v2650, 0
    %v2816 = vsel %vm2679, %v2651, 0
    %v2819 = vsel %vm2679, %v2652, 0
    %v2822 = vsel %vm2679, %v2653, 0
    %v2825 = vsel %vm2679, %v2654, 0
    %v2828 = vsel %vm2679, %v2655, 0
    %v2831 = vsel %vm2679, %v2656, 0
    %v2834 = vsel %vm2679, %v2657, 0
    %v2837 = vsel %vm2679, %v2658, 0
    %v2840 = vsel %vm2679, %v2659, 0
    %v2843 = vsel %vm2679, %v2660, 0
    %v2846 = vsel %vm2679, %v2661, 0
    %v2849 = vsel %vm2679, %v2662, 0
    %v2852 = vsel %vm2679, %v2663, 0
    %v2855 = vsel %vm2679, %v2664, 0
    %v2858 = vsel %vm2679, %v2665, 0
    %v2861 = vsel %vm2679, %v2666, 0
    %v2864 = vsel %vm2679, %v2667, 0
    %v2867 = vsel %vm2679, %v2668, 0
    %v2870 = vsel %vm2679, %v2669, 0
    %vm2872 = vcmask 1043456
    %v2874 = vsel %vm2872, %v2674, 0
    %2876 = vmatpush.msra.mxu0 0.0
    %2877 = vmatpush.msra.mxu0 0.0
    %2878 = vmatpush.msra.mxu0 0.0
    %2879 = vmatpush.msra.mxu0 0.0
    %2880 = vmatpush.msra.mxu0 0.0
    %2881 = vmatpush.msra.mxu0 0.0
    %2882 = vmatpush.msra.mxu0 0.0
    %2883 = vmatpush.msra.mxu0 0.0
    %2884 = vmatpush.msra.mxu0 0.0
    %2885 = vmatpush.msra.mxu0 0.0
    %2886 = vmatpush.msra.mxu0 0.0
    %2887 = vmatpush.msra.mxu0 %v2874
    %2888 = vmatpush.msra.mxu0 %v2673
    %2889 = vmatpush.msra.mxu0 %v2672
    %2890 = vmatpush.msra.mxu0 %v2671
    %2891 = vmatpush.msra.mxu0 %v2670
    %2892 = vmatmul.f32.gmra.mxu0 %v2681
    %v2893 = vpop.f32.mrf.mxu0
    %v2894 = vadd.f32 %v2677, %v2893
    %2895 = vmatmul.f32.gmra.mxu0 %v2684
    %v2896 = vpop.f32.mrf.mxu0
    %v2897 = vadd.f32 %v2677, %v2896
    %2898 = vmatmul.f32.gmra.mxu0 %v2687
    %v2899 = vpop.f32.mrf.mxu0
    %v2900 = vadd.f32 %v2677, %v2899
    %2901 = vmatmul.f32.gmra.mxu0 %v2690
    %v2902 = vpop.f32.mrf.mxu0
    %v2903 = vadd.f32 %v2677, %v2902
    %2904 = vmatmul.f32.gmra.mxu0 %v2693
    %v2905 = vpop.f32.mrf.mxu0
    %v2906 = vadd.f32 %v2677, %v2905
    %2907 = vmatmul.f32.gmra.mxu0 %v2696
    %v2908 = vpop.f32.mrf.mxu0
    %v2909 = vadd.f32 %v2677, %v2908
    %2910 = vmatmul.f32.gmra.mxu0 %v2699
    %v2911 = vpop.f32.mrf.mxu0
    %v2912 = vadd.f32 %v2677, %v2911
    %2913 = vmatmul.f32.gmra.mxu0 %v2702
    %v2914 = vpop.f32.mrf.mxu0
    %v2915 = vadd.f32 %v2677, %v2914
    %2916 = vmatmul.f32.gmra.mxu0 %v2705
    %v2917 = vpop.f32.mrf.mxu0
    %v2918 = vadd.f32 %v2677, %v2917
    %2919 = vmatmul.f32.gmra.mxu0 %v2708
    %v2920 = vpop.f32.mrf.mxu0
    %v2921 = vadd.f32 %v2677, %v2920
    %2922 = vmatmul.f32.gmra.mxu0 %v2711
    %v2923 = vpop.f32.mrf.mxu0
    %v2924 = vadd.f32 %v2677, %v2923
    %2925 = vmatmul.f32.gmra.mxu0 %v2714
    %v2926 = vpop.f32.mrf.mxu0
    %v2927 = vadd.f32 %v2677, %v2926
    %2928 = vmatmul.f32.gmra.mxu0 %v2717
    %v2929 = vpop.f32.mrf.mxu0
    %v2930 = vadd.f32 %v2677, %v2929
    %2931 = vmatmul.f32.gmra.mxu0 %v2720
    %v2932 = vpop.f32.mrf.mxu0
    %v2933 = vadd.f32 %v2677, %v2932
    %2934 = vmatmul.f32.gmra.mxu0 %v2723
    %v2935 = vpop.f32.mrf.mxu0
    %v2936 = vadd.f32 %v2677, %v2935
    %2937 = vmatmul.f32.gmra.mxu0 %v2726
    %v2938 = vpop.f32.mrf.mxu0
    %v2939 = vadd.f32 %v2677, %v2938
    %2940 = vmatmul.f32.gmra.mxu0 %v2729
    %v2941 = vpop.f32.mrf.mxu0
    %v2942 = vadd.f32 %v2677, %v2941
    %2943 = vmatmul.f32.gmra.mxu0 %v2732
    %v2944 = vpop.f32.mrf.mxu0
    %v2945 = vadd.f32 %v2677, %v2944
    %2946 = vmatmul.f32.gmra.mxu0 %v2735
    %v2947 = vpop.f32.mrf.mxu0
    %v2948 = vadd.f32 %v2677, %v2947
    %2949 = vmatmul.f32.gmra.mxu0 %v2738
    %v2950 = vpop.f32.mrf.mxu0
    %v2951 = vadd.f32 %v2677, %v2950
    %2952 = vmatmul.f32.gmra.mxu0 %v2741
    %v2953 = vpop.f32.mrf.mxu0
    %v2954 = vadd.f32 %v2677, %v2953
    %2955 = vmatmul.f32.gmra.mxu0 %v2744
    %v2956 = vpop.f32.mrf.mxu0
    %v2957 = vadd.f32 %v2677, %v2956
    %2958 = vmatmul.f32.gmra.mxu0 %v2747
    %v2959 = vpop.f32.mrf.mxu0
    %v2960 = vadd.f32 %v2677, %v2959
    %2961 = vmatmul.f32.gmra.mxu0 %v2750
    %v2962 = vpop.f32.mrf.mxu0
    %v2963 = vadd.f32 %v2677, %v2962
    %2964 = vmatmul.f32.gmra.mxu0 %v2753
    %v2965 = vpop.f32.mrf.mxu0
    %v2966 = vadd.f32 %v2677, %v2965
    %2967 = vmatmul.f32.gmra.mxu0 %v2756
    %v2968 = vpop.f32.mrf.mxu0
    %v2969 = vadd.f32 %v2677, %v2968
    %2970 = vmatmul.f32.gmra.mxu0 %v2759
    %v2971 = vpop.f32.mrf.mxu0
    %v2972 = vadd.f32 %v2677, %v2971
    %2973 = vmatmul.f32.gmra.mxu0 %v2762
    %v2974 = vpop.f32.mrf.mxu0
    %v2975 = vadd.f32 %v2677, %v2974
    %2976 = vmatmul.f32.gmra.mxu0 %v2765
    %v2977 = vpop.f32.mrf.mxu0
    %v2978 = vadd.f32 %v2677, %v2977
    %2979 = vmatmul.f32.gmra.mxu0 %v2768
    %v2980 = vpop.f32.mrf.mxu0
    %v2981 = vadd.f32 %v2677, %v2980
    %2982 = vmatmul.f32.gmra.mxu0 %v2771
    %v2983 = vpop.f32.mrf.mxu0
    %v2984 = vadd.f32 %v2677, %v2983
    %2985 = vmatmul.f32.gmra.mxu0 %v2774
    %v2986 = vpop.f32.mrf.mxu0
    %v2987 = vadd.f32 %v2677, %v2986
    %2988 = vmatmul.f32.gmra.mxu0 %v2777
    %v2989 = vpop.f32.mrf.mxu0
    %v2990 = vadd.f32 %v2677, %v2989
    %2991 = vmatmul.f32.gmra.mxu0 %v2780
    %v2992 = vpop.f32.mrf.mxu0
    %v2993 = vadd.f32 %v2677, %v2992
    %2994 = vmatmul.f32.gmra.mxu0 %v2783
    %v2995 = vpop.f32.mrf.mxu0
    %v2996 = vadd.f32 %v2677, %v2995
    %2997 = vmatmul.f32.gmra.mxu0 %v2786
    %v2998 = vpop.f32.mrf.mxu0
    %v2999 = vadd.f32 %v2677, %v2998
    %3000 = vmatmul.f32.gmra.mxu0 %v2789
    %v3001 = vpop.f32.mrf.mxu0
    %v3002 = vadd.f32 %v2677, %v3001
    %3003 = vmatmul.f32.gmra.mxu0 %v2792
    %v3004 = vpop.f32.mrf.mxu0
    %v3005 = vadd.f32 %v2677, %v3004
    %3006 = vmatmul.f32.gmra.mxu0 %v2795
    %v3007 = vpop.f32.mrf.mxu0
    %v3008 = vadd.f32 %v2677, %v3007
    %3009 = vmatmul.f32.gmra.mxu0 %v2798
    %v3010 = vpop.f32.mrf.mxu0
    %v3011 = vadd.f32 %v2677, %v3010
    %3012 = vmatmul.f32.gmra.mxu0 %v2801
    %v3013 = vpop.f32.mrf.mxu0
    %v3014 = vadd.f32 %v2677, %v3013
    %3015 = vmatmul.f32.gmra.mxu0 %v2804
    %v3016 = vpop.f32.mrf.mxu0
    %v3017 = vadd.f32 %v2677, %v3016
    %3018 = vmatmul.f32.gmra.mxu0 %v2807
    %v3019 = vpop.f32.mrf.mxu0
    %v3020 = vadd.f32 %v2677, %v3019
    %3021 = vmatmul.f32.gmra.mxu0 %v2810
    %v3022 = vpop.f32.mrf.mxu0
    %v3023 = vadd.f32 %v2677, %v3022
    %3024 = vmatmul.f32.gmra.mxu0 %v2813
    %v3025 = vpop.f32.mrf.mxu0
    %v3026 = vadd.f32 %v2677, %v3025
    %3027 = vmatmul.f32.gmra.mxu0 %v2816
    %v3028 = vpop.f32.mrf.mxu0
    %v3029 = vadd.f32 %v2677, %v3028
    %3030 = vmatmul.f32.gmra.mxu0 %v2819
    %v3031 = vpop.f32.mrf.mxu0
    %v3032 = vadd.f32 %v2677, %v3031
    %3033 = vmatmul.f32.gmra.mxu0 %v2822
    %v3034 = vpop.f32.mrf.mxu0
    %v3035 = vadd.f32 %v2677, %v3034
    %3036 = vmatmul.f32.gmra.mxu0 %v2825
    %v3037 = vpop.f32.mrf.mxu0
    %v3038 = vadd.f32 %v2677, %v3037
    %3039 = vmatmul.f32.gmra.mxu0 %v2828
    %v3040 = vpop.f32.mrf.mxu0
    %v3041 = vadd.f32 %v2677, %v3040
    %3042 = vmatmul.f32.gmra.mxu0 %v2831
    %v3043 = vpop.f32.mrf.mxu0
    %v3044 = vadd.f32 %v2677, %v3043
    %3045 = vmatmul.f32.gmra.mxu0 %v2834
    %v3046 = vpop.f32.mrf.mxu0
    %v3047 = vadd.f32 %v2677, %v3046
    %3048 = vmatmul.f32.gmra.mxu0 %v2837
    %v3049 = vpop.f32.mrf.mxu0
    %v3050 = vadd.f32 %v2677, %v3049
    %3051 = vmatmul.f32.gmra.mxu0 %v2840
    %v3052 = vpop.f32.mrf.mxu0
    %v3053 = vadd.f32 %v2677, %v3052
    %3054 = vmatmul.f32.gmra.mxu0 %v2843
    %v3055 = vpop.f32.mrf.mxu0
    %v3056 = vadd.f32 %v2677, %v3055
    %3057 = vmatmul.f32.gmra.mxu0 %v2846
    %v3058 = vpop.f32.mrf.mxu0
    %v3059 = vadd.f32 %v2677, %v3058
    %3060 = vmatmul.f32.gmra.mxu0 %v2849
    %v3061 = vpop.f32.mrf.mxu0
    %v3062 = vadd.f32 %v2677, %v3061
    %3063 = vmatmul.f32.gmra.mxu0 %v2852
    %v3064 = vpop.f32.mrf.mxu0
    %v3065 = vadd.f32 %v2677, %v3064
    %3066 = vmatmul.f32.gmra.mxu0 %v2855
    %v3067 = vpop.f32.mrf.mxu0
    %v3068 = vadd.f32 %v2677, %v3067
    %3069 = vmatmul.f32.gmra.mxu0 %v2858
    %v3070 = vpop.f32.mrf.mxu0
    %v3071 = vadd.f32 %v2677, %v3070
    %3072 = vmatmul.f32.gmra.mxu0 %v2861
    %v3073 = vpop.f32.mrf.mxu0
    %v3074 = vadd.f32 %v2677, %v3073
    %3075 = vmatmul.f32.gmra.mxu0 %v2864
    %v3076 = vpop.f32.mrf.mxu0
    %v3077 = vadd.f32 %v2677, %v3076
    %3078 = vmatmul.f32.gmra.mxu0 %v2867
    %v3079 = vpop.f32.mrf.mxu0
    %v3080 = vadd.f32 %v2677, %v3079
    %3081 = vmatmul.f32.gmra.mxu0 %v2870
    %v3082 = vpop.f32.mrf.mxu0
    %v3083 = vadd.f32 %v2677, %v3082
    %3084 = vdwg.mxu0
    %v3085 = vmax.f32 %v2894, 0.0
    %v3086 = vmax.f32 %v2897, 0.0
    %v3087 = vmax.f32 %v2900, 0.0
    %v3088 = vmax.f32 %v2903, 0.0
    %v3089 = vmax.f32 %v2906, 0.0
    %v3090 = vmax.f32 %v2909, 0.0
    %v3091 = vmax.f32 %v2912, 0.0
    %v3092 = vmax.f32 %v2915, 0.0
    %v3093 = vmax.f32 %v2918, 0.0
    %v3094 = vmax.f32 %v2921, 0.0
    %v3095 = vmax.f32 %v2924, 0.0
    %v3096 = vmax.f32 %v2927, 0.0
    %v3097 = vmax.f32 %v2930, 0.0
    %v3098 = vmax.f32 %v2933, 0.0
    %v3099 = vmax.f32 %v2936, 0.0
    %v3100 = vmax.f32 %v2939, 0.0
    %v3101 = vmax.f32 %v2942, 0.0
    %v3102 = vmax.f32 %v2945, 0.0
    %v3103 = vmax.f32 %v2948, 0.0
    %v3104 = vmax.f32 %v2951, 0.0
    %v3105 = vmax.f32 %v2954, 0.0
    %v3106 = vmax.f32 %v2957, 0.0
    %v3107 = vmax.f32 %v2960, 0.0
    %v3108 = vmax.f32 %v2963, 0.0
    %v3109 = vmax.f32 %v2966, 0.0
    %v3110 = vmax.f32 %v2969, 0.0
    %v3111 = vmax.f32 %v2972, 0.0
    %v3112 = vmax.f32 %v2975, 0.0
    %v3113 = vmax.f32 %v2978, 0.0
    %v3114 = vmax.f32 %v2981, 0.0
    %v3115 = vmax.f32 %v2984, 0.0
    %v3116 = vmax.f32 %v2987, 0.0
    %v3117 = vmax.f32 %v2990, 0.0
    %v3118 = vmax.f32 %v2993, 0.0
    %v3119 = vmax.f32 %v2996, 0.0
    %v3120 = vmax.f32 %v2999, 0.0
    %v3121 = vmax.f32 %v3002, 0.0
    %v3122 = vmax.f32 %v3005, 0.0
    %v3123 = vmax.f32 %v3008, 0.0
    %v3124 = vmax.f32 %v3011, 0.0
    %v3125 = vmax.f32 %v3014, 0.0
    %v3126 = vmax.f32 %v3017, 0.0
    %v3127 = vmax.f32 %v3020, 0.0
    %v3128 = vmax.f32 %v3023, 0.0
    %v3129 = vmax.f32 %v3026, 0.0
    %v3130 = vmax.f32 %v3029, 0.0
    %v3131 = vmax.f32 %v3032, 0.0
    %v3132 = vmax.f32 %v3035, 0.0
    %v3133 = vmax.f32 %v3038, 0.0
    %v3134 = vmax.f32 %v3041, 0.0
    %v3135 = vmax.f32 %v3044, 0.0
    %v3136 = vmax.f32 %v3047, 0.0
    %v3137 = vmax.f32 %v3050, 0.0
    %v3138 = vmax.f32 %v3053, 0.0
    %v3139 = vmax.f32 %v3056, 0.0
    %v3140 = vmax.f32 %v3059, 0.0
    %v3141 = vmax.f32 %v3062, 0.0
    %v3142 = vmax.f32 %v3065, 0.0
    %v3143 = vmax.f32 %v3068, 0.0
    %v3144 = vmax.f32 %v3071, 0.0
    %v3145 = vmax.f32 %v3074, 0.0
    %v3146 = vmax.f32 %v3077, 0.0
    %v3147 = vmax.f32 %v3080, 0.0
    %v3148 = vmax.f32 %v3083, 0.0
    %vm3214 = vcmask 1040384
    %v3215 = vrot.slane 0.0, 7
    %v3216 = vsel %vm3214, %v3215, %v3215
    %v3217 = vrot.slane %v3085, 7
    %v3218 = vrot.slane %v3086, 7
    %v3219 = vsel %vm3214, %v3217, %v3218
    %v3220 = vrot.slane %v3087, 7
    %v3221 = vrot.slane %v3088, 7
    %v3222 = vsel %vm3214, %v3220, %v3221
    %v3223 = vrot.slane %v3089, 7
    %v3224 = vrot.slane %v3090, 7
    %v3225 = vsel %vm3214, %v3223, %v3224
    %v3226 = vrot.slane %v3091, 7
    %v3227 = vrot.slane %v3092, 7
    %v3228 = vsel %vm3214, %v3226, %v3227
    %v3229 = vrot.slane %v3093, 7
    %v3230 = vrot.slane %v3094, 7
    %v3231 = vsel %vm3214, %v3229, %v3230
    %v3232 = vrot.slane %v3095, 7
    %v3233 = vrot.slane %v3096, 7
    %v3234 = vsel %vm3214, %v3232, %v3233
    %v3235 = vrot.slane %v3097, 7
    %v3236 = vrot.slane %v3098, 7
    %v3237 = vsel %vm3214, %v3235, %v3236
    %v3238 = vrot.slane %v3099, 7
    %v3239 = vrot.slane %v3100, 7
    %v3240 = vsel %vm3214, %v3238, %v3239
    %v3241 = vrot.slane %v3101, 7
    %v3242 = vrot.slane %v3102, 7
    %v3243 = vsel %vm3214, %v3241, %v3242
    %v3244 = vrot.slane %v3103, 7
    %v3245 = vrot.slane %v3104, 7
    %v3246 = vsel %vm3214, %v3244, %v3245
    %v3247 = vrot.slane %v3105, 7
    %v3248 = vrot.slane %v3106, 7
    %v3249 = vsel %vm3214, %v3247, %v3248
    %v3250 = vrot.slane %v3107, 7
    %v3251 = vrot.slane %v3108, 7
    %v3252 = vsel %vm3214, %v3250, %v3251
    %v3253 = vrot.slane %v3109, 7
    %v3254 = vrot.slane %v3110, 7
    %v3255 = vsel %vm3214, %v3253, %v3254
    %v3256 = vrot.slane %v3111, 7
    %v3257 = vrot.slane %v3112, 7
    %v3258 = vsel %vm3214, %v3256, %v3257
    %v3259 = vrot.slane %v3113, 7
    %v3260 = vrot.slane %v3114, 7
    %v3261 = vsel %vm3214, %v3259, %v3260
    %v3262 = vrot.slane %v3115, 7
    %v3263 = vrot.slane %v3116, 7
    %v3264 = vsel %vm3214, %v3262, %v3263
    %v3265 = vrot.slane %v3117, 7
    %v3266 = vrot.slane %v3118, 7
    %v3267 = vsel %vm3214, %v3265, %v3266
    %v3268 = vrot.slane %v3119, 7
    %v3269 = vrot.slane %v3120, 7
    %v3270 = vsel %vm3214, %v3268, %v3269
    %v3271 = vrot.slane %v3121, 7
    %v3272 = vrot.slane %v3122, 7
    %v3273 = vsel %vm3214, %v3271, %v3272
    %v3274 = vrot.slane %v3123, 7
    %v3275 = vrot.slane %v3124, 7
    %v3276 = vsel %vm3214, %v3274, %v3275
    %v3277 = vrot.slane %v3125, 7
    %v3278 = vrot.slane %v3126, 7
    %v3279 = vsel %vm3214, %v3277, %v3278
    %v3280 = vrot.slane %v3127, 7
    %v3281 = vrot.slane %v3128, 7
    %v3282 = vsel %vm3214, %v3280, %v3281
    %v3283 = vrot.slane %v3129, 7
    %v3284 = vrot.slane %v3130, 7
    %v3285 = vsel %vm3214, %v3283, %v3284
    %v3286 = vrot.slane %v3131, 7
    %v3287 = vrot.slane %v3132, 7
    %v3288 = vsel %vm3214, %v3286, %v3287
    %v3289 = vrot.slane %v3133, 7
    %v3290 = vrot.slane %v3134, 7
    %v3291 = vsel %vm3214, %v3289, %v3290
    %v3292 = vrot.slane %v3135, 7
    %v3293 = vrot.slane %v3136, 7
    %v3294 = vsel %vm3214, %v3292, %v3293
    %v3295 = vrot.slane %v3137, 7
    %v3296 = vrot.slane %v3138, 7
    %v3297 = vsel %vm3214, %v3295, %v3296
    %v3298 = vrot.slane %v3139, 7
    %v3299 = vrot.slane %v3140, 7
    %v3300 = vsel %vm3214, %v3298, %v3299
    %v3301 = vrot.slane %v3141, 7
    %v3302 = vrot.slane %v3142, 7
    %v3303 = vsel %vm3214, %v3301, %v3302
    %v3304 = vrot.slane %v3143, 7
    %v3305 = vrot.slane %v3144, 7
    %v3306 = vsel %vm3214, %v3304, %v3305
    %v3307 = vrot.slane %v3145, 7
    %v3308 = vrot.slane %v3146, 7
    %v3309 = vsel %vm3214, %v3307, %v3308
    %v3310 = vrot.slane %v3147, 7
    %v3311 = vrot.slane %v3148, 7
    %v3312 = vsel %vm3214, %v3310, %v3311
    %v3409 = vsel %vm3214, 0.0, %v3215
    %v3410 = vsel %vm3214, 0.0, %v3217
    %v3411 = vsel %vm3214, 0.0, %v3220
    %v3412 = vsel %vm3214, 0.0, %v3223
    %v3413 = vsel %vm3214, 0.0, %v3226
    %v3414 = vsel %vm3214, 0.0, %v3229
    %v3415 = vsel %vm3214, 0.0, %v3232
    %v3416 = vsel %vm3214, 0.0, %v3235
    %v3417 = vsel %vm3214, 0.0, %v3238
    %v3418 = vsel %vm3214, 0.0, %v3241
    %v3419 = vsel %vm3214, 0.0, %v3244
    %v3420 = vsel %vm3214, 0.0, %v3247
    %v3421 = vsel %vm3214, 0.0, %v3250
    %v3422 = vsel %vm3214, 0.0, %v3253
    %v3423 = vsel %vm3214, 0.0, %v3256
    %v3424 = vsel %vm3214, 0.0, %v3259
    %v3425 = vsel %vm3214, 0.0, %v3262
    %v3426 = vsel %vm3214, 0.0, %v3265
    %v3427 = vsel %vm3214, 0.0, %v3268
    %v3428 = vsel %vm3214, 0.0, %v3271
    %v3429 = vsel %vm3214, 0.0, %v3274
    %v3430 = vsel %vm3214, 0.0, %v3277
    %v3431 = vsel %vm3214, 0.0, %v3280
    %v3432 = vsel %vm3214, 0.0, %v3283
    %v3433 = vsel %vm3214, 0.0, %v3286
    %v3434 = vsel %vm3214, 0.0, %v3289
    %v3435 = vsel %vm3214, 0.0, %v3292
    %v3436 = vsel %vm3214, 0.0, %v3295
    %v3437 = vsel %vm3214, 0.0, %v3298
    %v3438 = vsel %vm3214, 0.0, %v3301
    %v3439 = vsel %vm3214, 0.0, %v3304
    %v3440 = vsel %vm3214, 0.0, %v3307
    %v3441 = vsel %vm3214, 0.0, %v3310
    %v3442 = vsel %vm3214, %v3215, 0.0
    %v3443 = vsel %vm3214, %v3218, 0.0
    %v3444 = vsel %vm3214, %v3221, 0.0
    %v3445 = vsel %vm3214, %v3224, 0.0
    %v3446 = vsel %vm3214, %v3227, 0.0
    %v3447 = vsel %vm3214, %v3230, 0.0
    %v3448 = vsel %vm3214, %v3233, 0.0
    %v3449 = vsel %vm3214, %v3236, 0.0
    %v3450 = vsel %vm3214, %v3239, 0.0
    %v3451 = vsel %vm3214, %v3242, 0.0
    %v3452 = vsel %vm3214, %v3245, 0.0
    %v3453 = vsel %vm3214, %v3248, 0.0
    %v3454 = vsel %vm3214, %v3251, 0.0
    %v3455 = vsel %vm3214, %v3254, 0.0
    %v3456 = vsel %vm3214, %v3257, 0.0
    %v3457 = vsel %vm3214, %v3260, 0.0
    %v3458 = vsel %vm3214, %v3263, 0.0
    %v3459 = vsel %vm3214, %v3266, 0.0
    %v3460 = vsel %vm3214, %v3269, 0.0
    %v3461 = vsel %vm3214, %v3272, 0.0
    %v3462 = vsel %vm3214, %v3275, 0.0
    %v3463 = vsel %vm3214, %v3278, 0.0
    %v3464 = vsel %vm3214, %v3281, 0.0
    %v3465 = vsel %vm3214, %v3284, 0.0
    %v3466 = vsel %vm3214, %v3287, 0.0
    %v3467 = vsel %vm3214, %v3290, 0.0
    %v3468 = vsel %vm3214, %v3293, 0.0
    %v3469 = vsel %vm3214, %v3296, 0.0
    %v3470 = vsel %vm3214, %v3299, 0.0
    %v3471 = vsel %vm3214, %v3302, 0.0
    %v3472 = vsel %vm3214, %v3305, 0.0
    %v3473 = vsel %vm3214, %v3308, 0.0
    %v3474 = vsel %vm3214, %v3311, 0.0
    %v3537 = vrot.slane %v3409, 1
    %v3538 = vrot.slane %v3216, 1
    %v3539 = vsel %vm240, %v3537, %v3538
    %v3540 = vrot.slane %v3442, 1
    %v3541 = vsel %vm240, %v3538, %v3540
    %v3542 = vrot.slane %v3410, 1
    %v3543 = vrot.slane %v3219, 1
    %v3544 = vsel %vm240, %v3542, %v3543
    %v3545 = vrot.slane %v3443, 1
    %v3546 = vsel %vm240, %v3543, %v3545
    %v3547 = vrot.slane %v3411, 1
    %v3548 = vrot.slane %v3222, 1
    %v3549 = vsel %vm240, %v3547, %v3548
    %v3550 = vrot.slane %v3444, 1
    %v3551 = vsel %vm240, %v3548, %v3550
    %v3552 = vrot.slane %v3412, 1
    %v3553 = vrot.slane %v3225, 1
    %v3554 = vsel %vm240, %v3552, %v3553
    %v3555 = vrot.slane %v3445, 1
    %v3556 = vsel %vm240, %v3553, %v3555
    %v3557 = vrot.slane %v3413, 1
    %v3558 = vrot.slane %v3228, 1
    %v3559 = vsel %vm240, %v3557, %v3558
    %v3560 = vrot.slane %v3446, 1
    %v3561 = vsel %vm240, %v3558, %v3560
    %v3562 = vrot.slane %v3414, 1
    %v3563 = vrot.slane %v3231, 1
    %v3564 = vsel %vm240, %v3562, %v3563
    %v3565 = vrot.slane %v3447, 1
    %v3566 = vsel %vm240, %v3563, %v3565
    %v3567 = vrot.slane %v3415, 1
    %v3568 = vrot.slane %v3234, 1
    %v3569 = vsel %vm240, %v3567, %v3568
    %v3570 = vrot.slane %v3448, 1
    %v3571 = vsel %vm240, %v3568, %v3570
    %v3572 = vrot.slane %v3416, 1
    %v3573 = vrot.slane %v3237, 1
    %v3574 = vsel %vm240, %v3572, %v3573
    %v3575 = vrot.slane %v3449, 1
    %v3576 = vsel %vm240, %v3573, %v3575
    %v3577 = vrot.slane %v3417, 1
    %v3578 = vrot.slane %v3240, 1
    %v3579 = vsel %vm240, %v3577, %v3578
    %v3580 = vrot.slane %v3450, 1
    %v3581 = vsel %vm240, %v3578, %v3580
    %v3582 = vrot.slane %v3418, 1
    %v3583 = vrot.slane %v3243, 1
    %v3584 = vsel %vm240, %v3582, %v3583
    %v3585 = vrot.slane %v3451, 1
    %v3586 = vsel %vm240, %v3583, %v3585
    %v3587 = vrot.slane %v3419, 1
    %v3588 = vrot.slane %v3246, 1
    %v3589 = vsel %vm240, %v3587, %v3588
    %v3590 = vrot.slane %v3452, 1
    %v3591 = vsel %vm240, %v3588, %v3590
    %v3592 = vrot.slane %v3420, 1
    %v3593 = vrot.slane %v3249, 1
    %v3594 = vsel %vm240, %v3592, %v3593
    %v3595 = vrot.slane %v3453, 1
    %v3596 = vsel %vm240, %v3593, %v3595
    %v3597 = vrot.slane %v3421, 1
    %v3598 = vrot.slane %v3252, 1
    %v3599 = vsel %vm240, %v3597, %v3598
    %v3600 = vrot.slane %v3454, 1
    %v3601 = vsel %vm240, %v3598, %v3600
    %v3602 = vrot.slane %v3422, 1
    %v3603 = vrot.slane %v3255, 1
    %v3604 = vsel %vm240, %v3602, %v3603
    %v3605 = vrot.slane %v3455, 1
    %v3606 = vsel %vm240, %v3603, %v3605
    %v3607 = vrot.slane %v3423, 1
    %v3608 = vrot.slane %v3258, 1
    %v3609 = vsel %vm240, %v3607, %v3608
    %v3610 = vrot.slane %v3456, 1
    %v3611 = vsel %vm240, %v3608, %v3610
    %v3612 = vrot.slane %v3424, 1
    %v3613 = vrot.slane %v3261, 1
    %v3614 = vsel %vm240, %v3612, %v3613
    %v3615 = vrot.slane %v3457, 1
    %v3616 = vsel %vm240, %v3613, %v3615
    %v3617 = vrot.slane %v3426, 1
    %v3618 = vrot.slane %v3267, 1
    %v3619 = vsel %vm240, %v3617, %v3618
    %v3620 = vrot.slane %v3459, 1
    %v3621 = vsel %vm240, %v3618, %v3620
    %v3622 = vrot.slane %v3427, 1
    %v3623 = vrot.slane %v3270, 1
    %v3624 = vsel %vm240, %v3622, %v3623
    %v3625 = vrot.slane %v3460, 1
    %v3626 = vsel %vm240, %v3623, %v3625
    %v3627 = vrot.slane %v3428, 1
    %v3628 = vrot.slane %v3273, 1
    %v3629 = vsel %vm240, %v3627, %v3628
    %v3630 = vrot.slane %v3461, 1
    %v3631 = vsel %vm240, %v3628, %v3630
    %v3632 = vrot.slane %v3429, 1
    %v3633 = vrot.slane %v3276, 1
    %v3634 = vsel %vm240, %v3632, %v3633
    %v3635 = vrot.slane %v3462, 1
    %v3636 = vsel %vm240, %v3633, %v3635
    %v3637 = vrot.slane %v3430, 1
    %v3638 = vrot.slane %v3279, 1
    %v3639 = vsel %vm240, %v3637, %v3638
    %v3640 = vrot.slane %v3463, 1
    %v3641 = vsel %vm240, %v3638, %v3640
    %v3642 = vrot.slane %v3431, 1
    %v3643 = vrot.slane %v3282, 1
    %v3644 = vsel %vm240, %v3642, %v3643
    %v3645 = vrot.slane %v3464, 1
    %v3646 = vsel %vm240, %v3643, %v3645
    %v3647 = vrot.slane %v3432, 1
    %v3648 = vrot.slane %v3285, 1
    %v3649 = vsel %vm240, %v3647, %v3648
    %v3650 = vrot.slane %v3465, 1
    %v3651 = vsel %vm240, %v3648, %v3650
    %v3652 = vrot.slane %v3433, 1
    %v3653 = vrot.slane %v3288, 1
    %v3654 = vsel %vm240, %v3652, %v3653
    %v3655 = vrot.slane %v3466, 1
    %v3656 = vsel %vm240, %v3653, %v3655
    %v3657 = vrot.slane %v3434, 1
    %v3658 = vrot.slane %v3291, 1
    %v3659 = vsel %vm240, %v3657, %v3658
    %v3660 = vrot.slane %v3467, 1
    %v3661 = vsel %vm240, %v3658, %v3660
    %v3662 = vrot.slane %v3435, 1
    %v3663 = vrot.slane %v3294, 1
    %v3664 = vsel %vm240, %v3662, %v3663
    %v3665 = vrot.slane %v3468, 1
    %v3666 = vsel %vm240, %v3663, %v3665
    %v3667 = vrot.slane %v3436, 1
    %v3668 = vrot.slane %v3297, 1
    %v3669 = vsel %vm240, %v3667, %v3668
    %v3670 = vrot.slane %v3469, 1
    %v3671 = vsel %vm240, %v3668, %v3670
    %v3672 = vrot.slane %v3437, 1
    %v3673 = vrot.slane %v3300, 1
    %v3674 = vsel %vm240, %v3672, %v3673
    %v3675 = vrot.slane %v3470, 1
    %v3676 = vsel %vm240, %v3673, %v3675
    %v3677 = vrot.slane %v3438, 1
    %v3678 = vrot.slane %v3303, 1
    %v3679 = vsel %vm240, %v3677, %v3678
    %v3680 = vrot.slane %v3471, 1
    %v3681 = vsel %vm240, %v3678, %v3680
    %v3682 = vrot.slane %v3439, 1
    %v3683 = vrot.slane %v3306, 1
    %v3684 = vsel %vm240, %v3682, %v3683
    %v3685 = vrot.slane %v3472, 1
    %v3686 = vsel %vm240, %v3683, %v3685
    %v3687 = vrot.slane %v3440, 1
    %v3688 = vrot.slane %v3309, 1
    %v3689 = vsel %vm240, %v3687, %v3688
    %v3690 = vrot.slane %v3473, 1
    %v3691 = vsel %vm240, %v3688, %v3690
    %v3692 = vrot.slane %v3409, 2
    %v3693 = vrot.slane %v3216, 2
    %v3694 = vsel %vm401, %v3692, %v3693
    %v3695 = vrot.slane %v3442, 2
    %v3696 = vsel %vm401, %v3693, %v3695
    %v3697 = vrot.slane %v3410, 2
    %v3698 = vrot.slane %v3219, 2
    %v3699 = vsel %vm401, %v3697, %v3698
    %v3700 = vrot.slane %v3443, 2
    %v3701 = vsel %vm401, %v3698, %v3700
    %v3702 = vrot.slane %v3411, 2
    %v3703 = vrot.slane %v3222, 2
    %v3704 = vsel %vm401, %v3702, %v3703
    %v3705 = vrot.slane %v3444, 2
    %v3706 = vsel %vm401, %v3703, %v3705
    %v3707 = vrot.slane %v3412, 2
    %v3708 = vrot.slane %v3225, 2
    %v3709 = vsel %vm401, %v3707, %v3708
    %v3710 = vrot.slane %v3445, 2
    %v3711 = vsel %vm401, %v3708, %v3710
    %v3712 = vrot.slane %v3413, 2
    %v3713 = vrot.slane %v3228, 2
    %v3714 = vsel %vm401, %v3712, %v3713
    %v3715 = vrot.slane %v3446, 2
    %v3716 = vsel %vm401, %v3713, %v3715
    %v3717 = vrot.slane %v3414, 2
    %v3718 = vrot.slane %v3231, 2
    %v3719 = vsel %vm401, %v3717, %v3718
    %v3720 = vrot.slane %v3447, 2
    %v3721 = vsel %vm401, %v3718, %v3720
    %v3722 = vrot.slane %v3415, 2
    %v3723 = vrot.slane %v3234, 2
    %v3724 = vsel %vm401, %v3722, %v3723
    %v3725 = vrot.slane %v3448, 2
    %v3726 = vsel %vm401, %v3723, %v3725
    %v3727 = vrot.slane %v3416, 2
    %v3728 = vrot.slane %v3237, 2
    %v3729 = vsel %vm401, %v3727, %v3728
    %v3730 = vrot.slane %v3449, 2
    %v3731 = vsel %vm401, %v3728, %v3730
    %v3732 = vrot.slane %v3417, 2
    %v3733 = vrot.slane %v3240, 2
    %v3734 = vsel %vm401, %v3732, %v3733
    %v3735 = vrot.slane %v3450, 2
    %v3736 = vsel %vm401, %v3733, %v3735
    %v3737 = vrot.slane %v3418, 2
    %v3738 = vrot.slane %v3243, 2
    %v3739 = vsel %vm401, %v3737, %v3738
    %v3740 = vrot.slane %v3451, 2
    %v3741 = vsel %vm401, %v3738, %v3740
    %v3742 = vrot.slane %v3419, 2
    %v3743 = vrot.slane %v3246, 2
    %v3744 = vsel %vm401, %v3742, %v3743
    %v3745 = vrot.slane %v3452, 2
    %v3746 = vsel %vm401, %v3743, %v3745
    %v3747 = vrot.slane %v3420, 2
    %v3748 = vrot.slane %v3249, 2
    %v3749 = vsel %vm401, %v3747, %v3748
    %v3750 = vrot.slane %v3453, 2
    %v3751 = vsel %vm401, %v3748, %v3750
    %v3752 = vrot.slane %v3421, 2
    %v3753 = vrot.slane %v3252, 2
    %v3754 = vsel %vm401, %v3752, %v3753
    %v3755 = vrot.slane %v3454, 2
    %v3756 = vsel %vm401, %v3753, %v3755
    %v3757 = vrot.slane %v3422, 2
    %v3758 = vrot.slane %v3255, 2
    %v3759 = vsel %vm401, %v3757, %v3758
    %v3760 = vrot.slane %v3455, 2
    %v3761 = vsel %vm401, %v3758, %v3760
    %v3762 = vrot.slane %v3423, 2
    %v3763 = vrot.slane %v3258, 2
    %v3764 = vsel %vm401, %v3762, %v3763
    %v3765 = vrot.slane %v3456, 2
    %v3766 = vsel %vm401, %v3763, %v3765
    %v3767 = vrot.slane %v3424, 2
    %v3768 = vrot.slane %v3261, 2
    %v3769 = vsel %vm401, %v3767, %v3768
    %v3770 = vrot.slane %v3457, 2
    %v3771 = vsel %vm401, %v3768, %v3770
    %v3772 = vrot.slane %v3426, 2
    %v3773 = vrot.slane %v3267, 2
    %v3774 = vsel %vm401, %v3772, %v3773
    %v3775 = vrot.slane %v3459, 2
    %v3776 = vsel %vm401, %v3773, %v3775
    %v3777 = vrot.slane %v3427, 2
    %v3778 = vrot.slane %v3270, 2
    %v3779 = vsel %vm401, %v3777, %v3778
    %v3780 = vrot.slane %v3460, 2
    %v3781 = vsel %vm401, %v3778, %v3780
    %v3782 = vrot.slane %v3428, 2
    %v3783 = vrot.slane %v3273, 2
    %v3784 = vsel %vm401, %v3782, %v3783
    %v3785 = vrot.slane %v3461, 2
    %v3786 = vsel %vm401, %v3783, %v3785
    %v3787 = vrot.slane %v3429, 2
    %v3788 = vrot.slane %v3276, 2
    %v3789 = vsel %vm401, %v3787, %v3788
    %v3790 = vrot.slane %v3462, 2
    %v3791 = vsel %vm401, %v3788, %v3790
    %v3792 = vrot.slane %v3430, 2
    %v3793 = vrot.slane %v3279, 2
    %v3794 = vsel %vm401, %v3792, %v3793
    %v3795 = vrot.slane %v3463, 2
    %v3796 = vsel %vm401, %v3793, %v3795
    %v3797 = vrot.slane %v3431, 2
    %v3798 = vrot.slane %v3282, 2
    %v3799 = vsel %vm401, %v3797, %v3798
    %v3800 = vrot.slane %v3464, 2
    %v3801 = vsel %vm401, %v3798, %v3800
    %v3802 = vrot.slane %v3432, 2
    %v3803 = vrot.slane %v3285, 2
    %v3804 = vsel %vm401, %v3802, %v3803
    %v3805 = vrot.slane %v3465, 2
    %v3806 = vsel %vm401, %v3803, %v3805
    %v3807 = vrot.slane %v3433, 2
    %v3808 = vrot.slane %v3288, 2
    %v3809 = vsel %vm401, %v3807, %v3808
    %v3810 = vrot.slane %v3466, 2
    %v3811 = vsel %vm401, %v3808, %v3810
    %v3812 = vrot.slane %v3434, 2
    %v3813 = vrot.slane %v3291, 2
    %v3814 = vsel %vm401, %v3812, %v3813
    %v3815 = vrot.slane %v3467, 2
    %v3816 = vsel %vm401, %v3813, %v3815
    %v3817 = vrot.slane %v3435, 2
    %v3818 = vrot.slane %v3294, 2
    %v3819 = vsel %vm401, %v3817, %v3818
    %v3820 = vrot.slane %v3468, 2
    %v3821 = vsel %vm401, %v3818, %v3820
    %v3822 = vrot.slane %v3436, 2
    %v3823 = vrot.slane %v3297, 2
    %v3824 = vsel %vm401, %v3822, %v3823
    %v3825 = vrot.slane %v3469, 2
    %v3826 = vsel %vm401, %v3823, %v3825
    %v3827 = vrot.slane %v3437, 2
    %v3828 = vrot.slane %v3300, 2
    %v3829 = vsel %vm401, %v3827, %v3828
    %v3830 = vrot.slane %v3470, 2
    %v3831 = vsel %vm401, %v3828, %v3830
    %v3832 = vrot.slane %v3438, 2
    %v3833 = vrot.slane %v3303, 2
    %v3834 = vsel %vm401, %v3832, %v3833
    %v3835 = vrot.slane %v3471, 2
    %v3836 = vsel %vm401, %v3833, %v3835
    %v3837 = vrot.slane %v3439, 2
    %v3838 = vrot.slane %v3306, 2
    %v3839 = vsel %vm401, %v3837, %v3838
    %v3840 = vrot.slane %v3472, 2
    %v3841 = vsel %vm401, %v3838, %v3840
    %v3842 = vrot.slane %v3440, 2
    %v3843 = vrot.slane %v3309, 2
    %v3844 = vsel %vm401, %v3842, %v3843
    %v3845 = vrot.slane %v3473, 2
    %v3846 = vsel %vm401, %v3843, %v3845
    %v3851 = vrot.slane %v3425, 1
    %v3852 = vrot.slane %v3264, 1
    %v3853 = vsel %vm240, %v3851, %v3852
    %v3854 = vrot.slane %v3458, 1
    %v3855 = vsel %vm240, %v3852, %v3854
    %v3856 = vrot.slane %v3441, 1
    %v3857 = vrot.slane %v3312, 1
    %v3858 = vsel %vm240, %v3856, %v3857
    %v3859 = vrot.slane %v3474, 1
    %v3860 = vsel %vm240, %v3857, %v3859
    %v3861 = vrot.slane %v3425, 2
    %v3862 = vrot.slane %v3264, 2
    %v3863 = vsel %vm401, %v3861, %v3862
    %v3864 = vrot.slane %v3458, 2
    %v3865 = vsel %vm401, %v3862, %v3864
    %v3866 = vrot.slane %v3441, 2
    %v3867 = vrot.slane %v3312, 2
    %v3868 = vsel %vm401, %v3866, %v3867
    %v3869 = vrot.slane %v3474, 2
    %v3870 = vsel %vm401, %v3867, %v3869
    %3871 = vrot.lane.b32.xlu0 %v3539, 8
    %v3872 = vpop.permute.xlu0 %3871
    %3873 = vrot.lane.b32.xlu0 %v3541, 8
    %v3874 = vpop.permute.xlu0 %3873
    %3875 = vrot.lane.b32.xlu0 %v3544, 8
    %v3876 = vpop.permute.xlu0 %3875
    %3877 = vrot.lane.b32.xlu0 %v3546, 8
    %v3878 = vpop.permute.xlu0 %3877
    %3879 = vrot.lane.b32.xlu0 %v3549, 8
    %v3880 = vpop.permute.xlu0 %3879
    %3881 = vrot.lane.b32.xlu0 %v3551, 8
    %v3882 = vpop.permute.xlu0 %3881
    %3883 = vrot.lane.b32.xlu0 %v3554, 8
    %v3884 = vpop.permute.xlu0 %3883
    %3885 = vrot.lane.b32.xlu0 %v3556, 8
    %v3886 = vpop.permute.xlu0 %3885
    %3887 = vrot.lane.b32.xlu0 %v3559, 8
    %v3888 = vpop.permute.xlu0 %3887
    %3889 = vrot.lane.b32.xlu0 %v3561, 8
    %v3890 = vpop.permute.xlu0 %3889
    %3891 = vrot.lane.b32.xlu0 %v3564, 8
    %v3892 = vpop.permute.xlu0 %3891
    %3893 = vrot.lane.b32.xlu0 %v3566, 8
    %v3894 = vpop.permute.xlu0 %3893
    %3895 = vrot.lane.b32.xlu0 %v3569, 8
    %v3896 = vpop.permute.xlu0 %3895
    %3897 = vrot.lane.b32.xlu0 %v3571, 8
    %v3898 = vpop.permute.xlu0 %3897
    %3899 = vrot.lane.b32.xlu0 %v3574, 8
    %v3900 = vpop.permute.xlu0 %3899
    %3901 = vrot.lane.b32.xlu0 %v3576, 8
    %v3902 = vpop.permute.xlu0 %3901
    %3903 = vrot.lane.b32.xlu0 %v3579, 8
    %v3904 = vpop.permute.xlu0 %3903
    %3905 = vrot.lane.b32.xlu0 %v3581, 8
    %v3906 = vpop.permute.xlu0 %3905
    %3907 = vrot.lane.b32.xlu0 %v3584, 8
    %v3908 = vpop.permute.xlu0 %3907
    %3909 = vrot.lane.b32.xlu0 %v3586, 8
    %v3910 = vpop.permute.xlu0 %3909
    %3911 = vrot.lane.b32.xlu0 %v3589, 8
    %v3912 = vpop.permute.xlu0 %3911
    %3913 = vrot.lane.b32.xlu0 %v3591, 8
    %v3914 = vpop.permute.xlu0 %3913
    %3915 = vrot.lane.b32.xlu0 %v3594, 8
    %v3916 = vpop.permute.xlu0 %3915
    %3917 = vrot.lane.b32.xlu0 %v3596, 8
    %v3918 = vpop.permute.xlu0 %3917
    %3919 = vrot.lane.b32.xlu0 %v3599, 8
    %v3920 = vpop.permute.xlu0 %3919
    %3921 = vrot.lane.b32.xlu0 %v3601, 8
    %v3922 = vpop.permute.xlu0 %3921
    %3923 = vrot.lane.b32.xlu0 %v3604, 8
    %v3924 = vpop.permute.xlu0 %3923
    %3925 = vrot.lane.b32.xlu0 %v3606, 8
    %v3926 = vpop.permute.xlu0 %3925
    %3927 = vrot.lane.b32.xlu0 %v3609, 8
    %v3928 = vpop.permute.xlu0 %3927
    %3929 = vrot.lane.b32.xlu0 %v3611, 8
    %v3930 = vpop.permute.xlu0 %3929
    %3931 = vrot.lane.b32.xlu0 %v3614, 8
    %v3932 = vpop.permute.xlu0 %3931
    %3933 = vrot.lane.b32.xlu0 %v3616, 8
    %v3934 = vpop.permute.xlu0 %3933
    %3935 = vrot.lane.b32.xlu0 %v3619, 8
    %v3936 = vpop.permute.xlu0 %3935
    %3937 = vrot.lane.b32.xlu0 %v3621, 8
    %v3938 = vpop.permute.xlu0 %3937
    %3939 = vrot.lane.b32.xlu0 %v3624, 8
    %v3940 = vpop.permute.xlu0 %3939
    %3941 = vrot.lane.b32.xlu0 %v3626, 8
    %v3942 = vpop.permute.xlu0 %3941
    %3943 = vrot.lane.b32.xlu0 %v3629, 8
    %v3944 = vpop.permute.xlu0 %3943
    %3945 = vrot.lane.b32.xlu0 %v3631, 8
    %v3946 = vpop.permute.xlu0 %3945
    %3947 = vrot.lane.b32.xlu0 %v3634, 8
    %v3948 = vpop.permute.xlu0 %3947
    %3949 = vrot.lane.b32.xlu0 %v3636, 8
    %v3950 = vpop.permute.xlu0 %3949
    %3951 = vrot.lane.b32.xlu0 %v3639, 8
    %v3952 = vpop.permute.xlu0 %3951
    %3953 = vrot.lane.b32.xlu0 %v3641, 8
    %v3954 = vpop.permute.xlu0 %3953
    %3955 = vrot.lane.b32.xlu0 %v3644, 8
    %v3956 = vpop.permute.xlu0 %3955
    %3957 = vrot.lane.b32.xlu0 %v3646, 8
    %v3958 = vpop.permute.xlu0 %3957
    %3959 = vrot.lane.b32.xlu0 %v3649, 8
    %v3960 = vpop.permute.xlu0 %3959
    %3961 = vrot.lane.b32.xlu0 %v3651, 8
    %v3962 = vpop.permute.xlu0 %3961
    %3963 = vrot.lane.b32.xlu0 %v3654, 8
    %v3964 = vpop.permute.xlu0 %3963
    %3965 = vrot.lane.b32.xlu0 %v3656, 8
    %v3966 = vpop.permute.xlu0 %3965
    %3967 = vrot.lane.b32.xlu0 %v3659, 8
    %v3968 = vpop.permute.xlu0 %3967
    %3969 = vrot.lane.b32.xlu0 %v3661, 8
    %v3970 = vpop.permute.xlu0 %3969
    %3971 = vrot.lane.b32.xlu0 %v3664, 8
    %v3972 = vpop.permute.xlu0 %3971
    %3973 = vrot.lane.b32.xlu0 %v3666, 8
    %v3974 = vpop.permute.xlu0 %3973
    %3975 = vrot.lane.b32.xlu0 %v3669, 8
    %v3976 = vpop.permute.xlu0 %3975
    %3977 = vrot.lane.b32.xlu0 %v3671, 8
    %v3978 = vpop.permute.xlu0 %3977
    %3979 = vrot.lane.b32.xlu0 %v3674, 8
    %v3980 = vpop.permute.xlu0 %3979
    %3981 = vrot.lane.b32.xlu0 %v3676, 8
    %v3982 = vpop.permute.xlu0 %3981
    %3983 = vrot.lane.b32.xlu0 %v3679, 8
    %v3984 = vpop.permute.xlu0 %3983
    %3985 = vrot.lane.b32.xlu0 %v3681, 8
    %v3986 = vpop.permute.xlu0 %3985
    %3987 = vrot.lane.b32.xlu0 %v3684, 8
    %v3988 = vpop.permute.xlu0 %3987
    %3989 = vrot.lane.b32.xlu0 %v3686, 8
    %v3990 = vpop.permute.xlu0 %3989
    %3991 = vrot.lane.b32.xlu0 %v3689, 8
    %v3992 = vpop.permute.xlu0 %3991
    %3993 = vrot.lane.b32.xlu0 %v3691, 8
    %v3994 = vpop.permute.xlu0 %3993
    %4057 = vrot.lane.b32.xlu0 %v3694, 16
    %v4058 = vpop.permute.xlu0 %4057
    %4059 = vrot.lane.b32.xlu0 %v3696, 16
    %v4060 = vpop.permute.xlu0 %4059
    %4061 = vrot.lane.b32.xlu0 %v3699, 16
    %v4062 = vpop.permute.xlu0 %4061
    %4063 = vrot.lane.b32.xlu0 %v3701, 16
    %v4064 = vpop.permute.xlu0 %4063
    %4065 = vrot.lane.b32.xlu0 %v3704, 16
    %v4066 = vpop.permute.xlu0 %4065
    %4067 = vrot.lane.b32.xlu0 %v3706, 16
    %v4068 = vpop.permute.xlu0 %4067
    %4069 = vrot.lane.b32.xlu0 %v3709, 16
    %v4070 = vpop.permute.xlu0 %4069
    %4071 = vrot.lane.b32.xlu0 %v3711, 16
    %v4072 = vpop.permute.xlu0 %4071
    %4073 = vrot.lane.b32.xlu0 %v3714, 16
    %v4074 = vpop.permute.xlu0 %4073
    %4075 = vrot.lane.b32.xlu0 %v3716, 16
    %v4076 = vpop.permute.xlu0 %4075
    %4077 = vrot.lane.b32.xlu0 %v3719, 16
    %v4078 = vpop.permute.xlu0 %4077
    %4079 = vrot.lane.b32.xlu0 %v3721, 16
    %v4080 = vpop.permute.xlu0 %4079
    %4081 = vrot.lane.b32.xlu0 %v3724, 16
    %v4082 = vpop.permute.xlu0 %4081
    %4083 = vrot.lane.b32.xlu0 %v3726, 16
    %v4084 = vpop.permute.xlu0 %4083
    %4085 = vrot.lane.b32.xlu0 %v3729, 16
    %v4086 = vpop.permute.xlu0 %4085
    %4087 = vrot.lane.b32.xlu0 %v3731, 16
    %v4088 = vpop.permute.xlu0 %4087
    %4089 = vrot.lane.b32.xlu0 %v3734, 16
    %v4090 = vpop.permute.xlu0 %4089
    %4091 = vrot.lane.b32.xlu0 %v3736, 16
    %v4092 = vpop.permute.xlu0 %4091
    %4093 = vrot.lane.b32.xlu0 %v3739, 16
    %v4094 = vpop.permute.xlu0 %4093
    %4095 = vrot.lane.b32.xlu0 %v3741, 16
    %v4096 = vpop.permute.xlu0 %4095
    %4097 = vrot.lane.b32.xlu0 %v3744, 16
    %v4098 = vpop.permute.xlu0 %4097
    %4099 = vrot.lane.b32.xlu0 %v3746, 16
    %v4100 = vpop.permute.xlu0 %4099
    %4101 = vrot.lane.b32.xlu0 %v3749, 16
    %v4102 = vpop.permute.xlu0 %4101
    %4103 = vrot.lane.b32.xlu0 %v3751, 16
    %v4104 = vpop.permute.xlu0 %4103
    %4105 = vrot.lane.b32.xlu0 %v3754, 16
    %v4106 = vpop.permute.xlu0 %4105
    %4107 = vrot.lane.b32.xlu0 %v3756, 16
    %v4108 = vpop.permute.xlu0 %4107
    %4109 = vrot.lane.b32.xlu0 %v3759, 16
    %v4110 = vpop.permute.xlu0 %4109
    %4111 = vrot.lane.b32.xlu0 %v3761, 16
    %v4112 = vpop.permute.xlu0 %4111
    %4113 = vrot.lane.b32.xlu0 %v3764, 16
    %v4114 = vpop.permute.xlu0 %4113
    %4115 = vrot.lane.b32.xlu0 %v3766, 16
    %v4116 = vpop.permute.xlu0 %4115
    %4117 = vrot.lane.b32.xlu0 %v3769, 16
    %v4118 = vpop.permute.xlu0 %4117
    %4119 = vrot.lane.b32.xlu0 %v3771, 16
    %v4120 = vpop.permute.xlu0 %4119
    %4121 = vrot.lane.b32.xlu0 %v3774, 16
    %v4122 = vpop.permute.xlu0 %4121
    %4123 = vrot.lane.b32.xlu0 %v3776, 16
    %v4124 = vpop.permute.xlu0 %4123
    %4125 = vrot.lane.b32.xlu0 %v3779, 16
    %v4126 = vpop.permute.xlu0 %4125
    %4127 = vrot.lane.b32.xlu0 %v3781, 16
    %v4128 = vpop.permute.xlu0 %4127
    %4129 = vrot.lane.b32.xlu0 %v3784, 16
    %v4130 = vpop.permute.xlu0 %4129
    %4131 = vrot.lane.b32.xlu0 %v3786, 16
    %v4132 = vpop.permute.xlu0 %4131
    %4133 = vrot.lane.b32.xlu0 %v3789, 16
    %v4134 = vpop.permute.xlu0 %4133
    %4135 = vrot.lane.b32.xlu0 %v3791, 16
    %v4136 = vpop.permute.xlu0 %4135
    %4137 = vrot.lane.b32.xlu0 %v3794, 16
    %v4138 = vpop.permute.xlu0 %4137
    %4139 = vrot.lane.b32.xlu0 %v3796, 16
    %v4140 = vpop.permute.xlu0 %4139
    %4141 = vrot.lane.b32.xlu0 %v3799, 16
    %v4142 = vpop.permute.xlu0 %4141
    %4143 = vrot.lane.b32.xlu0 %v3801, 16
    %v4144 = vpop.permute.xlu0 %4143
    %4145 = vrot.lane.b32.xlu0 %v3804, 16
    %v4146 = vpop.permute.xlu0 %4145
    %4147 = vrot.lane.b32.xlu0 %v3806, 16
    %v4148 = vpop.permute.xlu0 %4147
    %4149 = vrot.lane.b32.xlu0 %v3809, 16
    %v4150 = vpop.permute.xlu0 %4149
    %4151 = vrot.lane.b32.xlu0 %v3811, 16
    %v4152 = vpop.permute.xlu0 %4151
    %4153 = vrot.lane.b32.xlu0 %v3814, 16
    %v4154 = vpop.permute.xlu0 %4153
    %4155 = vrot.lane.b32.xlu0 %v3816, 16
    %v4156 = vpop.permute.xlu0 %4155
    %4157 = vrot.lane.b32.xlu0 %v3819, 16
    %v4158 = vpop.permute.xlu0 %4157
    %4159 = vrot.lane.b32.xlu0 %v3821, 16
    %v4160 = vpop.permute.xlu0 %4159
    %4161 = vrot.lane.b32.xlu0 %v3824, 16
    %v4162 = vpop.permute.xlu0 %4161
    %4163 = vrot.lane.b32.xlu0 %v3826, 16
    %v4164 = vpop.permute.xlu0 %4163
    %4165 = vrot.lane.b32.xlu0 %v3829, 16
    %v4166 = vpop.permute.xlu0 %4165
    %4167 = vrot.lane.b32.xlu0 %v3831, 16
    %v4168 = vpop.permute.xlu0 %4167
    %4169 = vrot.lane.b32.xlu0 %v3834, 16
    %v4170 = vpop.permute.xlu0 %4169
    %4171 = vrot.lane.b32.xlu0 %v3836, 16
    %v4172 = vpop.permute.xlu0 %4171
    %4173 = vrot.lane.b32.xlu0 %v3839, 16
    %v4174 = vpop.permute.xlu0 %4173
    %4175 = vrot.lane.b32.xlu0 %v3841, 16
    %v4176 = vpop.permute.xlu0 %4175
    %4177 = vrot.lane.b32.xlu0 %v3844, 16
    %v4178 = vpop.permute.xlu0 %4177
    %4179 = vrot.lane.b32.xlu0 %v3846, 16
    %v4180 = vpop.permute.xlu0 %4179
    %4243 = vrot.lane.b32.xlu0 %v3410, 24
    %v4244 = vpop.permute.xlu0 %4243
    %4245 = vrot.lane.b32.xlu0 %v3219, 24
    %v4246 = vpop.permute.xlu0 %4245
    %4247 = vrot.lane.b32.xlu0 %v3411, 24
    %v4248 = vpop.permute.xlu0 %4247
    %4249 = vrot.lane.b32.xlu0 %v3222, 24
    %v4250 = vpop.permute.xlu0 %4249
    %4251 = vrot.lane.b32.xlu0 %v3412, 24
    %v4252 = vpop.permute.xlu0 %4251
    %4253 = vrot.lane.b32.xlu0 %v3225, 24
    %v4254 = vpop.permute.xlu0 %4253
    %4255 = vrot.lane.b32.xlu0 %v3413, 24
    %v4256 = vpop.permute.xlu0 %4255
    %4257 = vrot.lane.b32.xlu0 %v3228, 24
    %v4258 = vpop.permute.xlu0 %4257
    %4259 = vrot.lane.b32.xlu0 %v3414, 24
    %v4260 = vpop.permute.xlu0 %4259
    %4261 = vrot.lane.b32.xlu0 %v3231, 24
    %v4262 = vpop.permute.xlu0 %4261
    %4263 = vrot.lane.b32.xlu0 %v3415, 24
    %v4264 = vpop.permute.xlu0 %4263
    %4265 = vrot.lane.b32.xlu0 %v3234, 24
    %v4266 = vpop.permute.xlu0 %4265
    %4267 = vrot.lane.b32.xlu0 %v3416, 24
    %v4268 = vpop.permute.xlu0 %4267
    %4269 = vrot.lane.b32.xlu0 %v3237, 24
    %v4270 = vpop.permute.xlu0 %4269
    %4271 = vrot.lane.b32.xlu0 %v3417, 24
    %v4272 = vpop.permute.xlu0 %4271
    %4273 = vrot.lane.b32.xlu0 %v3240, 24
    %v4274 = vpop.permute.xlu0 %4273
    %4275 = vrot.lane.b32.xlu0 %v3418, 24
    %v4276 = vpop.permute.xlu0 %4275
    %4277 = vrot.lane.b32.xlu0 %v3243, 24
    %v4278 = vpop.permute.xlu0 %4277
    %4279 = vrot.lane.b32.xlu0 %v3419, 24
    %v4280 = vpop.permute.xlu0 %4279
    %4281 = vrot.lane.b32.xlu0 %v3246, 24
    %v4282 = vpop.permute.xlu0 %4281
    %4283 = vrot.lane.b32.xlu0 %v3420, 24
    %v4284 = vpop.permute.xlu0 %4283
    %4285 = vrot.lane.b32.xlu0 %v3249, 24
    %v4286 = vpop.permute.xlu0 %4285
    %4287 = vrot.lane.b32.xlu0 %v3421, 24
    %v4288 = vpop.permute.xlu0 %4287
    %4289 = vrot.lane.b32.xlu0 %v3252, 24
    %v4290 = vpop.permute.xlu0 %4289
    %4291 = vrot.lane.b32.xlu0 %v3422, 24
    %v4292 = vpop.permute.xlu0 %4291
    %4293 = vrot.lane.b32.xlu0 %v3255, 24
    %v4294 = vpop.permute.xlu0 %4293
    %4295 = vrot.lane.b32.xlu0 %v3423, 24
    %v4296 = vpop.permute.xlu0 %4295
    %4297 = vrot.lane.b32.xlu0 %v3258, 24
    %v4298 = vpop.permute.xlu0 %4297
    %4299 = vrot.lane.b32.xlu0 %v3424, 24
    %v4300 = vpop.permute.xlu0 %4299
    %4301 = vrot.lane.b32.xlu0 %v3261, 24
    %v4302 = vpop.permute.xlu0 %4301
    %4303 = vrot.lane.b32.xlu0 %v3425, 24
    %v4304 = vpop.permute.xlu0 %4303
    %4305 = vrot.lane.b32.xlu0 %v3264, 24
    %v4306 = vpop.permute.xlu0 %4305
    %4307 = vrot.lane.b32.xlu0 %v3426, 24
    %v4308 = vpop.permute.xlu0 %4307
    %4309 = vrot.lane.b32.xlu0 %v3267, 24
    %v4310 = vpop.permute.xlu0 %4309
    %4311 = vrot.lane.b32.xlu0 %v3427, 24
    %v4312 = vpop.permute.xlu0 %4311
    %4313 = vrot.lane.b32.xlu0 %v3270, 24
    %v4314 = vpop.permute.xlu0 %4313
    %4315 = vrot.lane.b32.xlu0 %v3428, 24
    %v4316 = vpop.permute.xlu0 %4315
    %4317 = vrot.lane.b32.xlu0 %v3273, 24
    %v4318 = vpop.permute.xlu0 %4317
    %4319 = vrot.lane.b32.xlu0 %v3429, 24
    %v4320 = vpop.permute.xlu0 %4319
    %4321 = vrot.lane.b32.xlu0 %v3276, 24
    %v4322 = vpop.permute.xlu0 %4321
    %4323 = vrot.lane.b32.xlu0 %v3430, 24
    %v4324 = vpop.permute.xlu0 %4323
    %4325 = vrot.lane.b32.xlu0 %v3279, 24
    %v4326 = vpop.permute.xlu0 %4325
    %4327 = vrot.lane.b32.xlu0 %v3431, 24
    %v4328 = vpop.permute.xlu0 %4327
    %4329 = vrot.lane.b32.xlu0 %v3282, 24
    %v4330 = vpop.permute.xlu0 %4329
    %4331 = vrot.lane.b32.xlu0 %v3432, 24
    %v4332 = vpop.permute.xlu0 %4331
    %4333 = vrot.lane.b32.xlu0 %v3285, 24
    %v4334 = vpop.permute.xlu0 %4333
    %4335 = vrot.lane.b32.xlu0 %v3433, 24
    %v4336 = vpop.permute.xlu0 %4335
    %4337 = vrot.lane.b32.xlu0 %v3288, 24
    %v4338 = vpop.permute.xlu0 %4337
    %4339 = vrot.lane.b32.xlu0 %v3434, 24
    %v4340 = vpop.permute.xlu0 %4339
    %4341 = vrot.lane.b32.xlu0 %v3291, 24
    %v4342 = vpop.permute.xlu0 %4341
    %4343 = vrot.lane.b32.xlu0 %v3435, 24
    %v4344 = vpop.permute.xlu0 %4343
    %4345 = vrot.lane.b32.xlu0 %v3294, 24
    %v4346 = vpop.permute.xlu0 %4345
    %4347 = vrot.lane.b32.xlu0 %v3436, 24
    %v4348 = vpop.permute.xlu0 %4347
    %4349 = vrot.lane.b32.xlu0 %v3297, 24
    %v4350 = vpop.permute.xlu0 %4349
    %4351 = vrot.lane.b32.xlu0 %v3437, 24
    %v4352 = vpop.permute.xlu0 %4351
    %4353 = vrot.lane.b32.xlu0 %v3300, 24
    %v4354 = vpop.permute.xlu0 %4353
    %4355 = vrot.lane.b32.xlu0 %v3438, 24
    %v4356 = vpop.permute.xlu0 %4355
    %4357 = vrot.lane.b32.xlu0 %v3303, 24
    %v4358 = vpop.permute.xlu0 %4357
    %4359 = vrot.lane.b32.xlu0 %v3439, 24
    %v4360 = vpop.permute.xlu0 %4359
    %4361 = vrot.lane.b32.xlu0 %v3306, 24
    %v4362 = vpop.permute.xlu0 %4361
    %4363 = vrot.lane.b32.xlu0 %v3440, 24
    %v4364 = vpop.permute.xlu0 %4363
    %4365 = vrot.lane.b32.xlu0 %v3309, 24
    %v4366 = vpop.permute.xlu0 %4365
    %4367 = vrot.lane.b32.xlu0 %v3441, 24
    %v4368 = vpop.permute.xlu0 %4367
    %4369 = vrot.lane.b32.xlu0 %v3312, 24
    %v4370 = vpop.permute.xlu0 %4369
    %4435 = vrot.lane.b32.xlu0 %v3544, 32
    %v4436 = vpop.permute.xlu0 %4435
    %4437 = vrot.lane.b32.xlu0 %v3546, 32
    %v4438 = vpop.permute.xlu0 %4437
    %4439 = vrot.lane.b32.xlu0 %v3549, 32
    %v4440 = vpop.permute.xlu0 %4439
    %4441 = vrot.lane.b32.xlu0 %v3551, 32
    %v4442 = vpop.permute.xlu0 %4441
    %4443 = vrot.lane.b32.xlu0 %v3554, 32
    %v4444 = vpop.permute.xlu0 %4443
    %4445 = vrot.lane.b32.xlu0 %v3556, 32
    %v4446 = vpop.permute.xlu0 %4445
    %4447 = vrot.lane.b32.xlu0 %v3559, 32
    %v4448 = vpop.permute.xlu0 %4447
    %4449 = vrot.lane.b32.xlu0 %v3561, 32
    %v4450 = vpop.permute.xlu0 %4449
    %4451 = vrot.lane.b32.xlu0 %v3564, 32
    %v4452 = vpop.permute.xlu0 %4451
    %4453 = vrot.lane.b32.xlu0 %v3566, 32
    %v4454 = vpop.permute.xlu0 %4453
    %4455 = vrot.lane.b32.xlu0 %v3569, 32
    %v4456 = vpop.permute.xlu0 %4455
    %4457 = vrot.lane.b32.xlu0 %v3571, 32
    %v4458 = vpop.permute.xlu0 %4457
    %4459 = vrot.lane.b32.xlu0 %v3574, 32
    %v4460 = vpop.permute.xlu0 %4459
    %4461 = vrot.lane.b32.xlu0 %v3576, 32
    %v4462 = vpop.permute.xlu0 %4461
    %4463 = vrot.lane.b32.xlu0 %v3579, 32
    %v4464 = vpop.permute.xlu0 %4463
    %4465 = vrot.lane.b32.xlu0 %v3581, 32
    %v4466 = vpop.permute.xlu0 %4465
    %4467 = vrot.lane.b32.xlu0 %v3584, 32
    %v4468 = vpop.permute.xlu0 %4467
    %4469 = vrot.lane.b32.xlu0 %v3586, 32
    %v4470 = vpop.permute.xlu0 %4469
    %4471 = vrot.lane.b32.xlu0 %v3589, 32
    %v4472 = vpop.permute.xlu0 %4471
    %4473 = vrot.lane.b32.xlu0 %v3591, 32
    %v4474 = vpop.permute.xlu0 %4473
    %4475 = vrot.lane.b32.xlu0 %v3594, 32
    %v4476 = vpop.permute.xlu0 %4475
    %4477 = vrot.lane.b32.xlu0 %v3596, 32
    %v4478 = vpop.permute.xlu0 %4477
    %4479 = vrot.lane.b32.xlu0 %v3599, 32
    %v4480 = vpop.permute.xlu0 %4479
    %4481 = vrot.lane.b32.xlu0 %v3601, 32
    %v4482 = vpop.permute.xlu0 %4481
    %4483 = vrot.lane.b32.xlu0 %v3604, 32
    %v4484 = vpop.permute.xlu0 %4483
    %4485 = vrot.lane.b32.xlu0 %v3606, 32
    %v4486 = vpop.permute.xlu0 %4485
    %4487 = vrot.lane.b32.xlu0 %v3609, 32
    %v4488 = vpop.permute.xlu0 %4487
    %4489 = vrot.lane.b32.xlu0 %v3611, 32
    %v4490 = vpop.permute.xlu0 %4489
    %4491 = vrot.lane.b32.xlu0 %v3614, 32
    %v4492 = vpop.permute.xlu0 %4491
    %4493 = vrot.lane.b32.xlu0 %v3616, 32
    %v4494 = vpop.permute.xlu0 %4493
    %4495 = vrot.lane.b32.xlu0 %v3853, 32
    %v4496 = vpop.permute.xlu0 %4495
    %4497 = vrot.lane.b32.xlu0 %v3855, 32
    %v4498 = vpop.permute.xlu0 %4497
    %4499 = vrot.lane.b32.xlu0 %v3619, 32
    %v4500 = vpop.permute.xlu0 %4499
    %4501 = vrot.lane.b32.xlu0 %v3621, 32
    %v4502 = vpop.permute.xlu0 %4501
    %4503 = vrot.lane.b32.xlu0 %v3624, 32
    %v4504 = vpop.permute.xlu0 %4503
    %4505 = vrot.lane.b32.xlu0 %v3626, 32
    %v4506 = vpop.permute.xlu0 %4505
    %4507 = vrot.lane.b32.xlu0 %v3629, 32
    %v4508 = vpop.permute.xlu0 %4507
    %4509 = vrot.lane.b32.xlu0 %v3631, 32
    %v4510 = vpop.permute.xlu0 %4509
    %4511 = vrot.lane.b32.xlu0 %v3634, 32
    %v4512 = vpop.permute.xlu0 %4511
    %4513 = vrot.lane.b32.xlu0 %v3636, 32
    %v4514 = vpop.permute.xlu0 %4513
    %4515 = vrot.lane.b32.xlu0 %v3639, 32
    %v4516 = vpop.permute.xlu0 %4515
    %4517 = vrot.lane.b32.xlu0 %v3641, 32
    %v4518 = vpop.permute.xlu0 %4517
    %4519 = vrot.lane.b32.xlu0 %v3644, 32
    %v4520 = vpop.permute.xlu0 %4519
    %4521 = vrot.lane.b32.xlu0 %v3646, 32
    %v4522 = vpop.permute.xlu0 %4521
    %4523 = vrot.lane.b32.xlu0 %v3649, 32
    %v4524 = vpop.permute.xlu0 %4523
    %4525 = vrot.lane.b32.xlu0 %v3651, 32
    %v4526 = vpop.permute.xlu0 %4525
    %4527 = vrot.lane.b32.xlu0 %v3654, 32
    %v4528 = vpop.permute.xlu0 %4527
    %4529 = vrot.lane.b32.xlu0 %v3656, 32
    %v4530 = vpop.permute.xlu0 %4529
    %4531 = vrot.lane.b32.xlu0 %v3659, 32
    %v4532 = vpop.permute.xlu0 %4531
    %4533 = vrot.lane.b32.xlu0 %v3661, 32
    %v4534 = vpop.permute.xlu0 %4533
    %4535 = vrot.lane.b32.xlu0 %v3664, 32
    %v4536 = vpop.permute.xlu0 %4535
    %4537 = vrot.lane.b32.xlu0 %v3666, 32
    %v4538 = vpop.permute.xlu0 %4537
    %4539 = vrot.lane.b32.xlu0 %v3669, 32
    %v4540 = vpop.permute.xlu0 %4539
    %4541 = vrot.lane.b32.xlu0 %v3671, 32
    %v4542 = vpop.permute.xlu0 %4541
    %4543 = vrot.lane.b32.xlu0 %v3674, 32
    %v4544 = vpop.permute.xlu0 %4543
    %4545 = vrot.lane.b32.xlu0 %v3676, 32
    %v4546 = vpop.permute.xlu0 %4545
    %4547 = vrot.lane.b32.xlu0 %v3679, 32
    %v4548 = vpop.permute.xlu0 %4547
    %4549 = vrot.lane.b32.xlu0 %v3681, 32
    %v4550 = vpop.permute.xlu0 %4549
    %4551 = vrot.lane.b32.xlu0 %v3684, 32
    %v4552 = vpop.permute.xlu0 %4551
    %4553 = vrot.lane.b32.xlu0 %v3686, 32
    %v4554 = vpop.permute.xlu0 %4553
    %4555 = vrot.lane.b32.xlu0 %v3689, 32
    %v4556 = vpop.permute.xlu0 %4555
    %4557 = vrot.lane.b32.xlu0 %v3691, 32
    %v4558 = vpop.permute.xlu0 %4557
    %4559 = vrot.lane.b32.xlu0 %v3858, 32
    %v4560 = vpop.permute.xlu0 %4559
    %4561 = vrot.lane.b32.xlu0 %v3860, 32
    %v4562 = vpop.permute.xlu0 %4561
    %4627 = vrot.lane.b32.xlu0 %v3699, 40
    %v4628 = vpop.permute.xlu0 %4627
    %4629 = vrot.lane.b32.xlu0 %v3701, 40
    %v4630 = vpop.permute.xlu0 %4629
    %4631 = vrot.lane.b32.xlu0 %v3704, 40
    %v4632 = vpop.permute.xlu0 %4631
    %4633 = vrot.lane.b32.xlu0 %v3706, 40
    %v4634 = vpop.permute.xlu0 %4633
    %4635 = vrot.lane.b32.xlu0 %v3709, 40
    %v4636 = vpop.permute.xlu0 %4635
    %4637 = vrot.lane.b32.xlu0 %v3711, 40
    %v4638 = vpop.permute.xlu0 %4637
    %4639 = vrot.lane.b32.xlu0 %v3714, 40
    %v4640 = vpop.permute.xlu0 %4639
    %4641 = vrot.lane.b32.xlu0 %v3716, 40
    %v4642 = vpop.permute.xlu0 %4641
    %4643 = vrot.lane.b32.xlu0 %v3719, 40
    %v4644 = vpop.permute.xlu0 %4643
    %4645 = vrot.lane.b32.xlu0 %v3721, 40
    %v4646 = vpop.permute.xlu0 %4645
    %4647 = vrot.lane.b32.xlu0 %v3724, 40
    %v4648 = vpop.permute.xlu0 %4647
    %4649 = vrot.lane.b32.xlu0 %v3726, 40
    %v4650 = vpop.permute.xlu0 %4649
    %4651 = vrot.lane.b32.xlu0 %v3729, 40
    %v4652 = vpop.permute.xlu0 %4651
    %4653 = vrot.lane.b32.xlu0 %v3731, 40
    %v4654 = vpop.permute.xlu0 %4653
    %4655 = vrot.lane.b32.xlu0 %v3734, 40
    %v4656 = vpop.permute.xlu0 %4655
    %4657 = vrot.lane.b32.xlu0 %v3736, 40
    %v4658 = vpop.permute.xlu0 %4657
    %4659 = vrot.lane.b32.xlu0 %v3739, 40
    %v4660 = vpop.permute.xlu0 %4659
    %4661 = vrot.lane.b32.xlu0 %v3741, 40
    %v4662 = vpop.permute.xlu0 %4661
    %4663 = vrot.lane.b32.xlu0 %v3744, 40
    %v4664 = vpop.permute.xlu0 %4663
    %4665 = vrot.lane.b32.xlu0 %v3746, 40
    %v4666 = vpop.permute.xlu0 %4665
    %4667 = vrot.lane.b32.xlu0 %v3749, 40
    %v4668 = vpop.permute.xlu0 %4667
    %4669 = vrot.lane.b32.xlu0 %v3751, 40
    %v4670 = vpop.permute.xlu0 %4669
    %4671 = vrot.lane.b32.xlu0 %v3754, 40
    %v4672 = vpop.permute.xlu0 %4671
    %4673 = vrot.lane.b32.xlu0 %v3756, 40
    %v4674 = vpop.permute.xlu0 %4673
    %4675 = vrot.lane.b32.xlu0 %v3759, 40
    %v4676 = vpop.permute.xlu0 %4675
    %4677 = vrot.lane.b32.xlu0 %v3761, 40
    %v4678 = vpop.permute.xlu0 %4677
    %4679 = vrot.lane.b32.xlu0 %v3764, 40
    %v4680 = vpop.permute.xlu0 %4679
    %4681 = vrot.lane.b32.xlu0 %v3766, 40
    %v4682 = vpop.permute.xlu0 %4681
    %4683 = vrot.lane.b32.xlu0 %v3769, 40
    %v4684 = vpop.permute.xlu0 %4683
    %4685 = vrot.lane.b32.xlu0 %v3771, 40
    %v4686 = vpop.permute.xlu0 %4685
    %4687 = vrot.lane.b32.xlu0 %v3863, 40
    %v4688 = vpop.permute.xlu0 %4687
    %4689 = vrot.lane.b32.xlu0 %v3865, 40
    %v4690 = vpop.permute.xlu0 %4689
    %4691 = vrot.lane.b32.xlu0 %v3774, 40
    %v4692 = vpop.permute.xlu0 %4691
    %4693 = vrot.lane.b32.xlu0 %v3776, 40
    %v4694 = vpop.permute.xlu0 %4693
    %4695 = vrot.lane.b32.xlu0 %v3779, 40
    %v4696 = vpop.permute.xlu0 %4695
    %4697 = vrot.lane.b32.xlu0 %v3781, 40
    %v4698 = vpop.permute.xlu0 %4697
    %4699 = vrot.lane.b32.xlu0 %v3784, 40
    %v4700 = vpop.permute.xlu0 %4699
    %4701 = vrot.lane.b32.xlu0 %v3786, 40
    %v4702 = vpop.permute.xlu0 %4701
    %4703 = vrot.lane.b32.xlu0 %v3789, 40
    %v4704 = vpop.permute.xlu0 %4703
    %4705 = vrot.lane.b32.xlu0 %v3791, 40
    %v4706 = vpop.permute.xlu0 %4705
    %4707 = vrot.lane.b32.xlu0 %v3794, 40
    %v4708 = vpop.permute.xlu0 %4707
    %4709 = vrot.lane.b32.xlu0 %v3796, 40
    %v4710 = vpop.permute.xlu0 %4709
    %4711 = vrot.lane.b32.xlu0 %v3799, 40
    %v4712 = vpop.permute.xlu0 %4711
    %4713 = vrot.lane.b32.xlu0 %v3801, 40
    %v4714 = vpop.permute.xlu0 %4713
    %4715 = vrot.lane.b32.xlu0 %v3804, 40
    %v4716 = vpop.permute.xlu0 %4715
    %4717 = vrot.lane.b32.xlu0 %v3806, 40
    %v4718 = vpop.permute.xlu0 %4717
    %4719 = vrot.lane.b32.xlu0 %v3809, 40
    %v4720 = vpop.permute.xlu0 %4719
    %4721 = vrot.lane.b32.xlu0 %v3811, 40
    %v4722 = vpop.permute.xlu0 %4721
    %4723 = vrot.lane.b32.xlu0 %v3814, 40
    %v4724 = vpop.permute.xlu0 %4723
    %4725 = vrot.lane.b32.xlu0 %v3816, 40
    %v4726 = vpop.permute.xlu0 %4725
    %4727 = vrot.lane.b32.xlu0 %v3819, 40
    %v4728 = vpop.permute.xlu0 %4727
    %4729 = vrot.lane.b32.xlu0 %v3821, 40
    %v4730 = vpop.permute.xlu0 %4729
    %4731 = vrot.lane.b32.xlu0 %v3824, 40
    %v4732 = vpop.permute.xlu0 %4731
    %4733 = vrot.lane.b32.xlu0 %v3826, 40
    %v4734 = vpop.permute.xlu0 %4733
    %4735 = vrot.lane.b32.xlu0 %v3829, 40
    %v4736 = vpop.permute.xlu0 %4735
    %4737 = vrot.lane.b32.xlu0 %v3831, 40
    %v4738 = vpop.permute.xlu0 %4737
    %4739 = vrot.lane.b32.xlu0 %v3834, 40
    %v4740 = vpop.permute.xlu0 %4739
    %4741 = vrot.lane.b32.xlu0 %v3836, 40
    %v4742 = vpop.permute.xlu0 %4741
    %4743 = vrot.lane.b32.xlu0 %v3839, 40
    %v4744 = vpop.permute.xlu0 %4743
    %4745 = vrot.lane.b32.xlu0 %v3841, 40
    %v4746 = vpop.permute.xlu0 %4745
    %4747 = vrot.lane.b32.xlu0 %v3844, 40
    %v4748 = vpop.permute.xlu0 %4747
    %4749 = vrot.lane.b32.xlu0 %v3846, 40
    %v4750 = vpop.permute.xlu0 %4749
    %4751 = vrot.lane.b32.xlu0 %v3868, 40
    %v4752 = vpop.permute.xlu0 %4751
    %4753 = vrot.lane.b32.xlu0 %v3870, 40
    %v4754 = vpop.permute.xlu0 %4753
    %4819 = vrot.lane.b32.xlu0 %v3411, 48
    %v4820 = vpop.permute.xlu0 %4819
    %4821 = vrot.lane.b32.xlu0 %v3222, 48
    %v4822 = vpop.permute.xlu0 %4821
    %4823 = vrot.lane.b32.xlu0 %v3412, 48
    %v4824 = vpop.permute.xlu0 %4823
    %4825 = vrot.lane.b32.xlu0 %v3225, 48
    %v4826 = vpop.permute.xlu0 %4825
    %4827 = vrot.lane.b32.xlu0 %v3413, 48
    %v4828 = vpop.permute.xlu0 %4827
    %4829 = vrot.lane.b32.xlu0 %v3228, 48
    %v4830 = vpop.permute.xlu0 %4829
    %4831 = vrot.lane.b32.xlu0 %v3414, 48
    %v4832 = vpop.permute.xlu0 %4831
    %4833 = vrot.lane.b32.xlu0 %v3231, 48
    %v4834 = vpop.permute.xlu0 %4833
    %4835 = vrot.lane.b32.xlu0 %v3415, 48
    %v4836 = vpop.permute.xlu0 %4835
    %4837 = vrot.lane.b32.xlu0 %v3234, 48
    %v4838 = vpop.permute.xlu0 %4837
    %4839 = vrot.lane.b32.xlu0 %v3416, 48
    %v4840 = vpop.permute.xlu0 %4839
    %4841 = vrot.lane.b32.xlu0 %v3237, 48
    %v4842 = vpop.permute.xlu0 %4841
    %4843 = vrot.lane.b32.xlu0 %v3417, 48
    %v4844 = vpop.permute.xlu0 %4843
    %4845 = vrot.lane.b32.xlu0 %v3240, 48
    %v4846 = vpop.permute.xlu0 %4845
    %4847 = vrot.lane.b32.xlu0 %v3418, 48
    %v4848 = vpop.permute.xlu0 %4847
    %4849 = vrot.lane.b32.xlu0 %v3243, 48
    %v4850 = vpop.permute.xlu0 %4849
    %4851 = vrot.lane.b32.xlu0 %v3419, 48
    %v4852 = vpop.permute.xlu0 %4851
    %4853 = vrot.lane.b32.xlu0 %v3246, 48
    %v4854 = vpop.permute.xlu0 %4853
    %4855 = vrot.lane.b32.xlu0 %v3420, 48
    %v4856 = vpop.permute.xlu0 %4855
    %4857 = vrot.lane.b32.xlu0 %v3249, 48
    %v4858 = vpop.permute.xlu0 %4857
    %4859 = vrot.lane.b32.xlu0 %v3421, 48
    %v4860 = vpop.permute.xlu0 %4859
    %4861 = vrot.lane.b32.xlu0 %v3252, 48
    %v4862 = vpop.permute.xlu0 %4861
    %4863 = vrot.lane.b32.xlu0 %v3422, 48
    %v4864 = vpop.permute.xlu0 %4863
    %4865 = vrot.lane.b32.xlu0 %v3255, 48
    %v4866 = vpop.permute.xlu0 %4865
    %4867 = vrot.lane.b32.xlu0 %v3423, 48
    %v4868 = vpop.permute.xlu0 %4867
    %4869 = vrot.lane.b32.xlu0 %v3258, 48
    %v4870 = vpop.permute.xlu0 %4869
    %4871 = vrot.lane.b32.xlu0 %v3424, 48
    %v4872 = vpop.permute.xlu0 %4871
    %4873 = vrot.lane.b32.xlu0 %v3261, 48
    %v4874 = vpop.permute.xlu0 %4873
    %4875 = vrot.lane.b32.xlu0 %v3425, 48
    %v4876 = vpop.permute.xlu0 %4875
    %4877 = vrot.lane.b32.xlu0 %v3264, 48
    %v4878 = vpop.permute.xlu0 %4877
    %4879 = vrot.lane.b32.xlu0 %v3409, 48
    %v4880 = vpop.permute.xlu0 %4879
    %4881 = vrot.lane.b32.xlu0 %v3216, 48
    %v4882 = vpop.permute.xlu0 %4881
    %4883 = vrot.lane.b32.xlu0 %v3427, 48
    %v4884 = vpop.permute.xlu0 %4883
    %4885 = vrot.lane.b32.xlu0 %v3270, 48
    %v4886 = vpop.permute.xlu0 %4885
    %4887 = vrot.lane.b32.xlu0 %v3428, 48
    %v4888 = vpop.permute.xlu0 %4887
    %4889 = vrot.lane.b32.xlu0 %v3273, 48
    %v4890 = vpop.permute.xlu0 %4889
    %4891 = vrot.lane.b32.xlu0 %v3429, 48
    %v4892 = vpop.permute.xlu0 %4891
    %4893 = vrot.lane.b32.xlu0 %v3276, 48
    %v4894 = vpop.permute.xlu0 %4893
    %4895 = vrot.lane.b32.xlu0 %v3430, 48
    %v4896 = vpop.permute.xlu0 %4895
    %4897 = vrot.lane.b32.xlu0 %v3279, 48
    %v4898 = vpop.permute.xlu0 %4897
    %4899 = vrot.lane.b32.xlu0 %v3431, 48
    %v4900 = vpop.permute.xlu0 %4899
    %4901 = vrot.lane.b32.xlu0 %v3282, 48
    %v4902 = vpop.permute.xlu0 %4901
    %4903 = vrot.lane.b32.xlu0 %v3432, 48
    %v4904 = vpop.permute.xlu0 %4903
    %4905 = vrot.lane.b32.xlu0 %v3285, 48
    %v4906 = vpop.permute.xlu0 %4905
    %4907 = vrot.lane.b32.xlu0 %v3433, 48
    %v4908 = vpop.permute.xlu0 %4907
    %4909 = vrot.lane.b32.xlu0 %v3288, 48
    %v4910 = vpop.permute.xlu0 %4909
    %4911 = vrot.lane.b32.xlu0 %v3434, 48
    %v4912 = vpop.permute.xlu0 %4911
    %4913 = vrot.lane.b32.xlu0 %v3291, 48
    %v4914 = vpop.permute.xlu0 %4913
    %4915 = vrot.lane.b32.xlu0 %v3435, 48
    %v4916 = vpop.permute.xlu0 %4915
    %4917 = vrot.lane.b32.xlu0 %v3294, 48
    %v4918 = vpop.permute.xlu0 %4917
    %4919 = vrot.lane.b32.xlu0 %v3436, 48
    %v4920 = vpop.permute.xlu0 %4919
    %4921 = vrot.lane.b32.xlu0 %v3297, 48
    %v4922 = vpop.permute.xlu0 %4921
    %4923 = vrot.lane.b32.xlu0 %v3437, 48
    %v4924 = vpop.permute.xlu0 %4923
    %4925 = vrot.lane.b32.xlu0 %v3300, 48
    %v4926 = vpop.permute.xlu0 %4925
    %4927 = vrot.lane.b32.xlu0 %v3438, 48
    %v4928 = vpop.permute.xlu0 %4927
    %4929 = vrot.lane.b32.xlu0 %v3303, 48
    %v4930 = vpop.permute.xlu0 %4929
    %4931 = vrot.lane.b32.xlu0 %v3439, 48
    %v4932 = vpop.permute.xlu0 %4931
    %4933 = vrot.lane.b32.xlu0 %v3306, 48
    %v4934 = vpop.permute.xlu0 %4933
    %4935 = vrot.lane.b32.xlu0 %v3440, 48
    %v4936 = vpop.permute.xlu0 %4935
    %4937 = vrot.lane.b32.xlu0 %v3309, 48
    %v4938 = vpop.permute.xlu0 %4937
    %4939 = vrot.lane.b32.xlu0 %v3441, 48
    %v4940 = vpop.permute.xlu0 %4939
    %4941 = vrot.lane.b32.xlu0 %v3312, 48
    %v4942 = vpop.permute.xlu0 %4941
    %5005 = vrot.lane.b32.xlu0 %v3549, 56
    %v5006 = vpop.permute.xlu0 %5005
    %5007 = vrot.lane.b32.xlu0 %v3551, 56
    %v5008 = vpop.permute.xlu0 %5007
    %5009 = vrot.lane.b32.xlu0 %v3554, 56
    %v5010 = vpop.permute.xlu0 %5009
    %5011 = vrot.lane.b32.xlu0 %v3556, 56
    %v5012 = vpop.permute.xlu0 %5011
    %5013 = vrot.lane.b32.xlu0 %v3559, 56
    %v5014 = vpop.permute.xlu0 %5013
    %5015 = vrot.lane.b32.xlu0 %v3561, 56
    %v5016 = vpop.permute.xlu0 %5015
    %5017 = vrot.lane.b32.xlu0 %v3564, 56
    %v5018 = vpop.permute.xlu0 %5017
    %5019 = vrot.lane.b32.xlu0 %v3566, 56
    %v5020 = vpop.permute.xlu0 %5019
    %5021 = vrot.lane.b32.xlu0 %v3569, 56
    %v5022 = vpop.permute.xlu0 %5021
    %5023 = vrot.lane.b32.xlu0 %v3571, 56
    %v5024 = vpop.permute.xlu0 %5023
    %5025 = vrot.lane.b32.xlu0 %v3574, 56
    %v5026 = vpop.permute.xlu0 %5025
    %5027 = vrot.lane.b32.xlu0 %v3576, 56
    %v5028 = vpop.permute.xlu0 %5027
    %5029 = vrot.lane.b32.xlu0 %v3579, 56
    %v5030 = vpop.permute.xlu0 %5029
    %5031 = vrot.lane.b32.xlu0 %v3581, 56
    %v5032 = vpop.permute.xlu0 %5031
    %5033 = vrot.lane.b32.xlu0 %v3584, 56
    %v5034 = vpop.permute.xlu0 %5033
    %5035 = vrot.lane.b32.xlu0 %v3586, 56
    %v5036 = vpop.permute.xlu0 %5035
    %5037 = vrot.lane.b32.xlu0 %v3589, 56
    %v5038 = vpop.permute.xlu0 %5037
    %5039 = vrot.lane.b32.xlu0 %v3591, 56
    %v5040 = vpop.permute.xlu0 %5039
    %5041 = vrot.lane.b32.xlu0 %v3594, 56
    %v5042 = vpop.permute.xlu0 %5041
    %5043 = vrot.lane.b32.xlu0 %v3596, 56
    %v5044 = vpop.permute.xlu0 %5043
    %5045 = vrot.lane.b32.xlu0 %v3599, 56
    %v5046 = vpop.permute.xlu0 %5045
    %5047 = vrot.lane.b32.xlu0 %v3601, 56
    %v5048 = vpop.permute.xlu0 %5047
    %5049 = vrot.lane.b32.xlu0 %v3604, 56
    %v5050 = vpop.permute.xlu0 %5049
    %5051 = vrot.lane.b32.xlu0 %v3606, 56
    %v5052 = vpop.permute.xlu0 %5051
    %5053 = vrot.lane.b32.xlu0 %v3609, 56
    %v5054 = vpop.permute.xlu0 %5053
    %5055 = vrot.lane.b32.xlu0 %v3611, 56
    %v5056 = vpop.permute.xlu0 %5055
    %5057 = vrot.lane.b32.xlu0 %v3614, 56
    %v5058 = vpop.permute.xlu0 %5057
    %5059 = vrot.lane.b32.xlu0 %v3616, 56
    %v5060 = vpop.permute.xlu0 %5059
    %5061 = vrot.lane.b32.xlu0 %v3853, 56
    %v5062 = vpop.permute.xlu0 %5061
    %5063 = vrot.lane.b32.xlu0 %v3855, 56
    %v5064 = vpop.permute.xlu0 %5063
    %5065 = vrot.lane.b32.xlu0 %v3539, 56
    %v5066 = vpop.permute.xlu0 %5065
    %5067 = vrot.lane.b32.xlu0 %v3541, 56
    %v5068 = vpop.permute.xlu0 %5067
    %5069 = vrot.lane.b32.xlu0 %v3624, 56
    %v5070 = vpop.permute.xlu0 %5069
    %5071 = vrot.lane.b32.xlu0 %v3626, 56
    %v5072 = vpop.permute.xlu0 %5071
    %5073 = vrot.lane.b32.xlu0 %v3629, 56
    %v5074 = vpop.permute.xlu0 %5073
    %5075 = vrot.lane.b32.xlu0 %v3631, 56
    %v5076 = vpop.permute.xlu0 %5075
    %5077 = vrot.lane.b32.xlu0 %v3634, 56
    %v5078 = vpop.permute.xlu0 %5077
    %5079 = vrot.lane.b32.xlu0 %v3636, 56
    %v5080 = vpop.permute.xlu0 %5079
    %5081 = vrot.lane.b32.xlu0 %v3639, 56
    %v5082 = vpop.permute.xlu0 %5081
    %5083 = vrot.lane.b32.xlu0 %v3641, 56
    %v5084 = vpop.permute.xlu0 %5083
    %5085 = vrot.lane.b32.xlu0 %v3644, 56
    %v5086 = vpop.permute.xlu0 %5085
    %5087 = vrot.lane.b32.xlu0 %v3646, 56
    %v5088 = vpop.permute.xlu0 %5087
    %5089 = vrot.lane.b32.xlu0 %v3649, 56
    %v5090 = vpop.permute.xlu0 %5089
    %5091 = vrot.lane.b32.xlu0 %v3651, 56
    %v5092 = vpop.permute.xlu0 %5091
    %5093 = vrot.lane.b32.xlu0 %v3654, 56
    %v5094 = vpop.permute.xlu0 %5093
    %5095 = vrot.lane.b32.xlu0 %v3656, 56
    %v5096 = vpop.permute.xlu0 %5095
    %5097 = vrot.lane.b32.xlu0 %v3659, 56
    %v5098 = vpop.permute.xlu0 %5097
    %5099 = vrot.lane.b32.xlu0 %v3661, 56
    %v5100 = vpop.permute.xlu0 %5099
    %5101 = vrot.lane.b32.xlu0 %v3664, 56
    %v5102 = vpop.permute.xlu0 %5101
    %5103 = vrot.lane.b32.xlu0 %v3666, 56
    %v5104 = vpop.permute.xlu0 %5103
    %5105 = vrot.lane.b32.xlu0 %v3669, 56
    %v5106 = vpop.permute.xlu0 %5105
    %5107 = vrot.lane.b32.xlu0 %v3671, 56
    %v5108 = vpop.permute.xlu0 %5107
    %5109 = vrot.lane.b32.xlu0 %v3674, 56
    %v5110 = vpop.permute.xlu0 %5109
    %5111 = vrot.lane.b32.xlu0 %v3676, 56
    %v5112 = vpop.permute.xlu0 %5111
    %5113 = vrot.lane.b32.xlu0 %v3679, 56
    %v5114 = vpop.permute.xlu0 %5113
    %5115 = vrot.lane.b32.xlu0 %v3681, 56
    %v5116 = vpop.permute.xlu0 %5115
    %5117 = vrot.lane.b32.xlu0 %v3684, 56
    %v5118 = vpop.permute.xlu0 %5117
    %5119 = vrot.lane.b32.xlu0 %v3686, 56
    %v5120 = vpop.permute.xlu0 %5119
    %5121 = vrot.lane.b32.xlu0 %v3689, 56
    %v5122 = vpop.permute.xlu0 %5121
    %5123 = vrot.lane.b32.xlu0 %v3691, 56
    %v5124 = vpop.permute.xlu0 %5123
    %5125 = vrot.lane.b32.xlu0 %v3858, 56
    %v5126 = vpop.permute.xlu0 %5125
    %5127 = vrot.lane.b32.xlu0 %v3860, 56
    %v5128 = vpop.permute.xlu0 %5127
    %5191 = vrot.lane.b32.xlu0 %v3704, 64
    %v5192 = vpop.permute.xlu0 %5191
    %5193 = vrot.lane.b32.xlu0 %v3706, 64
    %v5194 = vpop.permute.xlu0 %5193
    %5195 = vrot.lane.b32.xlu0 %v3709, 64
    %v5196 = vpop.permute.xlu0 %5195
    %5197 = vrot.lane.b32.xlu0 %v3711, 64
    %v5198 = vpop.permute.xlu0 %5197
    %5199 = vrot.lane.b32.xlu0 %v3714, 64
    %v5200 = vpop.permute.xlu0 %5199
    %5201 = vrot.lane.b32.xlu0 %v3716, 64
    %v5202 = vpop.permute.xlu0 %5201
    %5203 = vrot.lane.b32.xlu0 %v3719, 64
    %v5204 = vpop.permute.xlu0 %5203
    %5205 = vrot.lane.b32.xlu0 %v3721, 64
    %v5206 = vpop.permute.xlu0 %5205
    %5207 = vrot.lane.b32.xlu0 %v3724, 64
    %v5208 = vpop.permute.xlu0 %5207
    %5209 = vrot.lane.b32.xlu0 %v3726, 64
    %v5210 = vpop.permute.xlu0 %5209
    %5211 = vrot.lane.b32.xlu0 %v3729, 64
    %v5212 = vpop.permute.xlu0 %5211
    %5213 = vrot.lane.b32.xlu0 %v3731, 64
    %v5214 = vpop.permute.xlu0 %5213
    %5215 = vrot.lane.b32.xlu0 %v3734, 64
    %v5216 = vpop.permute.xlu0 %5215
    %5217 = vrot.lane.b32.xlu0 %v3736, 64
    %v5218 = vpop.permute.xlu0 %5217
    %5219 = vrot.lane.b32.xlu0 %v3739, 64
    %v5220 = vpop.permute.xlu0 %5219
    %5221 = vrot.lane.b32.xlu0 %v3741, 64
    %v5222 = vpop.permute.xlu0 %5221
    %5223 = vrot.lane.b32.xlu0 %v3744, 64
    %v5224 = vpop.permute.xlu0 %5223
    %5225 = vrot.lane.b32.xlu0 %v3746, 64
    %v5226 = vpop.permute.xlu0 %5225
    %5227 = vrot.lane.b32.xlu0 %v3749, 64
    %v5228 = vpop.permute.xlu0 %5227
    %5229 = vrot.lane.b32.xlu0 %v3751, 64
    %v5230 = vpop.permute.xlu0 %5229
    %5231 = vrot.lane.b32.xlu0 %v3754, 64
    %v5232 = vpop.permute.xlu0 %5231
    %5233 = vrot.lane.b32.xlu0 %v3756, 64
    %v5234 = vpop.permute.xlu0 %5233
    %5235 = vrot.lane.b32.xlu0 %v3759, 64
    %v5236 = vpop.permute.xlu0 %5235
    %5237 = vrot.lane.b32.xlu0 %v3761, 64
    %v5238 = vpop.permute.xlu0 %5237
    %5239 = vrot.lane.b32.xlu0 %v3764, 64
    %v5240 = vpop.permute.xlu0 %5239
    %5241 = vrot.lane.b32.xlu0 %v3766, 64
    %v5242 = vpop.permute.xlu0 %5241
    %5243 = vrot.lane.b32.xlu0 %v3769, 64
    %v5244 = vpop.permute.xlu0 %5243
    %5245 = vrot.lane.b32.xlu0 %v3771, 64
    %v5246 = vpop.permute.xlu0 %5245
    %5247 = vrot.lane.b32.xlu0 %v3863, 64
    %v5248 = vpop.permute.xlu0 %5247
    %5249 = vrot.lane.b32.xlu0 %v3865, 64
    %v5250 = vpop.permute.xlu0 %5249
    %5251 = vrot.lane.b32.xlu0 %v3694, 64
    %v5252 = vpop.permute.xlu0 %5251
    %5253 = vrot.lane.b32.xlu0 %v3696, 64
    %v5254 = vpop.permute.xlu0 %5253
    %5255 = vrot.lane.b32.xlu0 %v3779, 64
    %v5256 = vpop.permute.xlu0 %5255
    %5257 = vrot.lane.b32.xlu0 %v3781, 64
    %v5258 = vpop.permute.xlu0 %5257
    %5259 = vrot.lane.b32.xlu0 %v3784, 64
    %v5260 = vpop.permute.xlu0 %5259
    %5261 = vrot.lane.b32.xlu0 %v3786, 64
    %v5262 = vpop.permute.xlu0 %5261
    %5263 = vrot.lane.b32.xlu0 %v3789, 64
    %v5264 = vpop.permute.xlu0 %5263
    %5265 = vrot.lane.b32.xlu0 %v3791, 64
    %v5266 = vpop.permute.xlu0 %5265
    %5267 = vrot.lane.b32.xlu0 %v3794, 64
    %v5268 = vpop.permute.xlu0 %5267
    %5269 = vrot.lane.b32.xlu0 %v3796, 64
    %v5270 = vpop.permute.xlu0 %5269
    %5271 = vrot.lane.b32.xlu0 %v3799, 64
    %v5272 = vpop.permute.xlu0 %5271
    %5273 = vrot.lane.b32.xlu0 %v3801, 64
    %v5274 = vpop.permute.xlu0 %5273
    %5275 = vrot.lane.b32.xlu0 %v3804, 64
    %v5276 = vpop.permute.xlu0 %5275
    %5277 = vrot.lane.b32.xlu0 %v3806, 64
    %v5278 = vpop.permute.xlu0 %5277
    %5279 = vrot.lane.b32.xlu0 %v3809, 64
    %v5280 = vpop.permute.xlu0 %5279
    %5281 = vrot.lane.b32.xlu0 %v3811, 64
    %v5282 = vpop.permute.xlu0 %5281
    %5283 = vrot.lane.b32.xlu0 %v3814, 64
    %v5284 = vpop.permute.xlu0 %5283
    %5285 = vrot.lane.b32.xlu0 %v3816, 64
    %v5286 = vpop.permute.xlu0 %5285
    %5287 = vrot.lane.b32.xlu0 %v3819, 64
    %v5288 = vpop.permute.xlu0 %5287
    %5289 = vrot.lane.b32.xlu0 %v3821, 64
    %v5290 = vpop.permute.xlu0 %5289
    %5291 = vrot.lane.b32.xlu0 %v3824, 64
    %v5292 = vpop.permute.xlu0 %5291
    %5293 = vrot.lane.b32.xlu0 %v3826, 64
    %v5294 = vpop.permute.xlu0 %5293
    %5295 = vrot.lane.b32.xlu0 %v3829, 64
    %v5296 = vpop.permute.xlu0 %5295
    %5297 = vrot.lane.b32.xlu0 %v3831, 64
    %v5298 = vpop.permute.xlu0 %5297
    %5299 = vrot.lane.b32.xlu0 %v3834, 64
    %v5300 = vpop.permute.xlu0 %5299
    %5301 = vrot.lane.b32.xlu0 %v3836, 64
    %v5302 = vpop.permute.xlu0 %5301
    %5303 = vrot.lane.b32.xlu0 %v3839, 64
    %v5304 = vpop.permute.xlu0 %5303
    %5305 = vrot.lane.b32.xlu0 %v3841, 64
    %v5306 = vpop.permute.xlu0 %5305
    %5307 = vrot.lane.b32.xlu0 %v3844, 64
    %v5308 = vpop.permute.xlu0 %5307
    %5309 = vrot.lane.b32.xlu0 %v3846, 64
    %v5310 = vpop.permute.xlu0 %5309
    %5311 = vrot.lane.b32.xlu0 %v3868, 64
    %v5312 = vpop.permute.xlu0 %5311
    %5313 = vrot.lane.b32.xlu0 %v3870, 64
    %v5314 = vpop.permute.xlu0 %5313
    %v5377 = vsel %vm2215, %v3409, %v3872
    %v5378 = vsel %vm2215, %v3216, %v3874
    %v5379 = vsel %vm2215, %v3410, %v3876
    %v5380 = vsel %vm2215, %v3219, %v3878
    %v5381 = vsel %vm2215, %v3411, %v3880
    %v5382 = vsel %vm2215, %v3222, %v3882
    %v5383 = vsel %vm2215, %v3412, %v3884
    %v5384 = vsel %vm2215, %v3225, %v3886
    %v5385 = vsel %vm2215, %v3413, %v3888
    %v5386 = vsel %vm2215, %v3228, %v3890
    %v5387 = vsel %vm2215, %v3414, %v3892
    %v5388 = vsel %vm2215, %v3231, %v3894
    %v5389 = vsel %vm2215, %v3415, %v3896
    %v5390 = vsel %vm2215, %v3234, %v3898
    %v5391 = vsel %vm2215, %v3416, %v3900
    %v5392 = vsel %vm2215, %v3237, %v3902
    %v5393 = vsel %vm2215, %v3417, %v3904
    %v5394 = vsel %vm2215, %v3240, %v3906
    %v5395 = vsel %vm2215, %v3418, %v3908
    %v5396 = vsel %vm2215, %v3243, %v3910
    %v5397 = vsel %vm2215, %v3419, %v3912
    %v5398 = vsel %vm2215, %v3246, %v3914
    %v5399 = vsel %vm2215, %v3420, %v3916
    %v5400 = vsel %vm2215, %v3249, %v3918
    %v5401 = vsel %vm2215, %v3421, %v3920
    %v5402 = vsel %vm2215, %v3252, %v3922
    %v5403 = vsel %vm2215, %v3422, %v3924
    %v5404 = vsel %vm2215, %v3255, %v3926
    %v5405 = vsel %vm2215, %v3423, %v3928
    %v5406 = vsel %vm2215, %v3258, %v3930
    %v5407 = vsel %vm2215, %v3424, %v3932
    %v5408 = vsel %vm2215, %v3261, %v3934
    %v5409 = vsel %vm2215, %v3426, %v3936
    %v5410 = vsel %vm2215, %v3267, %v3938
    %v5411 = vsel %vm2215, %v3427, %v3940
    %v5412 = vsel %vm2215, %v3270, %v3942
    %v5413 = vsel %vm2215, %v3428, %v3944
    %v5414 = vsel %vm2215, %v3273, %v3946
    %v5415 = vsel %vm2215, %v3429, %v3948
    %v5416 = vsel %vm2215, %v3276, %v3950
    %v5417 = vsel %vm2215, %v3430, %v3952
    %v5418 = vsel %vm2215, %v3279, %v3954
    %v5419 = vsel %vm2215, %v3431, %v3956
    %v5420 = vsel %vm2215, %v3282, %v3958
    %v5421 = vsel %vm2215, %v3432, %v3960
    %v5422 = vsel %vm2215, %v3285, %v3962
    %v5423 = vsel %vm2215, %v3433, %v3964
    %v5424 = vsel %vm2215, %v3288, %v3966
    %v5425 = vsel %vm2215, %v3434, %v3968
    %v5426 = vsel %vm2215, %v3291, %v3970
    %v5427 = vsel %vm2215, %v3435, %v3972
    %v5428 = vsel %vm2215, %v3294, %v3974
    %v5429 = vsel %vm2215, %v3436, %v3976
    %v5430 = vsel %vm2215, %v3297, %v3978
    %v5431 = vsel %vm2215, %v3437, %v3980
    %v5432 = vsel %vm2215, %v3300, %v3982
    %v5433 = vsel %vm2215, %v3438, %v3984
    %v5434 = vsel %vm2215, %v3303, %v3986
    %v5435 = vsel %vm2215, %v3439, %v3988
    %v5436 = vsel %vm2215, %v3306, %v3990
    %v5437 = vsel %vm2215, %v3440, %v3992
    %v5438 = vsel %vm2215, %v3309, %v3994
    %v5439 = vsel %vm2345, %v5377, %v4058
    %v5440 = vsel %vm2345, %v5378, %v4060
    %v5441 = vsel %vm2345, %v5379, %v4062
    %v5442 = vsel %vm2345, %v5380, %v4064
    %v5443 = vsel %vm2345, %v5381, %v4066
    %v5444 = vsel %vm2345, %v5382, %v4068
    %v5445 = vsel %vm2345, %v5383, %v4070
    %v5446 = vsel %vm2345, %v5384, %v4072
    %v5447 = vsel %vm2345, %v5385, %v4074
    %v5448 = vsel %vm2345, %v5386, %v4076
    %v5449 = vsel %vm2345, %v5387, %v4078
    %v5450 = vsel %vm2345, %v5388, %v4080
    %v5451 = vsel %vm2345, %v5389, %v4082
    %v5452 = vsel %vm2345, %v5390, %v4084
    %v5453 = vsel %vm2345, %v5391, %v4086
    %v5454 = vsel %vm2345, %v5392, %v4088
    %v5455 = vsel %vm2345, %v5393, %v4090
    %v5456 = vsel %vm2345, %v5394, %v4092
    %v5457 = vsel %vm2345, %v5395, %v4094
    %v5458 = vsel %vm2345, %v5396, %v4096
    %v5459 = vsel %vm2345, %v5397, %v4098
    %v5460 = vsel %vm2345, %v5398, %v4100
    %v5461 = vsel %vm2345, %v5399, %v4102
    %v5462 = vsel %vm2345, %v5400, %v4104
    %v5463 = vsel %vm2345, %v5401, %v4106
    %v5464 = vsel %vm2345, %v5402, %v4108
    %v5465 = vsel %vm2345, %v5403, %v4110
    %v5466 = vsel %vm2345, %v5404, %v4112
    %v5467 = vsel %vm2345, %v5405, %v4114
    %v5468 = vsel %vm2345, %v5406, %v4116
    %v5469 = vsel %vm2345, %v5407, %v4118
    %v5470 = vsel %vm2345, %v5408, %v4120
    %v5471 = vsel %vm2345, %v5409, %v4122
    %v5472 = vsel %vm2345, %v5410, %v4124
    %v5473 = vsel %vm2345, %v5411, %v4126
    %v5474 = vsel %vm2345, %v5412, %v4128
    %v5475 = vsel %vm2345, %v5413, %v4130
    %v5476 = vsel %vm2345, %v5414, %v4132
    %v5477 = vsel %vm2345, %v5415, %v4134
    %v5478 = vsel %vm2345, %v5416, %v4136
    %v5479 = vsel %vm2345, %v5417, %v4138
    %v5480 = vsel %vm2345, %v5418, %v4140
    %v5481 = vsel %vm2345, %v5419, %v4142
    %v5482 = vsel %vm2345, %v5420, %v4144
    %v5483 = vsel %vm2345, %v5421, %v4146
    %v5484 = vsel %vm2345, %v5422, %v4148
    %v5485 = vsel %vm2345, %v5423, %v4150
    %v5486 = vsel %vm2345, %v5424, %v4152
    %v5487 = vsel %vm2345, %v5425, %v4154
    %v5488 = vsel %vm2345, %v5426, %v4156
    %v5489 = vsel %vm2345, %v5427, %v4158
    %v5490 = vsel %vm2345, %v5428, %v4160
    %v5491 = vsel %vm2345, %v5429, %v4162
    %v5492 = vsel %vm2345, %v5430, %v4164
    %v5493 = vsel %vm2345, %v5431, %v4166
    %v5494 = vsel %vm2345, %v5432, %v4168
    %v5495 = vsel %vm2345, %v5433, %v4170
    %v5496 = vsel %vm2345, %v5434, %v4172
    %v5497 = vsel %vm2345, %v5435, %v4174
    %v5498 = vsel %vm2345, %v5436, %v4176
    %v5499 = vsel %vm2345, %v5437, %v4178
    %v5500 = vsel %vm2345, %v5438, %v4180
    %v5501 = vsel %vm2475, %v5439, %v4244
    %v5502 = vsel %vm2475, %v5440, %v4246
    %v5503 = vsel %vm2475, %v5441, %v4248
    %v5504 = vsel %vm2475, %v5442, %v4250
    %v5505 = vsel %vm2475, %v5443, %v4252
    %v5506 = vsel %vm2475, %v5444, %v4254
    %v5507 = vsel %vm2475, %v5445, %v4256
    %v5508 = vsel %vm2475, %v5446, %v4258
    %v5509 = vsel %vm2475, %v5447, %v4260
    %v5510 = vsel %vm2475, %v5448, %v4262
    %v5511 = vsel %vm2475, %v5449, %v4264
    %v5512 = vsel %vm2475, %v5450, %v4266
    %v5513 = vsel %vm2475, %v5451, %v4268
    %v5514 = vsel %vm2475, %v5452, %v4270
    %v5515 = vsel %vm2475, %v5453, %v4272
    %v5516 = vsel %vm2475, %v5454, %v4274
    %v5517 = vsel %vm2475, %v5455, %v4276
    %v5518 = vsel %vm2475, %v5456, %v4278
    %v5519 = vsel %vm2475, %v5457, %v4280
    %v5520 = vsel %vm2475, %v5458, %v4282
    %v5521 = vsel %vm2475, %v5459, %v4284
    %v5522 = vsel %vm2475, %v5460, %v4286
    %v5523 = vsel %vm2475, %v5461, %v4288
    %v5524 = vsel %vm2475, %v5462, %v4290
    %v5525 = vsel %vm2475, %v5463, %v4292
    %v5526 = vsel %vm2475, %v5464, %v4294
    %v5527 = vsel %vm2475, %v5465, %v4296
    %v5528 = vsel %vm2475, %v5466, %v4298
    %v5529 = vsel %vm2475, %v5467, %v4300
    %v5530 = vsel %vm2475, %v5468, %v4302
    %v5531 = vsel %vm2475, %v5469, %v4304
    %v5532 = vsel %vm2475, %v5470, %v4306
    %v5533 = vsel %vm2475, %v5439, %v4308
    %v5534 = vsel %vm2475, %v5440, %v4310
    %v5535 = vsel %vm2475, %v5471, %v4312
    %v5536 = vsel %vm2475, %v5472, %v4314
    %v5537 = vsel %vm2475, %v5473, %v4316
    %v5538 = vsel %vm2475, %v5474, %v4318
    %v5539 = vsel %vm2475, %v5475, %v4320
    %v5540 = vsel %vm2475, %v5476, %v4322
    %v5541 = vsel %vm2475, %v5477, %v4324
    %v5542 = vsel %vm2475, %v5478, %v4326
    %v5543 = vsel %vm2475, %v5479, %v4328
    %v5544 = vsel %vm2475, %v5480, %v4330
    %v5545 = vsel %vm2475, %v5481, %v4332
    %v5546 = vsel %vm2475, %v5482, %v4334
    %v5547 = vsel %vm2475, %v5483, %v4336
    %v5548 = vsel %vm2475, %v5484, %v4338
    %v5549 = vsel %vm2475, %v5485, %v4340
    %v5550 = vsel %vm2475, %v5486, %v4342
    %v5551 = vsel %vm2475, %v5487, %v4344
    %v5552 = vsel %vm2475, %v5488, %v4346
    %v5553 = vsel %vm2475, %v5489, %v4348
    %v5554 = vsel %vm2475, %v5490, %v4350
    %v5555 = vsel %vm2475, %v5491, %v4352
    %v5556 = vsel %vm2475, %v5492, %v4354
    %v5557 = vsel %vm2475, %v5493, %v4356
    %v5558 = vsel %vm2475, %v5494, %v4358
    %v5559 = vsel %vm2475, %v5495, %v4360
    %v5560 = vsel %vm2475, %v5496, %v4362
    %v5561 = vsel %vm2475, %v5497, %v4364
    %v5562 = vsel %vm2475, %v5498, %v4366
    %v5563 = vsel %vm2475, %v5499, %v4368
    %v5564 = vsel %vm2475, %v5500, %v4370
    %v5565 = vsel %vm2605, %v5501, %v4436
    %v5566 = vsel %vm2605, %v5502, %v4438
    %v5567 = vsel %vm2605, %v5503, %v4440
    %v5568 = vsel %vm2605, %v5504, %v4442
    %v5569 = vsel %vm2605, %v5505, %v4444
    %v5570 = vsel %vm2605, %v5506, %v4446
    %v5571 = vsel %vm2605, %v5507, %v4448
    %v5572 = vsel %vm2605, %v5508, %v4450
    %v5573 = vsel %vm2605, %v5509, %v4452
    %v5574 = vsel %vm2605, %v5510, %v4454
    %v5575 = vsel %vm2605, %v5511, %v4456
    %v5576 = vsel %vm2605, %v5512, %v4458
    %v5577 = vsel %vm2605, %v5513, %v4460
    %v5578 = vsel %vm2605, %v5514, %v4462
    %v5579 = vsel %vm2605, %v5515, %v4464
    %v5580 = vsel %vm2605, %v5516, %v4466
    %v5581 = vsel %vm2605, %v5517, %v4468
    %v5582 = vsel %vm2605, %v5518, %v4470
    %v5583 = vsel %vm2605, %v5519, %v4472
    %v5584 = vsel %vm2605, %v5520, %v4474
    %v5585 = vsel %vm2605, %v5521, %v4476
    %v5586 = vsel %vm2605, %v5522, %v4478
    %v5587 = vsel %vm2605, %v5523, %v4480
    %v5588 = vsel %vm2605, %v5524, %v4482
    %v5589 = vsel %vm2605, %v5525, %v4484
    %v5590 = vsel %vm2605, %v5526, %v4486
    %v5591 = vsel %vm2605, %v5527, %v4488
    %v5592 = vsel %vm2605, %v5528, %v4490
    %v5593 = vsel %vm2605, %v5529, %v4492
    %v5594 = vsel %vm2605, %v5530, %v4494
    %v5595 = vsel %vm2605, %v5531, %v4496
    %v5596 = vsel %vm2605, %v5532, %v4498
    %v5597 = vsel %vm2605, %v5533, %v4500
    %v5598 = vsel %vm2605, %v5534, %v4502
    %v5599 = vsel %vm2605, %v5535, %v4504
    %v5600 = vsel %vm2605, %v5536, %v4506
    %v5601 = vsel %vm2605, %v5537, %v4508
    %v5602 = vsel %vm2605, %v5538, %v4510
    %v5603 = vsel %vm2605, %v5539, %v4512
    %v5604 = vsel %vm2605, %v5540, %v4514
    %v5605 = vsel %vm2605, %v5541, %v4516
    %v5606 = vsel %vm2605, %v5542, %v4518
    %v5607 = vsel %vm2605, %v5543, %v4520
    %v5608 = vsel %vm2605, %v5544, %v4522
    %v5609 = vsel %vm2605, %v5545, %v4524
    %v5610 = vsel %vm2605, %v5546, %v4526
    %v5611 = vsel %vm2605, %v5547, %v4528
    %v5612 = vsel %vm2605, %v5548, %v4530
    %v5613 = vsel %vm2605, %v5549, %v4532
    %v5614 = vsel %vm2605, %v5550, %v4534
    %v5615 = vsel %vm2605, %v5551, %v4536
    %v5616 = vsel %vm2605, %v5552, %v4538
    %v5617 = vsel %vm2605, %v5553, %v4540
    %v5618 = vsel %vm2605, %v5554, %v4542
    %v5619 = vsel %vm2605, %v5555, %v4544
    %v5620 = vsel %vm2605, %v5556, %v4546
    %v5621 = vsel %vm2605, %v5557, %v4548
    %v5622 = vsel %vm2605, %v5558, %v4550
    %v5623 = vsel %vm2605, %v5559, %v4552
    %v5624 = vsel %vm2605, %v5560, %v4554
    %v5625 = vsel %vm2605, %v5561, %v4556
    %v5626 = vsel %vm2605, %v5562, %v4558
    %v5627 = vsel %vm2605, %v5563, %v4560
    %v5628 = vsel %vm2605, %v5564, %v4562
    %vm5629 = vcmask 326656
    %v5630 = vsel %vm5629, %v5565, %v4628
    %v5631 = vsel %vm5629, %v5566, %v4630
    %v5632 = vsel %vm5629, %v5567, %v4632
    %v5633 = vsel %vm5629, %v5568, %v4634
    %v5634 = vsel %vm5629, %v5569, %v4636
    %v5635 = vsel %vm5629, %v5570, %v4638
    %v5636 = vsel %vm5629, %v5571, %v4640
    %v5637 = vsel %vm5629, %v5572, %v4642
    %v5638 = vsel %vm5629, %v5573, %v4644
    %v5639 = vsel %vm5629, %v5574, %v4646
    %v5640 = vsel %vm5629, %v5575, %v4648
    %v5641 = vsel %vm5629, %v5576, %v4650
    %v5642 = vsel %vm5629, %v5577, %v4652
    %v5643 = vsel %vm5629, %v5578, %v4654
    %v5644 = vsel %vm5629, %v5579, %v4656
    %v5645 = vsel %vm5629, %v5580, %v4658
    %v5646 = vsel %vm5629, %v5581, %v4660
    %v5647 = vsel %vm5629, %v5582, %v4662
    %v5648 = vsel %vm5629, %v5583, %v4664
    %v5649 = vsel %vm5629, %v5584, %v4666
    %v5650 = vsel %vm5629, %v5585, %v4668
    %v5651 = vsel %vm5629, %v5586, %v4670
    %v5652 = vsel %vm5629, %v5587, %v4672
    %v5653 = vsel %vm5629, %v5588, %v4674
    %v5654 = vsel %vm5629, %v5589, %v4676
    %v5655 = vsel %vm5629, %v5590, %v4678
    %v5656 = vsel %vm5629, %v5591, %v4680
    %v5657 = vsel %vm5629, %v5592, %v4682
    %v5658 = vsel %vm5629, %v5593, %v4684
    %v5659 = vsel %vm5629, %v5594, %v4686
    %v5660 = vsel %vm5629, %v5595, %v4688
    %v5661 = vsel %vm5629, %v5596, %v4690
    %v5662 = vsel %vm5629, %v5597, %v4692
    %v5663 = vsel %vm5629, %v5598, %v4694
    %v5664 = vsel %vm5629, %v5599, %v4696
    %v5665 = vsel %vm5629, %v5600, %v4698
    %v5666 = vsel %vm5629, %v5601, %v4700
    %v5667 = vsel %vm5629, %v5602, %v4702
    %v5668 = vsel %vm5629, %v5603, %v4704
    %v5669 = vsel %vm5629, %v5604, %v4706
    %v5670 = vsel %vm5629, %v5605, %v4708
    %v5671 = vsel %vm5629, %v5606, %v4710
    %v5672 = vsel %vm5629, %v5607, %v4712
    %v5673 = vsel %vm5629, %v5608, %v4714
    %v5674 = vsel %vm5629, %v5609, %v4716
    %v5675 = vsel %vm5629, %v5610, %v4718
    %v5676 = vsel %vm5629, %v5611, %v4720
    %v5677 = vsel %vm5629, %v5612, %v4722
    %v5678 = vsel %vm5629, %v5613, %v4724
    %v5679 = vsel %vm5629, %v5614, %v4726
    %v5680 = vsel %vm5629, %v5615, %v4728
    %v5681 = vsel %vm5629, %v5616, %v4730
    %v5682 = vsel %vm5629, %v5617, %v4732
    %v5683 = vsel %vm5629, %v5618, %v4734
    %v5684 = vsel %vm5629, %v5619, %v4736
    %v5685 = vsel %vm5629, %v5620, %v4738
    %v5686 = vsel %vm5629, %v5621, %v4740
    %v5687 = vsel %vm5629, %v5622, %v4742
    %v5688 = vsel %vm5629, %v5623, %v4744
    %v5689 = vsel %vm5629, %v5624, %v4746
    %v5690 = vsel %vm5629, %v5625, %v4748
    %v5691 = vsel %vm5629, %v5626, %v4750
    %v5692 = vsel %vm5629, %v5627, %v4752
    %v5693 = vsel %vm5629, %v5628, %v4754
    %vm5694 = vcmask 392192
    %v5695 = vsel %vm5694, %v5630, %v4820
    %v5696 = vsel %vm5694, %v5631, %v4822
    %v5697 = vsel %vm5694, %v5632, %v4824
    %v5698 = vsel %vm5694, %v5633, %v4826
    %v5699 = vsel %vm5694, %v5634, %v4828
    %v5700 = vsel %vm5694, %v5635, %v4830
    %v5701 = vsel %vm5694, %v5636, %v4832
    %v5702 = vsel %vm5694, %v5637, %v4834
    %v5703 = vsel %vm5694, %v5638, %v4836
    %v5704 = vsel %vm5694, %v5639, %v4838
    %v5705 = vsel %vm5694, %v5640, %v4840
    %v5706 = vsel %vm5694, %v5641, %v4842
    %v5707 = vsel %vm5694, %v5642, %v4844
    %v5708 = vsel %vm5694, %v5643, %v4846
    %v5709 = vsel %vm5694, %v5644, %v4848
    %v5710 = vsel %vm5694, %v5645, %v4850
    %v5711 = vsel %vm5694, %v5646, %v4852
    %v5712 = vsel %vm5694, %v5647, %v4854
    %v5713 = vsel %vm5694, %v5648, %v4856
    %v5714 = vsel %vm5694, %v5649, %v4858
    %v5715 = vsel %vm5694, %v5650, %v4860
    %v5716 = vsel %vm5694, %v5651, %v4862
    %v5717 = vsel %vm5694, %v5652, %v4864
    %v5718 = vsel %vm5694, %v5653, %v4866
    %v5719 = vsel %vm5694, %v5654, %v4868
    %v5720 = vsel %vm5694, %v5655, %v4870
    %v5721 = vsel %vm5694, %v5656, %v4872
    %v5722 = vsel %vm5694, %v5657, %v4874
    %v5723 = vsel %vm5694, %v5658, %v4876
    %v5724 = vsel %vm5694, %v5659, %v4878
    %v5725 = vsel %vm5694, %v5660, %v4880
    %v5726 = vsel %vm5694, %v5661, %v4882
    %v5727 = vsel %vm5694, %v5662, %v4884
    %v5728 = vsel %vm5694, %v5663, %v4886
    %v5729 = vsel %vm5694, %v5664, %v4888
    %v5730 = vsel %vm5694, %v5665, %v4890
    %v5731 = vsel %vm5694, %v5666, %v4892
    %v5732 = vsel %vm5694, %v5667, %v4894
    %v5733 = vsel %vm5694, %v5668, %v4896
    %v5734 = vsel %vm5694, %v5669, %v4898
    %v5735 = vsel %vm5694, %v5670, %v4900
    %v5736 = vsel %vm5694, %v5671, %v4902
    %v5737 = vsel %vm5694, %v5672, %v4904
    %v5738 = vsel %vm5694, %v5673, %v4906
    %v5739 = vsel %vm5694, %v5674, %v4908
    %v5740 = vsel %vm5694, %v5675, %v4910
    %v5741 = vsel %vm5694, %v5676, %v4912
    %v5742 = vsel %vm5694, %v5677, %v4914
    %v5743 = vsel %vm5694, %v5678, %v4916
    %v5744 = vsel %vm5694, %v5679, %v4918
    %v5745 = vsel %vm5694, %v5680, %v4920
    %v5746 = vsel %vm5694, %v5681, %v4922
    %v5747 = vsel %vm5694, %v5682, %v4924
    %v5748 = vsel %vm5694, %v5683, %v4926
    %v5749 = vsel %vm5694, %v5684, %v4928
    %v5750 = vsel %vm5694, %v5685, %v4930
    %v5751 = vsel %vm5694, %v5686, %v4932
    %v5752 = vsel %vm5694, %v5687, %v4934
    %v5753 = vsel %vm5694, %v5688, %v4936
    %v5754 = vsel %vm5694, %v5689, %v4938
    %v5755 = vsel %vm5694, %v5690, %v4940
    %v5756 = vsel %vm5694, %v5691, %v4942
    %v5757 = vsel %vm5694, %v5692, %v4880
    %v5758 = vsel %vm5694, %v5693, %v4882
    %vm5759 = vcmask 457728
    %v5760 = vsel %vm5759, %v5695, %v5006
    %v5761 = vsel %vm5759, %v5696, %v5008
    %v5762 = vsel %vm5759, %v5697, %v5010
    %v5763 = vsel %vm5759, %v5698, %v5012
    %v5764 = vsel %vm5759, %v5699, %v5014
    %v5765 = vsel %vm5759, %v5700, %v5016
    %v5766 = vsel %vm5759, %v5701, %v5018
    %v5767 = vsel %vm5759, %v5702, %v5020
    %v5768 = vsel %vm5759, %v5703, %v5022
    %v5769 = vsel %vm5759, %v5704, %v5024
    %v5770 = vsel %vm5759, %v5705, %v5026
    %v5771 = vsel %vm5759, %v5706, %v5028
    %v5772 = vsel %vm5759, %v5707, %v5030
    %v5773 = vsel %vm5759, %v5708, %v5032
    %v5774 = vsel %vm5759, %v5709, %v5034
    %v5775 = vsel %vm5759, %v5710, %v5036
    %v5776 = vsel %vm5759, %v5711, %v5038
    %v5777 = vsel %vm5759, %v5712, %v5040
    %v5778 = vsel %vm5759, %v5713, %v5042
    %v5779 = vsel %vm5759, %v5714, %v5044
    %v5780 = vsel %vm5759, %v5715, %v5046
    %v5781 = vsel %vm5759, %v5716, %v5048
    %v5782 = vsel %vm5759, %v5717, %v5050
    %v5783 = vsel %vm5759, %v5718, %v5052
    %v5784 = vsel %vm5759, %v5719, %v5054
    %v5785 = vsel %vm5759, %v5720, %v5056
    %v5786 = vsel %vm5759, %v5721, %v5058
    %v5787 = vsel %vm5759, %v5722, %v5060
    %v5788 = vsel %vm5759, %v5723, %v5062
    %v5789 = vsel %vm5759, %v5724, %v5064
    %v5790 = vsel %vm5759, %v5725, %v5066
    %v5791 = vsel %vm5759, %v5726, %v5068
    %v5792 = vsel %vm5759, %v5727, %v5070
    %v5793 = vsel %vm5759, %v5728, %v5072
    %v5794 = vsel %vm5759, %v5729, %v5074
    %v5795 = vsel %vm5759, %v5730, %v5076
    %v5796 = vsel %vm5759, %v5731, %v5078
    %v5797 = vsel %vm5759, %v5732, %v5080
    %v5798 = vsel %vm5759, %v5733, %v5082
    %v5799 = vsel %vm5759, %v5734, %v5084
    %v5800 = vsel %vm5759, %v5735, %v5086
    %v5801 = vsel %vm5759, %v5736, %v5088
    %v5802 = vsel %vm5759, %v5737, %v5090
    %v5803 = vsel %vm5759, %v5738, %v5092
    %v5804 = vsel %vm5759, %v5739, %v5094
    %v5805 = vsel %vm5759, %v5740, %v5096
    %v5806 = vsel %vm5759, %v5741, %v5098
    %v5807 = vsel %vm5759, %v5742, %v5100
    %v5808 = vsel %vm5759, %v5743, %v5102
    %v5809 = vsel %vm5759, %v5744, %v5104
    %v5810 = vsel %vm5759, %v5745, %v5106
    %v5811 = vsel %vm5759, %v5746, %v5108
    %v5812 = vsel %vm5759, %v5747, %v5110
    %v5813 = vsel %vm5759, %v5748, %v5112
    %v5814 = vsel %vm5759, %v5749, %v5114
    %v5815 = vsel %vm5759, %v5750, %v5116
    %v5816 = vsel %vm5759, %v5751, %v5118
    %v5817 = vsel %vm5759, %v5752, %v5120
    %v5818 = vsel %vm5759, %v5753, %v5122
    %v5819 = vsel %vm5759, %v5754, %v5124
    %v5820 = vsel %vm5759, %v5755, %v5126
    %v5821 = vsel %vm5759, %v5756, %v5128
    %v5822 = vsel %vm5759, %v5757, %v5066
    %v5823 = vsel %vm5759, %v5758, %v5068
    %vm5824 = vcmask 523264
    %v5825 = vsel %vm5824, %v5760, %v5192
    %v5826 = vsel %vm5824, %v5761, %v5194
    %v5827 = vsel %vm5824, %v5762, %v5196
    %v5828 = vsel %vm5824, %v5763, %v5198
    %v5829 = vsel %vm5824, %v5764, %v5200
    %v5830 = vsel %vm5824, %v5765, %v5202
    %v5831 = vsel %vm5824, %v5766, %v5204
    %v5832 = vsel %vm5824, %v5767, %v5206
    %v5833 = vsel %vm5824, %v5768, %v5208
    %v5834 = vsel %vm5824, %v5769, %v5210
    %v5835 = vsel %vm5824, %v5770, %v5212
    %v5836 = vsel %vm5824, %v5771, %v5214
    %v5837 = vsel %vm5824, %v5772, %v5216
    %v5838 = vsel %vm5824, %v5773, %v5218
    %v5839 = vsel %vm5824, %v5774, %v5220
    %v5840 = vsel %vm5824, %v5775, %v5222
    %v5841 = vsel %vm5824, %v5776, %v5224
    %v5842 = vsel %vm5824, %v5777, %v5226
    %v5843 = vsel %vm5824, %v5778, %v5228
    %v5844 = vsel %vm5824, %v5779, %v5230
    %v5845 = vsel %vm5824, %v5780, %v5232
    %v5846 = vsel %vm5824, %v5781, %v5234
    %v5847 = vsel %vm5824, %v5782, %v5236
    %v5848 = vsel %vm5824, %v5783, %v5238
    %v5849 = vsel %vm5824, %v5784, %v5240
    %v5850 = vsel %vm5824, %v5785, %v5242
    %v5851 = vsel %vm5824, %v5786, %v5244
    %v5852 = vsel %vm5824, %v5787, %v5246
    %v5853 = vsel %vm5824, %v5788, %v5248
    %v5854 = vsel %vm5824, %v5789, %v5250
    %v5855 = vsel %vm5824, %v5790, %v5252
    %v5856 = vsel %vm5824, %v5791, %v5254
    %v5857 = vsel %vm5824, %v5792, %v5256
    %v5858 = vsel %vm5824, %v5793, %v5258
    %v5859 = vsel %vm5824, %v5794, %v5260
    %v5860 = vsel %vm5824, %v5795, %v5262
    %v5861 = vsel %vm5824, %v5796, %v5264
    %v5862 = vsel %vm5824, %v5797, %v5266
    %v5863 = vsel %vm5824, %v5798, %v5268
    %v5864 = vsel %vm5824, %v5799, %v5270
    %v5865 = vsel %vm5824, %v5800, %v5272
    %v5866 = vsel %vm5824, %v5801, %v5274
    %v5867 = vsel %vm5824, %v5802, %v5276
    %v5868 = vsel %vm5824, %v5803, %v5278
    %v5869 = vsel %vm5824, %v5804, %v5280
    %v5870 = vsel %vm5824, %v5805, %v5282
    %v5871 = vsel %vm5824, %v5806, %v5284
    %v5872 = vsel %vm5824, %v5807, %v5286
    %v5873 = vsel %vm5824, %v5808, %v5288
    %v5874 = vsel %vm5824, %v5809, %v5290
    %v5875 = vsel %vm5824, %v5810, %v5292
    %v5876 = vsel %vm5824, %v5811, %v5294
    %v5877 = vsel %vm5824, %v5812, %v5296
    %v5878 = vsel %vm5824, %v5813, %v5298
    %v5879 = vsel %vm5824, %v5814, %v5300
    %v5880 = vsel %vm5824, %v5815, %v5302
    %v5881 = vsel %vm5824, %v5816, %v5304
    %v5882 = vsel %vm5824, %v5817, %v5306
    %v5883 = vsel %vm5824, %v5818, %v5308
    %v5884 = vsel %vm5824, %v5819, %v5310
    %v5885 = vsel %vm5824, %v5820, %v5312
    %v5886 = vsel %vm5824, %v5821, %v5314
    %v5887 = vsel %vm5824, %v5822, %v5252
    %v5888 = vsel %vm5824, %v5823, %v5254
    %v5889 = vld [vmem:[%s3] sm:$0xff]
    %v5890 = vld [vmem:[%s3 + $0x8] sm:$0xff]
    %v5891 = vld [vmem:[%s3 + $0x10] sm:$0xff]
    %v5892 = vld [vmem:[%s3 + $0x18] sm:$0xff]
    %v5893 = vld [vmem:[%s3 + $0x20] sm:$0xff]
    %v5894 = vld [vmem:[%s3 + $0x28] sm:$0xff]
    %v5895 = vld [vmem:[%s3 + $0x30] sm:$0xff]
    %v5896 = vld [vmem:[%s3 + $0x38] sm:$0xff]
    %v5897 = vld [vmem:[%s3 + $0x40] sm:$0xff]
    %v5898 = vld [vmem:[%s4] sm:$0x1]
    %v5900 = vperm.slane %v5898, 0
    %vm5902 = vcmask 588800
    %v5904 = vsel %vm5902, %v5825, 0
    %v5907 = vsel %vm5902, %v5826, 0
    %v5910 = vsel %vm5902, %v5827, 0
    %v5913 = vsel %vm5902, %v5828, 0
    %v5916 = vsel %vm5902, %v5829, 0
    %v5919 = vsel %vm5902, %v5830, 0
    %v5922 = vsel %vm5902, %v5831, 0
    %v5925 = vsel %vm5902, %v5832, 0
    %v5928 = vsel %vm5902, %v5833, 0
    %v5931 = vsel %vm5902, %v5834, 0
    %v5934 = vsel %vm5902, %v5835, 0
    %v5937 = vsel %vm5902, %v5836, 0
    %v5940 = vsel %vm5902, %v5837, 0
    %v5943 = vsel %vm5902, %v5838, 0
    %v5946 = vsel %vm5902, %v5839, 0
    %v5949 = vsel %vm5902, %v5840, 0
    %v5952 = vsel %vm5902, %v5841, 0
    %v5955 = vsel %vm5902, %v5842, 0
    %v5958 = vsel %vm5902, %v5843, 0
    %v5961 = vsel %vm5902, %v5844, 0
    %v5964 = vsel %vm5902, %v5845, 0
    %v5967 = vsel %vm5902, %v5846, 0
    %v5970 = vsel %vm5902, %v5847, 0
    %v5973 = vsel %vm5902, %v5848, 0
    %v5976 = vsel %vm5902, %v5849, 0
    %v5979 = vsel %vm5902, %v5850, 0
    %v5982 = vsel %vm5902, %v5851, 0
    %v5985 = vsel %vm5902, %v5852, 0
    %v5988 = vsel %vm5902, %v5853, 0
    %v5991 = vsel %vm5902, %v5854, 0
    %v5994 = vsel %vm5902, %v5855, 0
    %v5997 = vsel %vm5902, %v5856, 0
    %v6000 = vsel %vm5902, %v5857, 0
    %v6003 = vsel %vm5902, %v5858, 0
    %v6006 = vsel %vm5902, %v5859, 0
    %v6009 = vsel %vm5902, %v5860, 0
    %v6012 = vsel %vm5902, %v5861, 0
    %v6015 = vsel %vm5902, %v5862, 0
    %v6018 = vsel %vm5902, %v5863, 0
    %v6021 = vsel %vm5902, %v5864, 0
    %v6024 = vsel %vm5902, %v5865, 0
    %v6027 = vsel %vm5902, %v5866, 0
    %v6030 = vsel %vm5902, %v5867, 0
    %v6033 = vsel %vm5902, %v5868, 0
    %v6036 = vsel %vm5902, %v5869, 0
    %v6039 = vsel %vm5902, %v5870, 0
    %v6042 = vsel %vm5902, %v5871, 0
    %v6045 = vsel %vm5902, %v5872, 0
    %v6048 = vsel %vm5902, %v5873, 0
    %v6051 = vsel %vm5902, %v5874, 0
    %v6054 = vsel %vm5902, %v5875, 0
    %v6057 = vsel %vm5902, %v5876, 0
    %v6060 = vsel %vm5902, %v5877, 0
    %v6063 = vsel %vm5902, %v5878, 0
    %v6066 = vsel %vm5902, %v5879, 0
    %v6069 = vsel %vm5902, %v5880, 0
    %v6072 = vsel %vm5902, %v5881, 0
    %v6075 = vsel %vm5902, %v5882, 0
    %v6078 = vsel %vm5902, %v5883, 0
    %v6081 = vsel %vm5902, %v5884, 0
    %v6084 = vsel %vm5902, %v5885, 0
    %v6087 = vsel %vm5902, %v5886, 0
    %v6090 = vsel %vm5902, %v5887, 0
    %v6093 = vsel %vm5902, %v5888, 0
    %6095 = vmatpush.msra.mxu0 0.0
    %6096 = vmatpush.msra.mxu0 0.0
    %6097 = vmatpush.msra.mxu0 0.0
    %6098 = vmatpush.msra.mxu0 0.0
    %6099 = vmatpush.msra.mxu0 0.0
    %6100 = vmatpush.msra.mxu0 0.0
    %6101 = vmatpush.msra.mxu0 0.0
    %6102 = vmatpush.msra.mxu0 %v5897
    %6103 = vmatpush.msra.mxu0 %v5896
    %6104 = vmatpush.msra.mxu0 %v5895
    %6105 = vmatpush.msra.mxu0 %v5894
    %6106 = vmatpush.msra.mxu0 %v5893
    %6107 = vmatpush.msra.mxu0 %v5892
    %6108 = vmatpush.msra.mxu0 %v5891
    %6109 = vmatpush.msra.mxu0 %v5890
    %6110 = vmatpush.msra.mxu0 %v5889
    %6111 = vmatmul.f32.gmra.mxu0 %v5904
    %v6112 = vpop.f32.mrf.mxu0
    %v6113 = vadd.f32 %v5900, %v6112
    %6114 = vmatmul.f32.gmra.mxu0 %v5907
    %v6115 = vpop.f32.mrf.mxu0
    %v6116 = vadd.f32 %v5900, %v6115
    %6117 = vmatmul.f32.gmra.mxu0 %v5910
    %v6118 = vpop.f32.mrf.mxu0
    %v6119 = vadd.f32 %v5900, %v6118
    %6120 = vmatmul.f32.gmra.mxu0 %v5913
    %v6121 = vpop.f32.mrf.mxu0
    %v6122 = vadd.f32 %v5900, %v6121
    %6123 = vmatmul.f32.gmra.mxu0 %v5916
    %v6124 = vpop.f32.mrf.mxu0
    %v6125 = vadd.f32 %v5900, %v6124
    %6126 = vmatmul.f32.gmra.mxu0 %v5919
    %v6127 = vpop.f32.mrf.mxu0
    %v6128 = vadd.f32 %v5900, %v6127
    %6129 = vmatmul.f32.gmra.mxu0 %v5922
    %v6130 = vpop.f32.mrf.mxu0
    %v6131 = vadd.f32 %v5900, %v6130
    %6132 = vmatmul.f32.gmra.mxu0 %v5925
    %v6133 = vpop.f32.mrf.mxu0
    %v6134 = vadd.f32 %v5900, %v6133
    %6135 = vmatmul.f32.gmra.mxu0 %v5928
    %v6136 = vpop.f32.mrf.mxu0
    %v6137 = vadd.f32 %v5900, %v6136
    %6138 = vmatmul.f32.gmra.mxu0 %v5931
    %v6139 = vpop.f32.mrf.mxu0
    %v6140 = vadd.f32 %v5900, %v6139
    %6141 = vmatmul.f32.gmra.mxu0 %v5934
    %v6142 = vpop.f32.mrf.mxu0
    %v6143 = vadd.f32 %v5900, %v6142
    %6144 = vmatmul.f32.gmra.mxu0 %v5937
    %v6145 = vpop.f32.mrf.mxu0
    %v6146 = vadd.f32 %v5900, %v6145
    %6147 = vmatmul.f32.gmra.mxu0 %v5940
    %v6148 = vpop.f32.mrf.mxu0
    %v6149 = vadd.f32 %v5900, %v6148
    %6150 = vmatmul.f32.gmra.mxu0 %v5943
    %v6151 = vpop.f32.mrf.mxu0
    %v6152 = vadd.f32 %v5900, %v6151
    %6153 = vmatmul.f32.gmra.mxu0 %v5946
    %v6154 = vpop.f32.mrf.mxu0
    %v6155 = vadd.f32 %v5900, %v6154
    %6156 = vmatmul.f32.gmra.mxu0 %v5949
    %v6157 = vpop.f32.mrf.mxu0
    %v6158 = vadd.f32 %v5900, %v6157
    %6159 = vmatmul.f32.gmra.mxu0 %v5952
    %v6160 = vpop.f32.mrf.mxu0
    %v6161 = vadd.f32 %v5900, %v6160
    %6162 = vmatmul.f32.gmra.mxu0 %v5955
    %v6163 = vpop.f32.mrf.mxu0
    %v6164 = vadd.f32 %v5900, %v6163
    %6165 = vmatmul.f32.gmra.mxu0 %v5958
    %v6166 = vpop.f32.mrf.mxu0
    %v6167 = vadd.f32 %v5900, %v6166
    %6168 = vmatmul.f32.gmra.mxu0 %v5961
    %v6169 = vpop.f32.mrf.mxu0
    %v6170 = vadd.f32 %v5900, %v6169
    %6171 = vmatmul.f32.gmra.mxu0 %v5964
    %v6172 = vpop.f32.mrf.mxu0
    %v6173 = vadd.f32 %v5900, %v6172
    %6174 = vmatmul.f32.gmra.mxu0 %v5967
    %v6175 = vpop.f32.mrf.mxu0
    %v6176 = vadd.f32 %v5900, %v6175
    %6177 = vmatmul.f32.gmra.mxu0 %v5970
    %v6178 = vpop.f32.mrf.mxu0
    %v6179 = vadd.f32 %v5900, %v6178
    %6180 = vmatmul.f32.gmra.mxu0 %v5973
    %v6181 = vpop.f32.mrf.mxu0
    %v6182 = vadd.f32 %v5900, %v6181
    %6183 = vmatmul.f32.gmra.mxu0 %v5976
    %v6184 = vpop.f32.mrf.mxu0
    %v6185 = vadd.f32 %v5900, %v6184
    %6186 = vmatmul.f32.gmra.mxu0 %v5979
    %v6187 = vpop.f32.mrf.mxu0
    %v6188 = vadd.f32 %v5900, %v6187
    %6189 = vmatmul.f32.gmra.mxu0 %v5982
    %v6190 = vpop.f32.mrf.mxu0
    %v6191 = vadd.f32 %v5900, %v6190
    %6192 = vmatmul.f32.gmra.mxu0 %v5985
    %v6193 = vpop.f32.mrf.mxu0
    %v6194 = vadd.f32 %v5900, %v6193
    %6195 = vmatmul.f32.gmra.mxu0 %v5988
    %v6196 = vpop.f32.mrf.mxu0
    %v6197 = vadd.f32 %v5900, %v6196
    %6198 = vmatmul.f32.gmra.mxu0 %v5991
    %v6199 = vpop.f32.mrf.mxu0
    %v6200 = vadd.f32 %v5900, %v6199
    %6201 = vmatmul.f32.gmra.mxu0 %v5994
    %v6202 = vpop.f32.mrf.mxu0
    %v6203 = vadd.f32 %v5900, %v6202
    %6204 = vmatmul.f32.gmra.mxu0 %v5997
    %v6205 = vpop.f32.mrf.mxu0
    %v6206 = vadd.f32 %v5900, %v6205
    %6207 = vmatmul.f32.gmra.mxu0 %v6000
    %v6208 = vpop.f32.mrf.mxu0
    %v6209 = vadd.f32 %v5900, %v6208
    %6210 = vmatmul.f32.gmra.mxu0 %v6003
    %v6211 = vpop.f32.mrf.mxu0
    %v6212 = vadd.f32 %v5900, %v6211
    %6213 = vmatmul.f32.gmra.mxu0 %v6006
    %v6214 = vpop.f32.mrf.mxu0
    %v6215 = vadd.f32 %v5900, %v6214
    %6216 = vmatmul.f32.gmra.mxu0 %v6009
    %v6217 = vpop.f32.mrf.mxu0
    %v6218 = vadd.f32 %v5900, %v6217
    %6219 = vmatmul.f32.gmra.mxu0 %v6012
    %v6220 = vpop.f32.mrf.mxu0
    %v6221 = vadd.f32 %v5900, %v6220
    %6222 = vmatmul.f32.gmra.mxu0 %v6015
    %v6223 = vpop.f32.mrf.mxu0
    %v6224 = vadd.f32 %v5900, %v6223
    %6225 = vmatmul.f32.gmra.mxu0 %v6018
    %v6226 = vpop.f32.mrf.mxu0
    %v6227 = vadd.f32 %v5900, %v6226
    %6228 = vmatmul.f32.gmra.mxu0 %v6021
    %v6229 = vpop.f32.mrf.mxu0
    %v6230 = vadd.f32 %v5900, %v6229
    %6231 = vmatmul.f32.gmra.mxu0 %v6024
    %v6232 = vpop.f32.mrf.mxu0
    %v6233 = vadd.f32 %v5900, %v6232
    %6234 = vmatmul.f32.gmra.mxu0 %v6027
    %v6235 = vpop.f32.mrf.mxu0
    %v6236 = vadd.f32 %v5900, %v6235
    %6237 = vmatmul.f32.gmra.mxu0 %v6030
    %v6238 = vpop.f32.mrf.mxu0
    %v6239 = vadd.f32 %v5900, %v6238
    %6240 = vmatmul.f32.gmra.mxu0 %v6033
    %v6241 = vpop.f32.mrf.mxu0
    %v6242 = vadd.f32 %v5900, %v6241
    %6243 = vmatmul.f32.gmra.mxu0 %v6036
    %v6244 = vpop.f32.mrf.mxu0
    %v6245 = vadd.f32 %v5900, %v6244
    %6246 = vmatmul.f32.gmra.mxu0 %v6039
    %v6247 = vpop.f32.mrf.mxu0
    %v6248 = vadd.f32 %v5900, %v6247
    %6249 = vmatmul.f32.gmra.mxu0 %v6042
    %v6250 = vpop.f32.mrf.mxu0
    %v6251 = vadd.f32 %v5900, %v6250
    %6252 = vmatmul.f32.gmra.mxu0 %v6045
    %v6253 = vpop.f32.mrf.mxu0
    %v6254 = vadd.f32 %v5900, %v6253
    %6255 = vmatmul.f32.gmra.mxu0 %v6048
    %v6256 = vpop.f32.mrf.mxu0
    %v6257 = vadd.f32 %v5900, %v6256
    %6258 = vmatmul.f32.gmra.mxu0 %v6051
    %v6259 = vpop.f32.mrf.mxu0
    %v6260 = vadd.f32 %v5900, %v6259
    %6261 = vmatmul.f32.gmra.mxu0 %v6054
    %v6262 = vpop.f32.mrf.mxu0
    %v6263 = vadd.f32 %v5900, %v6262
    %6264 = vmatmul.f32.gmra.mxu0 %v6057
    %v6265 = vpop.f32.mrf.mxu0
    %v6266 = vadd.f32 %v5900, %v6265
    %6267 = vmatmul.f32.gmra.mxu0 %v6060
    %v6268 = vpop.f32.mrf.mxu0
    %v6269 = vadd.f32 %v5900, %v6268
    %6270 = vmatmul.f32.gmra.mxu0 %v6063
    %v6271 = vpop.f32.mrf.mxu0
    %v6272 = vadd.f32 %v5900, %v6271
    %6273 = vmatmul.f32.gmra.mxu0 %v6066
    %v6274 = vpop.f32.mrf.mxu0
    %v6275 = vadd.f32 %v5900, %v6274
    %6276 = vmatmul.f32.gmra.mxu0 %v6069
    %v6277 = vpop.f32.mrf.mxu0
    %v6278 = vadd.f32 %v5900, %v6277
    %6279 = vmatmul.f32.gmra.mxu0 %v6072
    %v6280 = vpop.f32.mrf.mxu0
    %v6281 = vadd.f32 %v5900, %v6280
    %6282 = vmatmul.f32.gmra.mxu0 %v6075
    %v6283 = vpop.f32.mrf.mxu0
    %v6284 = vadd.f32 %v5900, %v6283
    %6285 = vmatmul.f32.gmra.mxu0 %v6078
    %v6286 = vpop.f32.mrf.mxu0
    %v6287 = vadd.f32 %v5900, %v6286
    %6288 = vmatmul.f32.gmra.mxu0 %v6081
    %v6289 = vpop.f32.mrf.mxu0
    %v6290 = vadd.f32 %v5900, %v6289
    %6291 = vmatmul.f32.gmra.mxu0 %v6084
    %v6292 = vpop.f32.mrf.mxu0
    %v6293 = vadd.f32 %v5900, %v6292
    %6294 = vmatmul.f32.gmra.mxu0 %v6087
    %v6295 = vpop.f32.mrf.mxu0
    %v6296 = vadd.f32 %v5900, %v6295
    %6297 = vmatmul.f32.gmra.mxu0 %v6090
    %v6298 = vpop.f32.mrf.mxu0
    %v6299 = vadd.f32 %v5900, %v6298
    %6300 = vmatmul.f32.gmra.mxu0 %v6093
    %v6301 = vpop.f32.mrf.mxu0
    %v6302 = vadd.f32 %v5900, %v6301
    %6303 = vdwg.mxu0
    %v6304 = vmax.f32 %v6113, 0.0
    %v6305 = vmax.f32 %v6116, 0.0
    %v6306 = vmax.f32 %v6119, 0.0
    %v6307 = vmax.f32 %v6122, 0.0
    %v6308 = vmax.f32 %v6125, 0.0
    %v6309 = vmax.f32 %v6128, 0.0
    %v6310 = vmax.f32 %v6131, 0.0
    %v6311 = vmax.f32 %v6134, 0.0
    %v6312 = vmax.f32 %v6137, 0.0
    %v6313 = vmax.f32 %v6140, 0.0
    %v6314 = vmax.f32 %v6143, 0.0
    %v6315 = vmax.f32 %v6146, 0.0
    %v6316 = vmax.f32 %v6149, 0.0
    %v6317 = vmax.f32 %v6152, 0.0
    %v6318 = vmax.f32 %v6155, 0.0
    %v6319 = vmax.f32 %v6158, 0.0
    %v6320 = vmax.f32 %v6161, 0.0
    %v6321 = vmax.f32 %v6164, 0.0
    %v6322 = vmax.f32 %v6167, 0.0
    %v6323 = vmax.f32 %v6170, 0.0
    %v6324 = vmax.f32 %v6173, 0.0
    %v6325 = vmax.f32 %v6176, 0.0
    %v6326 = vmax.f32 %v6179, 0.0
    %v6327 = vmax.f32 %v6182, 0.0
    %v6328 = vmax.f32 %v6185, 0.0
    %v6329 = vmax.f32 %v6188, 0.0
    %v6330 = vmax.f32 %v6191, 0.0
    %v6331 = vmax.f32 %v6194, 0.0
    %v6332 = vmax.f32 %v6197, 0.0
    %v6333 = vmax.f32 %v6200, 0.0
    %v6334 = vmax.f32 %v6203, 0.0
    %v6335 = vmax.f32 %v6206, 0.0
    %v6336 = vmax.f32 %v6209, 0.0
    %v6337 = vmax.f32 %v6212, 0.0
    %v6338 = vmax.f32 %v6215, 0.0
    %v6339 = vmax.f32 %v6218, 0.0
    %v6340 = vmax.f32 %v6221, 0.0
    %v6341 = vmax.f32 %v6224, 0.0
    %v6342 = vmax.f32 %v6227, 0.0
    %v6343 = vmax.f32 %v6230, 0.0
    %v6344 = vmax.f32 %v6233, 0.0
    %v6345 = vmax.f32 %v6236, 0.0
    %v6346 = vmax.f32 %v6239, 0.0
    %v6347 = vmax.f32 %v6242, 0.0
    %v6348 = vmax.f32 %v6245, 0.0
    %v6349 = vmax.f32 %v6248, 0.0
    %v6350 = vmax.f32 %v6251, 0.0
    %v6351 = vmax.f32 %v6254, 0.0
    %v6352 = vmax.f32 %v6257, 0.0
    %v6353 = vmax.f32 %v6260, 0.0
    %v6354 = vmax.f32 %v6263, 0.0
    %v6355 = vmax.f32 %v6266, 0.0
    %v6356 = vmax.f32 %v6269, 0.0
    %v6357 = vmax.f32 %v6272, 0.0
    %v6358 = vmax.f32 %v6275, 0.0
    %v6359 = vmax.f32 %v6278, 0.0
    %v6360 = vmax.f32 %v6281, 0.0
    %v6361 = vmax.f32 %v6284, 0.0
    %v6362 = vmax.f32 %v6287, 0.0
    %v6363 = vmax.f32 %v6290, 0.0
    %v6364 = vmax.f32 %v6293, 0.0
    %v6365 = vmax.f32 %v6296, 0.0
    %v6366 = vmax.f32 %v6299, 0.0
    %v6367 = vmax.f32 %v6302, 0.0
    %v6368 = vld [vmem:[%s5] sm:$0xff]
    %v6369 = vld [vmem:[%s5 + $0x8] sm:$0xff]
    %v6370 = vld [vmem:[%s5 + $0x10] sm:$0xff]
    %v6371 = vld [vmem:[%s5 + $0x18] sm:$0xff]
    %v6372 = vld [vmem:[%s5 + $0x20] sm:$0xff]
    %v6373 = vld [vmem:[%s5 + $0x28] sm:$0xff]
    %v6374 = vld [vmem:[%s5 + $0x30] sm:$0xff]
    %v6375 = vld [vmem:[%s5 + $0x38] sm:$0xff]
    %v6376 = vld [vmem:[%s5 + $0x40] sm:$0xff]
    %v6377 = vld [vmem:[%s5 + $0x48] sm:$0xff]
    %v6378 = vld [vmem:[%s5 + $0x50] sm:$0xff]
    %v6379 = vld [vmem:[%s5 + $0x58] sm:$0xff]
    %v6380 = vld [vmem:[%s5 + $0x60] sm:$0xff]
    %v6381 = vld [vmem:[%s5 + $0x68] sm:$0xff]
    %v6382 = vld [vmem:[%s5 + $0x70] sm:$0xff]
    %v6383 = vld [vmem:[%s5 + $0x78] sm:$0xff]
    %6384 = vmatpush.msra.mxu0 %v6319
    %6385 = vmatpush.msra.mxu0 %v6318
    %6386 = vmatpush.msra.mxu0 %v6317
    %6387 = vmatpush.msra.mxu0 %v6316
    %6388 = vmatpush.msra.mxu0 %v6315
    %6389 = vmatpush.msra.mxu0 %v6314
    %6390 = vmatpush.msra.mxu0 %v6313
    %6391 = vmatpush.msra.mxu0 %v6312
    %6392 = vmatpush.msra.mxu0 %v6311
    %6393 = vmatpush.msra.mxu0 %v6310
    %6394 = vmatpush.msra.mxu0 %v6309
    %6395 = vmatpush.msra.mxu0 %v6308
    %6396 = vmatpush.msra.mxu0 %v6307
    %6397 = vmatpush.msra.mxu0 %v6306
    %6398 = vmatpush.msra.mxu0 %v6305
    %6399 = vmatpush.msra.mxu0 %v6304
    %6400 = vmatmul.f32.gmra.mxu0 %v6368
    %v6401 = vpop.f32.mrf.mxu0
    %v6402 = vadd.f32 0.0, %v6401
    %6403 = vmatmul.f32.gmra.mxu0 %v6372
    %v6404 = vpop.f32.mrf.mxu0
    %v6405 = vadd.f32 0.0, %v6404
    %6406 = vmatmul.f32.gmra.mxu0 %v6376
    %v6407 = vpop.f32.mrf.mxu0
    %v6408 = vadd.f32 0.0, %v6407
    %6409 = vmatmul.f32.gmra.mxu0 %v6380
    %v6410 = vpop.f32.mrf.mxu0
    %v6411 = vadd.f32 0.0, %v6410
    %6412 = vdwg.mxu0
    %6413 = vmatpush.msra.mxu0 %v6335
    %6414 = vmatpush.msra.mxu0 %v6334
    %6415 = vmatpush.msra.mxu0 %v6333
    %6416 = vmatpush.msra.mxu0 %v6332
    %6417 = vmatpush.msra.mxu0 %v6331
    %6418 = vmatpush.msra.mxu0 %v6330
    %6419 = vmatpush.msra.mxu0 %v6329
    %6420 = vmatpush.msra.mxu0 %v6328
    %6421 = vmatpush.msra.mxu0 %v6327
    %6422 = vmatpush.msra.mxu0 %v6326
    %6423 = vmatpush.msra.mxu0 %v6325
    %6424 = vmatpush.msra.mxu0 %v6324
    %6425 = vmatpush.msra.mxu0 %v6323
    %6426 = vmatpush.msra.mxu0 %v6322
    %6427 = vmatpush.msra.mxu0 %v6321
    %6428 = vmatpush.msra.mxu0 %v6320
    %6429 = vmatmul.f32.gmra.mxu0 %v6369
    %v6430 = vpop.f32.mrf.mxu0
    %v6431 = vadd.f32 %v6402, %v6430
    %6432 = vmatmul.f32.gmra.mxu0 %v6373
    %v6433 = vpop.f32.mrf.mxu0
    %v6434 = vadd.f32 %v6405, %v6433
    %6435 = vmatmul.f32.gmra.mxu0 %v6377
    %v6436 = vpop.f32.mrf.mxu0
    %v6437 = vadd.f32 %v6408, %v6436
    %6438 = vmatmul.f32.gmra.mxu0 %v6381
    %v6439 = vpop.f32.mrf.mxu0
    %v6440 = vadd.f32 %v6411, %v6439
    %6441 = vdwg.mxu0
    %6442 = vmatpush.msra.mxu0 %v6351
    %6443 = vmatpush.msra.mxu0 %v6350
    %6444 = vmatpush.msra.mxu0 %v6349
    %6445 = vmatpush.msra.mxu0 %v6348
    %6446 = vmatpush.msra.mxu0 %v6347
    %6447 = vmatpush.msra.mxu0 %v6346
    %6448 = vmatpush.msra.mxu0 %v6345
    %6449 = vmatpush.msra.mxu0 %v6344
    %6450 = vmatpush.msra.mxu0 %v6343
    %6451 = vmatpush.msra.mxu0 %v6342
    %6452 = vmatpush.msra.mxu0 %v6341
    %6453 = vmatpush.msra.mxu0 %v6340
    %6454 = vmatpush.msra.mxu0 %v6339
    %6455 = vmatpush.msra.mxu0 %v6338
    %6456 = vmatpush.msra.mxu0 %v6337
    %6457 = vmatpush.msra.mxu0 %v6336
    %6458 = vmatmul.f32.gmra.mxu0 %v6370
    %v6459 = vpop.f32.mrf.mxu0
    %v6460 = vadd.f32 %v6431, %v6459
    %6461 = vmatmul.f32.gmra.mxu0 %v6374
    %v6462 = vpop.f32.mrf.mxu0
    %v6463 = vadd.f32 %v6434, %v6462
    %6464 = vmatmul.f32.gmra.mxu0 %v6378
    %v6465 = vpop.f32.mrf.mxu0
    %v6466 = vadd.f32 %v6437, %v6465
    %6467 = vmatmul.f32.gmra.mxu0 %v6382
    %v6468 = vpop.f32.mrf.mxu0
    %v6469 = vadd.f32 %v6440, %v6468
    %6470 = vdwg.mxu0
    %6471 = vmatpush.msra.mxu0 %v6367
    %6472 = vmatpush.msra.mxu0 %v6366
    %6473 = vmatpush.msra.mxu0 %v6365
    %6474 = vmatpush.msra.mxu0 %v6364
    %6475 = vmatpush.msra.mxu0 %v6363
    %6476 = vmatpush.msra.mxu0 %v6362
    %6477 = vmatpush.msra.mxu0 %v6361
    %6478 = vmatpush.msra.mxu0 %v6360
    %6479 = vmatpush.msra.mxu0 %v6359
    %6480 = vmatpush.msra.mxu0 %v6358
    %6481 = vmatpush.msra.mxu0 %v6357
    %6482 = vmatpush.msra.mxu0 %v6356
    %6483 = vmatpush.msra.mxu0 %v6355
    %6484 = vmatpush.msra.mxu0 %v6354
    %6485 = vmatpush.msra.mxu0 %v6353
    %6486 = vmatpush.msra.mxu0 %v6352
    %6487 = vmatmul.f32.gmra.mxu0 %v6371
    %v6488 = vpop.f32.mrf.mxu0
    %v6489 = vadd.f32 %v6460, %v6488
    %6490 = vmatmul.f32.gmra.mxu0 %v6375
    %v6491 = vpop.f32.mrf.mxu0
    %v6492 = vadd.f32 %v6463, %v6491
    %6493 = vmatmul.f32.gmra.mxu0 %v6379
    %v6494 = vpop.f32.mrf.mxu0
    %v6495 = vadd.f32 %v6466, %v6494
    %6496 = vmatmul.f32.gmra.mxu0 %v6383
    %v6497 = vpop.f32.mrf.mxu0
    %v6498 = vadd.f32 %v6469, %v6497
    %6499 = vdwg.mxu0
    %6504 = vrot.lane.b32.xlu0 %v6489, 16
    %v6505 = vpop.permute.xlu0 %6504
    %6506 = vrot.lane.b32.xlu0 %v6492, 16
    %v6507 = vpop.permute.xlu0 %6506
    %6508 = vrot.lane.b32.xlu0 %v6495, 16
    %v6509 = vpop.permute.xlu0 %6508
    %6510 = vrot.lane.b32.xlu0 %v6498, 16
    %v6511 = vpop.permute.xlu0 %6510
    %6516 = vrot.lane.b32.xlu0 %v6489, 32
    %v6517 = vpop.permute.xlu0 %6516
    %6518 = vrot.lane.b32.xlu0 %v6492, 32
    %v6519 = vpop.permute.xlu0 %6518
    %6520 = vrot.lane.b32.xlu0 %v6495, 32
    %v6521 = vpop.permute.xlu0 %6520
    %6522 = vrot.lane.b32.xlu0 %v6498, 32
    %v6523 = vpop.permute.xlu0 %6522
    %6528 = vrot.lane.b32.xlu0 %v6489, 48
    %v6529 = vpop.permute.xlu0 %6528
    %6530 = vrot.lane.b32.xlu0 %v6492, 48
    %v6531 = vpop.permute.xlu0 %6530
    %6532 = vrot.lane.b32.xlu0 %v6495, 48
    %v6533 = vpop.permute.xlu0 %6532
    %6534 = vrot.lane.b32.xlu0 %v6498, 48
    %v6535 = vpop.permute.xlu0 %6534
    %6540 = vrot.lane.b32.xlu0 %v6489, 64
    %v6541 = vpop.permute.xlu0 %6540
    %6542 = vrot.lane.b32.xlu0 %v6492, 64
    %v6543 = vpop.permute.xlu0 %6542
    %6544 = vrot.lane.b32.xlu0 %v6495, 64
    %v6545 = vpop.permute.xlu0 %6544
    %6546 = vrot.lane.b32.xlu0 %v6498, 64
    %v6547 = vpop.permute.xlu0 %6546
    %6552 = vrot.lane.b32.xlu0 %v6489, 80
    %v6553 = vpop.permute.xlu0 %6552
    %6554 = vrot.lane.b32.xlu0 %v6492, 80
    %v6555 = vpop.permute.xlu0 %6554
    %6556 = vrot.lane.b32.xlu0 %v6495, 80
    %v6557 = vpop.permute.xlu0 %6556
    %6558 = vrot.lane.b32.xlu0 %v6498, 80
    %v6559 = vpop.permute.xlu0 %6558
    %6564 = vrot.lane.b32.xlu0 %v6489, 96
    %v6565 = vpop.permute.xlu0 %6564
    %6566 = vrot.lane.b32.xlu0 %v6492, 96
    %v6567 = vpop.permute.xlu0 %6566
    %6568 = vrot.lane.b32.xlu0 %v6495, 96
    %v6569 = vpop.permute.xlu0 %6568
    %6570 = vrot.lane.b32.xlu0 %v6498, 96
    %v6571 = vpop.permute.xlu0 %6570
    %6576 = vrot.lane.b32.xlu0 %v6489, 112
    %v6577 = vpop.permute.xlu0 %6576
    %6578 = vrot.lane.b32.xlu0 %v6492, 112
    %v6579 = vpop.permute.xlu0 %6578
    %6580 = vrot.lane.b32.xlu0 %v6495, 112
    %v6581 = vpop.permute.xlu0 %6580
    %6582 = vrot.lane.b32.xlu0 %v6498, 112
    %v6583 = vpop.permute.xlu0 %6582
    %v6588 = vsel %vm2345, %v6489, %v6505
    %v6589 = vsel %vm2345, %v6492, %v6507
    %v6590 = vsel %vm2345, %v6495, %v6509
    %v6591 = vsel %vm2345, %v6498, %v6511
    %v6592 = vsel %vm2605, %v6588, %v6517
    %v6593 = vsel %vm2605, %v6589, %v6519
    %v6594 = vsel %vm2605, %v6590, %v6521
    %v6595 = vsel %vm2605, %v6591, %v6523
    %v6596 = vsel %vm5694, %v6592, %v6529
    %v6597 = vsel %vm5694, %v6593, %v6531
    %v6598 = vsel %vm5694, %v6594, %v6533
    %v6599 = vsel %vm5694, %v6595, %v6535
    %v6600 = vsel %vm5824, %v6596, %v6541
    %v6601 = vsel %vm5824, %v6597, %v6543
    %v6602 = vsel %vm5824, %v6598, %v6545
    %v6603 = vsel %vm5824, %v6599, %v6547
    %vm6604 = vcmask 654336
    %v6605 = vsel %vm6604, %v6600, %v6553
    %v6606 = vsel %vm6604, %v6601, %v6555
    %v6607 = vsel %vm6604, %v6602, %v6557
    %v6608 = vsel %vm6604, %v6603, %v6559
    %vm6609 = vcmask 785408
    %v6610 = vsel %vm6609, %v6605, %v6565
    %v6611 = vsel %vm6609, %v6606, %v6567
    %v6612 = vsel %vm6609, %v6607, %v6569
    %v6613 = vsel %vm6609, %v6608, %v6571
    %vm6614 = vcmask 916480
    %v6615 = vsel %vm6614, %v6610, %v6577
    %v6616 = vsel %vm6614, %v6611, %v6579
    %v6617 = vsel %vm6614, %v6612, %v6581
    %v6618 = vsel %vm6614, %v6613, %v6583
    %v6619 = vld [vmem:[%s6] sm:$0xff]
    %v6620 = vld [vmem:[%s6 + $0x8] sm:$0xff]
    %v6621 = vld [vmem:[%s6 + $0x10] sm:$0xff]
    %v6622 = vld [vmem:[%s6 + $0x18] sm:$0xff]
    %v6623 = vld [vmem:[%s6 + $0x20] sm:$0xff]
    %v6624 = vld [vmem:[%s6 + $0x28] sm:$0xff]
    %v6625 = vld [vmem:[%s6 + $0x30] sm:$0xff]
    %v6626 = vld [vmem:[%s6 + $0x38] sm:$0xff]
    %v6627 = vmul.f32 %v6615, %v6619
    %v6628 = vmul.f32 %v6615, %v6620
    %v6629 = vmul.f32 %v6616, %v6621
    %v6630 = vmul.f32 %v6616, %v6622
    %v6631 = vmul.f32 %v6617, %v6623
    %v6632 = vmul.f32 %v6617, %v6624
    %v6633 = vmul.f32 %v6618, %v6625
    %v6634 = vmul.f32 %v6618, %v6626
    %v6635 = vld [vmem:[%s7] sm:$0x3]
    %v6637 = vsel %vm2605, %v6635, 0
    %6639 = vmatpush.msra.mxu0 0.0
    %6640 = vmatpush.msra.mxu0 0.0
    %6641 = vmatpush.msra.mxu0 0.0
    %6642 = vmatpush.msra.mxu0 0.0
    %6643 = vmatpush.msra.mxu0 0.0
    %6644 = vmatpush.msra.mxu0 0.0
    %6645 = vmatpush.msra.mxu0 0.0
    %6646 = vmatpush.msra.mxu0 0.0
    %6647 = vmatpush.msra.mxu0 0.0
    %6648 = vmatpush.msra.mxu0 0.0
    %6649 = vmatpush.msra.mxu0 0.0
    %6650 = vmatpush.msra.mxu0 0.0
    %6651 = vmatpush.msra.mxu0 %v6633
    %6652 = vmatpush.msra.mxu0 %v6631
    %6653 = vmatpush.msra.mxu0 %v6629
    %6654 = vmatpush.msra.mxu0 %v6627
    %6655 = vmatmul.f32.gmra.mxu0 %v6637
    %v6656 = vpop.f32.mrf.mxu0
    %v6657 = vadd.f32 0.0, %v6656
    %6658 = vdwg.mxu0
    %6659 = vmatpush.msra.mxu0 0.0
    %6660 = vmatpush.msra.mxu0 0.0
    %6661 = vmatpush.msra.mxu0 0.0
    %6662 = vmatpush.msra.mxu0 0.0
    %6663 = vmatpush.msra.mxu0 0.0
    %6664 = vmatpush.msra.mxu0 0.0
    %6665 = vmatpush.msra.mxu0 0.0
    %6666 = vmatpush.msra.mxu0 0.0
    %6667 = vmatpush.msra.mxu0 0.0
    %6668 = vmatpush.msra.mxu0 0.0
    %6669 = vmatpush.msra.mxu0 0.0
    %6670 = vmatpush.msra.mxu0 0.0
    %6671 = vmatpush.msra.mxu0 %v6634
    %6672 = vmatpush.msra.mxu0 %v6632
    %6673 = vmatpush.msra.mxu0 %v6630
    %6674 = vmatpush.msra.mxu0 %v6628
    %6675 = vmatmul.f32.gmra.mxu0 %v6637
    %v6676 = vpop.f32.mrf.mxu0
    %v6677 = vadd.f32 0.0, %v6676
    %6678 = vdwg.mxu0
    %v6679 = vld [vmem:[%s8] sm:$0xff]
    %v6680 = vld [vmem:[%s8 + $0x8] sm:$0xff]
    %v6681 = vld [vmem:[%s8 + $0x10] sm:$0xff]
    %v6682 = vld [vmem:[%s8 + $0x18] sm:$0xff]
    %v6683 = vld [vmem:[%s8 + $0x20] sm:$0xff]
    %v6684 = vld [vmem:[%s8 + $0x28] sm:$0xff]
    %v6685 = vld [vmem:[%s8 + $0x30] sm:$0xff]
    %v6686 = vld [vmem:[%s8 + $0x38] sm:$0xff]
    %v6687 = vld [vmem:[%s8 + $0x40] sm:$0xff]
    %v6688 = vld [vmem:[%s8 + $0x48] sm:$0xff]
    %v6689 = vld [vmem:[%s8 + $0x50] sm:$0xff]
    %v6690 = vld [vmem:[%s8 + $0x58] sm:$0xff]
    %v6691 = vld [vmem:[%s8 + $0x60] sm:$0xff]
    %v6692 = vld [vmem:[%s8 + $0x68] sm:$0xff]
    %v6693 = vld [vmem:[%s8 + $0x70] sm:$0xff]
    %v6694 = vld [vmem:[%s8 + $0x78] sm:$0xff]
    %v6695 = vld [vmem:[%s8 + $0x80] sm:$0xff]
    %v6696 = vld [vmem:[%s8 + $0x88] sm:$0xff]
    %v6697 = vld [vmem:[%s8 + $0x90] sm:$0xff]
    %v6698 = vld [vmem:[%s8 + $0x98] sm:$0xff]
    %v6699 = vld [vmem:[%s8 + $0xa0] sm:$0xff]
    %v6700 = vld [vmem:[%s8 + $0xa8] sm:$0xff]
    %v6701 = vld [vmem:[%s8 + $0xb0] sm:$0xff]
    %v6702 = vld [vmem:[%s8 + $0xb8] sm:$0xff]
    %v6703 = vld [vmem:[%s8 + $0xc0] sm:$0xff]
    %v6704 = vld [vmem:[%s8 + $0xc8] sm:$0xff]
    %v6705 = vld [vmem:[%s8 + $0xd0] sm:$0xff]
    %v6706 = vld [vmem:[%s8 + $0xd8] sm:$0xff]
    %v6707 = vld [vmem:[%s8 + $0xe0] sm:$0xff]
    %v6708 = vld [vmem:[%s8 + $0xe8] sm:$0xff]
    %v6709 = vld [vmem:[%s8 + $0xf0] sm:$0xff]
    %v6710 = vld [vmem:[%s8 + $0xf8] sm:$0xff]
    %v6711 = vld [vmem:[%s9] sm:$0x1]
    %v6713 = vperm.slane %v6711, 0
    %6715 = vmatpush.msra.mxu0 %v6694
    %6716 = vmatpush.msra.mxu0 %v6693
    %6717 = vmatpush.msra.mxu0 %v6692
    %6718 = vmatpush.msra.mxu0 %v6691
    %6719 = vmatpush.msra.mxu0 %v6690
    %6720 = vmatpush.msra.mxu0 %v6689
    %6721 = vmatpush.msra.mxu0 %v6688
    %6722 = vmatpush.msra.mxu0 %v6687
    %6723 = vmatpush.msra.mxu0 %v6686
    %6724 = vmatpush.msra.mxu0 %v6685
    %6725 = vmatpush.msra.mxu0 %v6684
    %6726 = vmatpush.msra.mxu0 %v6683
    %6727 = vmatpush.msra.mxu0 %v6682
    %6728 = vmatpush.msra.mxu0 %v6681
    %6729 = vmatpush.msra.mxu0 %v6680
    %6730 = vmatpush.msra.mxu0 %v6679
    %6731 = vmatmul.f32.gmra.mxu0 %v6657
    %v6732 = vpop.f32.mrf.mxu0
    %v6733 = vadd.f32 %v6713, %v6732
    %6734 = vdwg.mxu0
    %6735 = vmatpush.msra.mxu0 %v6710
    %6736 = vmatpush.msra.mxu0 %v6709
    %6737 = vmatpush.msra.mxu0 %v6708
    %6738 = vmatpush.msra.mxu0 %v6707
    %6739 = vmatpush.msra.mxu0 %v6706
    %6740 = vmatpush.msra.mxu0 %v6705
    %6741 = vmatpush.msra.mxu0 %v6704
    %6742 = vmatpush.msra.mxu0 %v6703
    %6743 = vmatpush.msra.mxu0 %v6702
    %6744 = vmatpush.msra.mxu0 %v6701
    %6745 = vmatpush.msra.mxu0 %v6700
    %6746 = vmatpush.msra.mxu0 %v6699
    %6747 = vmatpush.msra.mxu0 %v6698
    %6748 = vmatpush.msra.mxu0 %v6697
    %6749 = vmatpush.msra.mxu0 %v6696
    %6750 = vmatpush.msra.mxu0 %v6695
    %6751 = vmatmul.f32.gmra.mxu0 %v6677
    %v6752 = vpop.f32.mrf.mxu0
    %v6753 = vadd.f32 %v6733, %v6752
    %6754 = vdwg.mxu0
    %6755 = vst [vmem:[#allocation2] sm:$0x3] %v6753
    // Predicated region
    $region42: #{audio_cnn_forward.1} parent=1 // pred_check
      _
    $region43: #{audio_cnn_forward.1} parent=1 // pred_check_branch
      %6757 = sbr.rel (0) target = $region45
    $region44: #{audio_cnn_forward.1} parent=1 // pred_region
      %6759 = vsyncadd [#allocation3], 0
      %s6761 = sshll.u32 [#allocation2], 4
      %s6762 = int_to_ptr.vmem [resolvable:$true] %s6761
      %s6763 = sshll.u32 %s10, 4
      %s6764 = int_to_ptr.hbm [resolvable:$true] %s6763
      %6766 = dma.vmem_to_hbm [thread:$0]  %s6762, 32, %s6764, [#allocation3]
    $region45: #{audio_cnn_forward.1} parent=1 // pred_fallthru
      _
    // Predicated region
    $region46: #{audio_cnn_forward.1} parent=1 // pred_check
      _
    $region47: #{audio_cnn_forward.1} parent=1 // pred_check_branch
      %6768 = sbr.rel (0) target = $region49
    $region48: #{audio_cnn_forward.1} parent=1 // pred_region
      %6770 = dma.done [#allocation3], 32
    $region49: #{audio_cnn_forward.1} parent=1 // pred_fallthru
      _
    %6771 = vsyncpa [#allocation3], 1

</llo_original>
